<compile_context>
chip_gen: v7x
topology: tpu7x:2x2x1
jax: 0.10.0
libtpu: 0.0.40
codegen_flags: <defaults>
</compile_context>

<pallas_src>
import functools
import math

import jax
import jax.numpy as jnp
from jax.experimental import pallas as pl
from jax.experimental.pallas import tpu as pltpu


# ----------------------------- hardware-aware knobs ---------------------------

@functools.lru_cache(maxsize=None)
def _device_kind():
    try:
        return jax.devices()[0].device_kind.lower()
    except Exception:
        return ""


@functools.lru_cache(maxsize=None)
def _vmem_limit_bytes():
    # ~25% headroom below physical per-core VMEM (64 MiB on v7x, 128 MiB on
    # v5e/v6e) so the compiler keeps room for internal scratch / semaphores.
    try:
        cap = int(pltpu.get_tpu_info().vmem_capacity_bytes)
    except Exception:
        cap = 64 * 1024 * 1024          # safe on every generation
    return cap * 3 // 4


@functools.lru_cache(maxsize=None)
def _is_256_mxu():
    kind = _device_kind()
    return any(tag in kind for tag in ("v6", "v7", "7x"))


def _preferred_q_tile():
    # v6e/v7x MXUs are 256-wide -> 256-row query tiles; v5e keeps 128.
    return 256 if _is_256_mxu() else 128


def _choose_q_tile(s):
    cands = []
    for t in (_preferred_q_tile(), 256, 128, 512, 64):
        if t not in cands:
            cands.append(t)
    for tq in cands:
        if tq <= s and s % tq == 0:
            return tq
    return s


def _rep_spec(arr):
    # Grid-invariant (replicated) operand: full-array block, constant index
    # map, single-buffered (double buffering a never-changing block wastes VMEM).
    zeros = (0,) * arr.ndim
    try:
        return pl.BlockSpec(arr.shape, lambda *_: zeros,
                            pipeline_mode=pl.Buffered(1))
    except Exception:   # pipeline_mode unsupported on this jax version
        return pl.BlockSpec(arr.shape, lambda *_: zeros)


def _compiler_params(semantics):
    return pltpu.CompilerParams(dimension_semantics=semantics,
                                vmem_limit_bytes=_vmem_limit_bytes())


def _layer_norm(x, gamma, beta, eps=1e-12):
    # f32 LayerNorm (BERT eps=1e-12); gamma/beta: [1, D]
    mu = jnp.mean(x, axis=-1, keepdims=True)
    var = jnp.mean((x - mu) ** 2, axis=-1, keepdims=True)
    return (x - mu) * jax.lax.rsqrt(var + eps) * gamma + beta


# ------------------------------- Pallas kernels -------------------------------

def emb_ln_kernel(we_ref, pe_ref, te_ref, g_ref, b_ref, o_ref):
    # fused word + position + type embedding sum (bf16 in, f32 math) + LayerNorm
    x = (we_ref[0].astype(jnp.float32) + pe_ref[...].astype(jnp.float32)
         + te_ref[0].astype(jnp.float32))
    o_ref[0] = _layer_norm(x, g_ref[...], b_ref[...]).astype(o_ref.dtype)


def qkv_kernel(x_ref, w_ref, b_ref, q_ref, kv_ref):
    # fused QKV projection; lane-dense stores: Q -> [TQ,H], K|V -> [TQ,2H]
    H = x_ref.shape[-1]
    qkv = jnp.dot(x_ref[0], w_ref[...],
                  preferred_element_type=jnp.float32) + b_ref[...]
    qkv = qkv.astype(q_ref.dtype)                 # bf16 [TQ, 3H]
    q_ref[0] = qkv[:, :H]                         # lane-aligned split (H % 128 == 0 for real BERT)
    kv_ref[0] = qkv[:, H:]


def bert_layer_kernel(x_ref, q_ref, kv_ref, mask_ref,
                      woR_ref, bo_ref, ln1_g_ref, ln1_b_ref,
                      w1_ref, b1_ref, w2_ref, b2_ref,
                      ln2_g_ref, ln2_b_ref, out_ref, *, num_heads, exp_bf16):
    x = x_ref[0]                         # [TQ, H]  bf16 (residual)
    qm = q_ref[0]                        # [TQ, H]  bf16
    kv = kv_ref[0]                       # [S, 2H]  bf16 (K | V, head-concatenated)
    mask = mask_ref[0]                   # [1, S]   f32 additive mask
    H = x.shape[-1]
    hd = H // num_heads
    scale = 1.0 / math.sqrt(hd)

    # Per-head attention + per-head output projection accumulation: never
    # materializes [nH,TQ,S] or [nH,TQ,H] f32 tensors (minimal VMEM pressure).
    attn = None
    for h in range(num_heads):
        qh = qm[:, h * hd:(h + 1) * hd]
        kh = kv[:, h * hd:(h + 1) * hd]
        vh = kv[:, H + h * hd:H + (h + 1) * hd]
        s = jax.lax.dot_general(qh, kh, (((1,), (1,)), ((), ())),
                                preferred_element_type=jnp.float32)
        s = s * scale + mask                                     # [TQ, S] f32
        m = jnp.max(s, axis=-1, keepdims=True)
        if exp_bf16:                       # bf16 EUP exp on v6e/v7x only
            e = jnp.exp((s - m).astype(jnp.bfloat16)).astype(jnp.float32)
        else:
            e = jnp.exp(s - m)
        p = e / jnp.sum(e, axis=-1, keepdims=True)               # exact softmax
        ctx = jnp.dot(p.astype(vh.dtype), vh,
                      preferred_element_type=jnp.float32)        # [TQ, hd]
        d = jnp.dot(ctx.astype(x.dtype), woR_ref[h],
                    preferred_element_type=jnp.float32)          # [TQ, H]
        attn = d if attn is None else attn + d
    attn = attn + bo_ref[...]

    h1 = _layer_norm(x.astype(jnp.float32) + attn, ln1_g_ref[...], ln1_b_ref[...])

    ff = jnp.dot(h1.astype(x.dtype), w1_ref[...],
                 preferred_element_type=jnp.float32) + b1_ref[...]
    # TODO(synk): HF BERT uses exact erf GELU; tanh-approx is kept for the EUP.
    ff = jax.nn.gelu(ff)
    ff = jnp.dot(ff.astype(x.dtype), w2_ref[...],
                 preferred_element_type=jnp.float32) + b2_ref[...]

    out_ref[0] = _layer_norm(h1 + ff, ln2_g_ref[...],
                             ln2_b_ref[...]).astype(out_ref.dtype)


def head_kernel(x_ref, w_ref, b_ref, sm_ref, lsm_ref, *, n_best):
    # n-best linear head (lane-padded to 128) + softmax and the
    # log_softmax(softmax(.)) that CrossEntropyLoss applies to it.
    logits = jnp.dot(x_ref[...], w_ref[...],
                     preferred_element_type=jnp.float32) + b_ref[...]
    rows, n_pad = logits.shape
    valid = jax.lax.broadcasted_iota(jnp.int32, (rows, n_pad), 1) < n_best
    neg = jnp.float32(-1e30)

    logits = jnp.where(valid, logits, neg)
    m = jnp.max(logits, axis=-1, keepdims=True)
    e = jnp.exp(logits - m)                         # padded lanes underflow to 0
    sm = e / jnp.sum(e, axis=-1, keepdims=True)
    sm_ref[...] = sm

    z = jnp.where(valid, sm, neg)
    m2 = jnp.max(z, axis=-1, keepdims=True)
    e2 = jnp.exp(z - m2)
    lsm_ref[...] = (z - m2) - jnp.log(jnp.sum(e2, axis=-1, keepdims=True))


# ------------------------------ pallas_call glue ------------------------------

def _emb_ln_pallas(we, pe, te, gamma, beta):
    B, S, H = we.shape
    TQ = _choose_q_tile(S)
    blk3 = pl.BlockSpec((1, TQ, H), lambda b, qi: (b, qi, 0))
    return pl.pallas_call(
        emb_ln_kernel,
        out_shape=jax.ShapeDtypeStruct((B, S, H), jnp.bfloat16),
        grid=(B, S // TQ),
        in_specs=[blk3,
                  pl.BlockSpec((TQ, H), lambda b, qi: (qi, 0)),
                  blk3,
                  _rep_spec(gamma), _rep_spec(beta)],
        out_specs=pl.BlockSpec((1, TQ, H), lambda b, qi: (b, qi, 0)),
        compiler_params=_compiler_params(("parallel", "parallel")),
    )(we, pe, te, gamma, beta)


def _qkv_pallas(x, wqkv, bqkv):
    B, S, H = x.shape
    TQ = _choose_q_tile(S)
    return pl.pallas_call(
        qkv_kernel,
        out_shape=(jax.ShapeDtypeStruct((B, S, H), jnp.bfloat16),
                   jax.ShapeDtypeStruct((B, S, 2 * H), jnp.bfloat16)),
        grid=(B, S // TQ),
        in_specs=[pl.BlockSpec((1, TQ, H), lambda b, qi: (b, qi, 0)),
                  _rep_spec(wqkv), _rep_spec(bqkv)],
        out_specs=(pl.BlockSpec((1, TQ, H), lambda b, qi: (b, qi, 0)),
                   pl.BlockSpec((1, TQ, 2 * H), lambda b, qi: (b, qi, 0))),
        compiler_params=_compiler_params(("parallel", "parallel")),
    )(x, wqkv, bqkv)


def _bert_layer_pallas(x, q, kv, add_mask, lp, num_heads):
    B, S, H = x.shape
    hd = H // num_heads
    TQ = _choose_q_tile(S)
    woR = lp["wo"].reshape(num_heads, hd, H)     # pure reshape, outside kernel
    weights = [woR, lp["bo"], lp["ln1_g"], lp["ln1_b"],
               lp["w1"], lp["b1"], lp["w2"], lp["b2"],
               lp["ln2_g"], lp["ln2_b"]]
    kernel = functools.partial(bert_layer_kernel, num_heads=num_heads,
                               exp_bf16=_is_256_mxu())
    in_specs = [pl.BlockSpec((1, TQ, H), lambda b, qi: (b, qi, 0)),       # x
                pl.BlockSpec((1, TQ, H), lambda b, qi: (b, qi, 0)),       # q
                pl.BlockSpec((1, S, 2 * H), lambda b, qi: (b, 0, 0)),     # k|v
                pl.BlockSpec((1, 1, S), lambda b, qi: (b, 0, 0))]         # mask
    in_specs += [_rep_spec(w) for w in weights]
    # TODO(synk): for S >= ~2K on v7x add a K/V grid axis + flash-style online
    # softmax instead of full-S K/V residency.
    return pl.pallas_call(
        kernel,
        out_shape=jax.ShapeDtypeStruct((B, S, H), jnp.bfloat16),
        grid=(B, S // TQ),
        in_specs=in_specs,
        out_specs=pl.BlockSpec((1, TQ, H), lambda b, qi: (b, qi, 0)),
        input_output_aliases={0: 0},   # update the hidden state in place
        compiler_params=_compiler_params(("parallel", "parallel")),
    )(x, q, kv, add_mask, *weights)


def _head_pallas(x_rows, w_pad, b_pad, n_best):
    R, H = x_rows.shape
    n_pad = w_pad.shape[1]
    kernel = functools.partial(head_kernel, n_best=n_best)
    return pl.pallas_call(
        kernel,
        out_shape=(jax.ShapeDtypeStruct((R, n_pad), jnp.float32),
                   jax.ShapeDtypeStruct((R, n_pad), jnp.float32)),
        grid=(1,),
        in_specs=[pl.BlockSpec((R, H), lambda i: (0, 0)),
                  _rep_spec(w_pad), _rep_spec(b_pad)],
        out_specs=(pl.BlockSpec((R, n_pad), lambda i: (0, 0)),
                   pl.BlockSpec((R, n_pad), lambda i: (0, 0))),
        compiler_params=_compiler_params(("arbitrary",)),
    )(x_rows, w_pad, b_pad)


# ------------------------------ parameter setup -------------------------------

def init_params(key, *, vocab, max_pos, hidden, inter, n_layers, n_best, n_types=2):
    def normal(k, shape, dtype=jnp.float32):
        return (0.02 * jax.random.normal(k, shape, jnp.float32)).astype(dtype)

    n_pad = max(128, ((n_best + 127) // 128) * 128)     # lane-dense head output
    keys = iter(jax.random.split(key, 4 + 4 * n_layers))
    params = {
        "word_emb": normal(next(keys), (vocab, hidden), jnp.bfloat16),
        "pos_emb": normal(next(keys), (max_pos, hidden), jnp.bfloat16),
        "type_emb": normal(next(keys), (n_types, hidden), jnp.bfloat16),
        "emb_ln_g": jnp.ones((1, hidden), jnp.float32),
        "emb_ln_b": jnp.zeros((1, hidden), jnp.float32),
        "layers": [],
    }
    for _ in range(n_layers):
        params["layers"].append({
            "wqkv": normal(next(keys), (hidden, 3 * hidden), jnp.bfloat16),
            "bqkv": jnp.zeros((1, 3 * hidden), jnp.float32),
            "wo": normal(next(keys), (hidden, hidden), jnp.bfloat16),
            "bo": jnp.zeros((1, hidden), jnp.float32),
            "ln1_g": jnp.ones((1, hidden), jnp.float32),
            "ln1_b": jnp.zeros((1, hidden), jnp.float32),
            "w1": normal(next(keys), (hidden, inter), jnp.bfloat16),
            "b1": jnp.zeros((1, inter), jnp.float32),
            "w2": normal(next(keys), (inter, hidden), jnp.bfloat16),
            "b2": jnp.zeros((1, hidden), jnp.float32),
            "ln2_g": jnp.ones((1, hidden), jnp.float32),
            "ln2_b": jnp.zeros((1, hidden), jnp.float32),
        })
    lin_w = normal(next(keys), (hidden, n_best), jnp.bfloat16)
    params["lin_w_pad"] = jnp.zeros((hidden, n_pad), jnp.bfloat16).at[:, :n_best].set(lin_w)
    params["lin_b_pad"] = jnp.zeros((1, n_pad), jnp.float32)
    return params


# --------------------------------- forward -----------------------------------

@functools.partial(jax.jit, static_argnames=("num_heads", "n_best"))
def nbest_align_bert_forward(params, input_ids, attention_mask, token_type_ids,
                             prediction_pos, labels, *, num_heads, n_best):
    B, S = input_ids.shape
    H = params["word_emb"].shape[1]

    # --- BERT embeddings: bf16 gathers are glue; sum + LayerNorm fused in Pallas
    we = params["word_emb"][input_ids]              # [B, S, H] bf16
    te = params["type_emb"][token_type_ids]         # [B, S, H] bf16
    pe = params["pos_emb"][:S]                      # [S, H]    bf16
    hidden = _emb_ln_pallas(we, pe, te, params["emb_ln_g"], params["emb_ln_b"])

    # additive BERT mask precomputed once (not per head / per layer)
    add_mask = ((1.0 - attention_mask.astype(jnp.float32)) * -10000.0).reshape(B, 1, S)

    # --- BERT encoder layers (Pallas: QKV kernel + fused attention/FFN kernel)
    for lp in params["layers"]:
        q, kv = _qkv_pallas(hidden, lp["wqkv"], lp["bqkv"])
        hidden = _bert_layer_pallas(hidden, q, kv, add_mask, lp, num_heads)

    # --- n-best head only on the prediction positions (lane-padded, Pallas) ---
    batch_idx = jnp.arange(B)[:, None]                       # [B, 1]
    P = prediction_pos.shape[1]
    x_pred = hidden[batch_idx, prediction_pos].reshape(B * P, H)   # [B*P, H] bf16
    sm_p, lsm_p = _head_pallas(x_pred, params["lin_w_pad"], params["lin_b_pad"], n_best)
    pred_distribution = sm_p[:, :n_best].reshape(B, P, n_best)
    pred_log_sm = lsm_p[:, :n_best].reshape(B, P, n_best)

    # --- per-example loss / prediction (index glue, mirrors the torch loop) ---
    # torch CrossEntropyLoss on softmax outputs with soft one-hot targets:
    # mean over the P rows, summed over the batch (the `loss +=` python loop).
    label_one_hot = jax.nn.one_hot(labels, n_best, dtype=jnp.float32)
    per_row_ce = -jnp.sum(label_one_hot * pred_log_sm, axis=-1)    # [B, P]
    loss = jnp.sum(jnp.mean(per_row_ce, axis=-1))

    pred_class = jnp.argmax(pred_distribution, axis=-1)            # [B, P]
    # PyTorch would raise on an out-of-range index; clamp explicitly instead.
    gather_pos = jnp.clip(prediction_pos + 1 + pred_class, 0, S - 1)
    token_ids = input_ids[batch_idx, gather_pos]
    # TODO(synk): tokenizer.convert_ids_to_tokens (string detokenization) has no
    # Pallas/JAX equivalent; the raw predicted token ids are returned instead.
    return {"loss": loss, "prediction_token_ids": token_ids}


# ----------------------------------- main -------------------------------------

if __name__ == "__main__":
    # small synthetic BERT config
    B, S, H, INTER, NUM_HEADS, N_LAYERS = 2, 16, 32, 64, 4, 2
    VOCAB, MAX_POS, N_BEST, P = 50, 64, 4, 3

    key = jax.random.PRNGKey(0)
    k_param, k_ids, k_labels = jax.random.split(key, 3)

    params = init_params(k_param, vocab=VOCAB, max_pos=MAX_POS, hidden=H,
                         inter=INTER, n_layers=N_LAYERS, n_best=N_BEST)

    input_ids = jax.random.randint(k_ids, (B, S), 0, VOCAB, dtype=jnp.int32)
    attention_mask = jnp.ones((B, S), jnp.int32).at[:, S - 2:].set(0)
    token_type_ids = jnp.zeros((B, S), jnp.int32)
    prediction_pos = jnp.array([[1, 5, 9], [2, 6, 10]], jnp.int32)   # pos+1+class < S
    labels = jax.random.randint(k_labels, (B, P), 0, N_BEST, dtype=jnp.int32)

    out = nbest_align_bert_forward(params, input_ids, attention_mask,
                                   token_type_ids, prediction_pos, labels,
                                   num_heads=NUM_HEADS, n_best=N_BEST)
    jax.block_until_ready((out["loss"], out["prediction_token_ids"]))
    assert out["loss"].shape == () and out["prediction_token_ids"].shape == (B, P)
    print("KERNEL_OK")
</pallas_src>

<mosaic_0001>
module attributes {stable_mosaic.version = 11 : i64} {
  func.func @emb_ln_kernel(%arg0: i32, %arg1: i32, %arg2: memref<1x16x32xbf16, #tpu.memory_space<vmem>>, %arg3: memref<16x32xbf16, #tpu.memory_space<vmem>>, %arg4: memref<1x16x32xbf16, #tpu.memory_space<vmem>>, %arg5: memref<1x32xf32, #tpu.memory_space<vmem>>, %arg6: memref<1x32xf32, #tpu.memory_space<vmem>>, %arg7: memref<1x16x32xbf16, #tpu.memory_space<vmem>>) attributes {dimension_semantics = [#tpu.dimension_semantics<parallel>, #tpu.dimension_semantics<parallel>], iteration_bounds = array<i64: 2, 1>, scalar_prefetch = 0 : i64, scratch_operands = 0 : i64, tpu.core_type = #tpu.core_type<tc>, window_params = [{transform_indices = @transform_0, window_bounds = array<i64: 1, 16, 32>}, {transform_indices = @transform_1, window_bounds = array<i64: 16, 32>}, {transform_indices = @transform_2, window_bounds = array<i64: 1, 16, 32>}, {pipeline_mode = #tpu.pipeline_mode<synchronous>, transform_indices = @transform_3, window_bounds = array<i64: 1, 32>}, {pipeline_mode = #tpu.pipeline_mode<synchronous>, transform_indices = @transform_4, window_bounds = array<i64: 1, 32>}, {transform_indices = @transform_5, window_bounds = array<i64: 1, 16, 32>}]} {
    %c0 = arith.constant 0 : index
    %c0_0 = arith.constant 0 : index
    %c0_1 = arith.constant 0 : index
    %0 = vector.load %arg2[%c0, %c0_0, %c0_1] : memref<1x16x32xbf16, #tpu.memory_space<vmem>>, vector<1x16x32xbf16>
    %1 = vector.shape_cast %0 : vector<1x16x32xbf16> to vector<16x32xbf16>
    %2 = arith.extf %1 : vector<16x32xbf16> to vector<16x32xf32>
    %c0_2 = arith.constant 0 : index
    %c0_3 = arith.constant 0 : index
    %3 = vector.load %arg3[%c0_2, %c0_3] : memref<16x32xbf16, #tpu.memory_space<vmem>>, vector<16x32xbf16>
    %4 = arith.extf %3 : vector<16x32xbf16> to vector<16x32xf32>
    %5 = arith.addf %2, %4 : vector<16x32xf32>
    %c0_4 = arith.constant 0 : index
    %c0_5 = arith.constant 0 : index
    %c0_6 = arith.constant 0 : index
    %6 = vector.load %arg4[%c0_4, %c0_5, %c0_6] : memref<1x16x32xbf16, #tpu.memory_space<vmem>>, vector<1x16x32xbf16>
    %7 = vector.shape_cast %6 : vector<1x16x32xbf16> to vector<16x32xbf16>
    %8 = arith.extf %7 : vector<16x32xbf16> to vector<16x32xf32>
    %9 = arith.addf %5, %8 : vector<16x32xf32>
    %c0_7 = arith.constant 0 : index
    %c0_8 = arith.constant 0 : index
    %10 = vector.load %arg5[%c0_7, %c0_8] : memref<1x32xf32, #tpu.memory_space<vmem>>, vector<1x32xf32>
    %c0_9 = arith.constant 0 : index
    %c0_10 = arith.constant 0 : index
    %11 = vector.load %arg6[%c0_9, %c0_10] : memref<1x32xf32, #tpu.memory_space<vmem>>, vector<1x32xf32>
    %cst = arith.constant dense<0.000000e+00> : vector<16xf32>
    %12 = vector.multi_reduction <add>, %9, %cst [1] : vector<16x32xf32> to vector<16xf32>
    %13 = vector.shape_cast %12 : vector<16xf32> to vector<16x1xf32>
    %cst_11 = arith.constant 3.200000e+01 : f32
    %14 = vector.broadcast %cst_11 : f32 to vector<16x1xf32>
    %15 = arith.divf %13, %14 : vector<16x1xf32>
    %16 = vector.broadcast %15 : vector<16x1xf32> to vector<16x32xf32>
    %17 = arith.subf %9, %16 : vector<16x32xf32>
    %18 = arith.mulf %17, %17 : vector<16x32xf32>
    %cst_12 = arith.constant dense<0.000000e+00> : vector<16xf32>
    %19 = vector.multi_reduction <add>, %18, %cst_12 [1] : vector<16x32xf32> to vector<16xf32>
    %20 = vector.shape_cast %19 : vector<16xf32> to vector<16x1xf32>
    %cst_13 = arith.constant 3.200000e+01 : f32
    %21 = vector.broadcast %cst_13 : f32 to vector<16x1xf32>
    %22 = arith.divf %20, %21 : vector<16x1xf32>
    %23 = vector.broadcast %15 : vector<16x1xf32> to vector<16x32xf32>
    %24 = arith.subf %9, %23 : vector<16x32xf32>
    %cst_14 = arith.constant 9.99999996E-13 : f32
    %25 = vector.broadcast %cst_14 : f32 to vector<16x1xf32>
    %26 = arith.addf %22, %25 : vector<16x1xf32>
    %27 = math.rsqrt %26 : vector<16x1xf32>
    %28 = vector.broadcast %27 : vector<16x1xf32> to vector<16x32xf32>
    %29 = arith.mulf %24, %28 : vector<16x32xf32>
    %30 = vector.broadcast %10 : vector<1x32xf32> to vector<16x32xf32>
    %31 = arith.mulf %29, %30 : vector<16x32xf32>
    %32 = vector.broadcast %11 : vector<1x32xf32> to vector<16x32xf32>
    %33 = arith.addf %31, %32 : vector<16x32xf32>
    %34 = arith.truncf %33 : vector<16x32xf32> to vector<16x32xbf16>
    %c0_15 = arith.constant 0 : index
    %c0_16 = arith.constant 0 : index
    %c0_17 = arith.constant 0 : index
    %35 = vector.load %arg7[%c0_15, %c0_16, %c0_17] : memref<1x16x32xbf16, #tpu.memory_space<vmem>>, vector<1x16x32xbf16>
    %36 = vector.shape_cast %35 : vector<1x16x32xbf16> to vector<16x32xbf16>
    %37 = vector.shape_cast %34 : vector<16x32xbf16> to vector<1x16x32xbf16>
    tpu.vector_store %arg7[%c0_15, %c0_16, %c0_17], %37 {strides = array<i32>} : memref<1x16x32xbf16, #tpu.memory_space<vmem>>, vector<1x16x32xbf16>,
    return
  }
  func.func @transform_0(%arg0: i32, %arg1: i32) -> (i32, i32, i32) {
    %c0_i32 = arith.constant 0 : i32
    %c0_i32_0 = arith.constant 0 : i32
    return %arg0, %arg1, %c0_i32 : i32, i32, i32
  }
  func.func @transform_1(%arg0: i32, %arg1: i32) -> (i32, i32) {
    %c0_i32 = arith.constant 0 : i32
    %c0_i32_0 = arith.constant 0 : i32
    return %arg1, %c0_i32 : i32, i32
  }
  func.func @transform_2(%arg0: i32, %arg1: i32) -> (i32, i32, i32) {
    %c0_i32 = arith.constant 0 : i32
    %c0_i32_0 = arith.constant 0 : i32
    return %arg0, %arg1, %c0_i32 : i32, i32, i32
  }
  func.func @transform_3(%arg0: i32, %arg1: i32) -> (i32, i32) {
    %c0_i32 = arith.constant 0 : i32
    %c0_i32_0 = arith.constant 0 : i32
    %c0_i32_1 = arith.constant 0 : i32
    return %c0_i32, %c0_i32_0 : i32, i32
  }
  func.func @transform_4(%arg0: i32, %arg1: i32) -> (i32, i32) {
    %c0_i32 = arith.constant 0 : i32
    %c0_i32_0 = arith.constant 0 : i32
    %c0_i32_1 = arith.constant 0 : i32
    return %c0_i32, %c0_i32_0 : i32, i32
  }
  func.func @transform_5(%arg0: i32, %arg1: i32) -> (i32, i32, i32) {
    %c0_i32 = arith.constant 0 : i32
    %c0_i32_0 = arith.constant 0 : i32
    return %arg0, %arg1, %c0_i32 : i32, i32, i32
  }
}

module attributes {stable_mosaic.version = 11 : i64} {
  func.func @qkv_kernel(%arg0: i32, %arg1: i32, %arg2: memref<1x16x32xbf16, #tpu.memory_space<vmem>>, %arg3: memref<32x96xbf16, #tpu.memory_space<vmem>>, %arg4: memref<1x96xf32, #tpu.memory_space<vmem>>, %arg5: memref<1x16x32xbf16, #tpu.memory_space<vmem>>, %arg6: memref<1x16x64xbf16, #tpu.memory_space<vmem>>) attributes {dimension_semantics = [#tpu.dimension_semantics<parallel>, #tpu.dimension_semantics<parallel>], iteration_bounds = array<i64: 2, 1>, scalar_prefetch = 0 : i64, scratch_operands = 0 : i64, tpu.core_type = #tpu.core_type<tc>, window_params = [{transform_indices = @transform_0, window_bounds = array<i64: 1, 16, 32>}, {pipeline_mode = #tpu.pipeline_mode<synchronous>, transform_indices = @transform_1, window_bounds = array<i64: 32, 96>}, {pipeline_mode = #tpu.pipeline_mode<synchronous>, transform_indices = @transform_2, window_bounds = array<i64: 1, 96>}, {transform_indices = @transform_3, window_bounds = array<i64: 1, 16, 32>}, {transform_indices = @transform_4, window_bounds = array<i64: 1, 16, 64>}]} {
    %c0 = arith.constant 0 : index
    %c0_0 = arith.constant 0 : index
    %c0_1 = arith.constant 0 : index
    %0 = vector.load %arg2[%c0, %c0_0, %c0_1] : memref<1x16x32xbf16, #tpu.memory_space<vmem>>, vector<1x16x32xbf16>
    %1 = vector.shape_cast %0 : vector<1x16x32xbf16> to vector<16x32xbf16>
    %c0_2 = arith.constant 0 : index
    %c0_3 = arith.constant 0 : index
    %2 = vector.load %arg3[%c0_2, %c0_3] : memref<32x96xbf16, #tpu.memory_space<vmem>>, vector<32x96xbf16>
    %cst = arith.constant dense<0.000000e+00> : vector<16x96xf32>
    %3 = tpu.matmul %1, %2, %cst {dimension_numbers = #tpu.dot_dimension_numbers<[1], [0], [0], [1], [0, 0, 1, 1], [], []>} : vector<16x32xbf16>, vector<32x96xbf16>, vector<16x96xf32> -> vector<16x96xf32>
    %c0_4 = arith.constant 0 : index
    %c0_5 = arith.constant 0 : index
    %4 = vector.load %arg4[%c0_4, %c0_5] : memref<1x96xf32, #tpu.memory_space<vmem>>, vector<1x96xf32>
    %5 = vector.broadcast %4 : vector<1x96xf32> to vector<16x96xf32>
    %6 = arith.addf %3, %5 : vector<16x96xf32>
    %7 = arith.truncf %6 : vector<16x96xf32> to vector<16x96xbf16>
    %8 = vector.extract_strided_slice %7 {offsets = [0, 0], sizes = [16, 32], strides = [1, 1]} : vector<16x96xbf16> to vector<16x32xbf16>
    %c0_6 = arith.constant 0 : index
    %c0_7 = arith.constant 0 : index
    %c0_8 = arith.constant 0 : index
    %9 = vector.load %arg5[%c0_6, %c0_7, %c0_8] : memref<1x16x32xbf16, #tpu.memory_space<vmem>>, vector<1x16x32xbf16>
    %10 = vector.shape_cast %9 : vector<1x16x32xbf16> to vector<16x32xbf16>
    %11 = vector.shape_cast %8 : vector<16x32xbf16> to vector<1x16x32xbf16>
    tpu.vector_store %arg5[%c0_6, %c0_7, %c0_8], %11 {strides = array<i32>} : memref<1x16x32xbf16, #tpu.memory_space<vmem>>, vector<1x16x32xbf16>,
    %12 = vector.extract_strided_slice %7 {offsets = [0, 32], sizes = [16, 64], strides = [1, 1]} : vector<16x96xbf16> to vector<16x64xbf16>
    %c0_9 = arith.constant 0 : index
    %c0_10 = arith.constant 0 : index
    %c0_11 = arith.constant 0 : index
    %13 = vector.load %arg6[%c0_9, %c0_10, %c0_11] : memref<1x16x64xbf16, #tpu.memory_space<vmem>>, vector<1x16x64xbf16>
    %14 = vector.shape_cast %13 : vector<1x16x64xbf16> to vector<16x64xbf16>
    %15 = vector.shape_cast %12 : vector<16x64xbf16> to vector<1x16x64xbf16>
    tpu.vector_store %arg6[%c0_9, %c0_10, %c0_11], %15 {strides = array<i32>} : memref<1x16x64xbf16, #tpu.memory_space<vmem>>, vector<1x16x64xbf16>,
    return
  }
  func.func @transform_0(%arg0: i32, %arg1: i32) -> (i32, i32, i32) {
    %c0_i32 = arith.constant 0 : i32
    %c0_i32_0 = arith.constant 0 : i32
    return %arg0, %arg1, %c0_i32 : i32, i32, i32
  }
  func.func @transform_1(%arg0: i32, %arg1: i32) -> (i32, i32) {
    %c0_i32 = arith.constant 0 : i32
    %c0_i32_0 = arith.constant 0 : i32
    %c0_i32_1 = arith.constant 0 : i32
    return %c0_i32, %c0_i32_0 : i32, i32
  }
  func.func @transform_2(%arg0: i32, %arg1: i32) -> (i32, i32) {
    %c0_i32 = arith.constant 0 : i32
    %c0_i32_0 = arith.constant 0 : i32
    %c0_i32_1 = arith.constant 0 : i32
    return %c0_i32, %c0_i32_0 : i32, i32
  }
  func.func @transform_3(%arg0: i32, %arg1: i32) -> (i32, i32, i32) {
    %c0_i32 = arith.constant 0 : i32
    %c0_i32_0 = arith.constant 0 : i32
    return %arg0, %arg1, %c0_i32 : i32, i32, i32
  }
  func.func @transform_4(%arg0: i32, %arg1: i32) -> (i32, i32, i32) {
    %c0_i32 = arith.constant 0 : i32
    %c0_i32_0 = arith.constant 0 : i32
    return %arg0, %arg1, %c0_i32 : i32, i32, i32
  }
}

module attributes {stable_mosaic.version = 11 : i64} {
  func.func @bert_layer_kernel(%arg0: i32, %arg1: i32, %arg2: memref<1x16x32xbf16, #tpu.memory_space<vmem>>, %arg3: memref<1x16x32xbf16, #tpu.memory_space<vmem>>, %arg4: memref<1x16x64xbf16, #tpu.memory_space<vmem>>, %arg5: memref<1x1x16xf32, #tpu.memory_space<vmem>>, %arg6: memref<4x8x32xbf16, #tpu.memory_space<vmem>>, %arg7: memref<1x32xf32, #tpu.memory_space<vmem>>, %arg8: memref<1x32xf32, #tpu.memory_space<vmem>>, %arg9: memref<1x32xf32, #tpu.memory_space<vmem>>, %arg10: memref<32x64xbf16, #tpu.memory_space<vmem>>, %arg11: memref<1x64xf32, #tpu.memory_space<vmem>>, %arg12: memref<64x32xbf16, #tpu.memory_space<vmem>>, %arg13: memref<1x32xf32, #tpu.memory_space<vmem>>, %arg14: memref<1x32xf32, #tpu.memory_space<vmem>>, %arg15: memref<1x32xf32, #tpu.memory_space<vmem>>, %arg16: memref<1x16x32xbf16, #tpu.memory_space<vmem>>) attributes {dimension_semantics = [#tpu.dimension_semantics<parallel>, #tpu.dimension_semantics<parallel>], iteration_bounds = array<i64: 2, 1>, scalar_prefetch = 0 : i64, scratch_operands = 0 : i64, tpu.core_type = #tpu.core_type<tc>, window_params = [{transform_indices = @transform_0, window_bounds = array<i64: 1, 16, 32>}, {transform_indices = @transform_1, window_bounds = array<i64: 1, 16, 32>}, {transform_indices = @transform_2, window_bounds = array<i64: 1, 16, 64>}, {transform_indices = @transform_3, window_bounds = array<i64: 1, 1, 16>}, {pipeline_mode = #tpu.pipeline_mode<synchronous>, transform_indices = @transform_4, window_bounds = array<i64: 4, 8, 32>}, {pipeline_mode = #tpu.pipeline_mode<synchronous>, transform_indices = @transform_5, window_bounds = array<i64: 1, 32>}, {pipeline_mode = #tpu.pipeline_mode<synchronous>, transform_indices = @transform_6, window_bounds = array<i64: 1, 32>}, {pipeline_mode = #tpu.pipeline_mode<synchronous>, transform_indices = @transform_7, window_bounds = array<i64: 1, 32>}, {pipeline_mode = #tpu.pipeline_mode<synchronous>, transform_indices = @transform_8, window_bounds = array<i64: 32, 64>}, {pipeline_mode = #tpu.pipeline_mode<synchronous>, transform_indices = @transform_9, window_bounds = array<i64: 1, 64>}, {pipeline_mode = #tpu.pipeline_mode<synchronous>, transform_indices = @transform_10, window_bounds = array<i64: 64, 32>}, {pipeline_mode = #tpu.pipeline_mode<synchronous>, transform_indices = @transform_11, window_bounds = array<i64: 1, 32>}, {pipeline_mode = #tpu.pipeline_mode<synchronous>, transform_indices = @transform_12, window_bounds = array<i64: 1, 32>}, {pipeline_mode = #tpu.pipeline_mode<synchronous>, transform_indices = @transform_13, window_bounds = array<i64: 1, 32>}, {transform_indices = @transform_14, window_bounds = array<i64: 1, 16, 32>}]} {
    %c0 = arith.constant 0 : index
    %c0_0 = arith.constant 0 : index
    %c0_1 = arith.constant 0 : index
    %0 = vector.load %arg2[%c0, %c0_0, %c0_1] : memref<1x16x32xbf16, #tpu.memory_space<vmem>>, vector<1x16x32xbf16>
    %1 = vector.shape_cast %0 : vector<1x16x32xbf16> to vector<16x32xbf16>
    %c0_2 = arith.constant 0 : index
    %c0_3 = arith.constant 0 : index
    %c0_4 = arith.constant 0 : index
    %2 = vector.load %arg3[%c0_2, %c0_3, %c0_4] : memref<1x16x32xbf16, #tpu.memory_space<vmem>>, vector<1x16x32xbf16>
    %3 = vector.shape_cast %2 : vector<1x16x32xbf16> to vector<16x32xbf16>
    %c0_5 = arith.constant 0 : index
    %c0_6 = arith.constant 0 : index
    %c0_7 = arith.constant 0 : index
    %4 = vector.load %arg4[%c0_5, %c0_6, %c0_7] : memref<1x16x64xbf16, #tpu.memory_space<vmem>>, vector<1x16x64xbf16>
    %5 = vector.shape_cast %4 : vector<1x16x64xbf16> to vector<16x64xbf16>
    %c0_8 = arith.constant 0 : index
    %c0_9 = arith.constant 0 : index
    %c0_10 = arith.constant 0 : index
    %6 = vector.load %arg5[%c0_8, %c0_9, %c0_10] : memref<1x1x16xf32, #tpu.memory_space<vmem>>, vector<1x1x16xf32>
    %7 = vector.shape_cast %6 : vector<1x1x16xf32> to vector<1x16xf32>
    %8 = vector.extract_strided_slice %3 {offsets = [0, 0], sizes = [16, 8], strides = [1, 1]} : vector<16x32xbf16> to vector<16x8xbf16>
    %9 = vector.extract_strided_slice %5 {offsets = [0, 0], sizes = [16, 8], strides = [1, 1]} : vector<16x64xbf16> to vector<16x8xbf16>
    %10 = vector.extract_strided_slice %5 {offsets = [0, 32], sizes = [16, 8], strides = [1, 1]} : vector<16x64xbf16> to vector<16x8xbf16>
    %cst = arith.constant dense<0.000000e+00> : vector<16x16xf32>
    %11 = tpu.matmul %8, %9, %cst {dimension_numbers = #tpu.dot_dimension_numbers<[1], [1], [0], [0], [0, 0, 1, 0], [], []>} : vector<16x8xbf16>, vector<16x8xbf16>, vector<16x16xf32> -> vector<16x16xf32>
    %cst_11 = arith.constant 0.353553385 : f32
    %12 = vector.broadcast %cst_11 : f32 to vector<16x16xf32>
    %13 = arith.mulf %11, %12 : vector<16x16xf32>
    %14 = vector.broadcast %7 : vector<1x16xf32> to vector<16x16xf32>
    %15 = arith.addf %13, %14 : vector<16x16xf32>
    %cst_12 = arith.constant dense<0xFF800000> : vector<16xf32>
    %16 = vector.multi_reduction <maximumf>, %15, %cst_12 [1] : vector<16x16xf32> to vector<16xf32>
    %17 = vector.shape_cast %16 : vector<16xf32> to vector<16x1xf32>
    %18 = vector.broadcast %17 : vector<16x1xf32> to vector<16x16xf32>
    %19 = arith.subf %15, %18 : vector<16x16xf32>
    %20 = math.exp %19 : vector<16x16xf32>
    %cst_13 = arith.constant dense<0.000000e+00> : vector<16xf32>
    %21 = vector.multi_reduction <add>, %20, %cst_13 [1] : vector<16x16xf32> to vector<16xf32>
    %22 = vector.shape_cast %21 : vector<16xf32> to vector<16x1xf32>
    %23 = vector.broadcast %22 : vector<16x1xf32> to vector<16x16xf32>
    %24 = arith.divf %20, %23 : vector<16x16xf32>
    %25 = arith.truncf %24 : vector<16x16xf32> to vector<16x16xbf16>
    %cst_14 = arith.constant dense<0.000000e+00> : vector<16x8xf32>
    %26 = tpu.matmul %25, %10, %cst_14 {dimension_numbers = #tpu.dot_dimension_numbers<[1], [0], [0], [1], [0, 0, 1, 1], [], []>} : vector<16x16xbf16>, vector<16x8xbf16>, vector<16x8xf32> -> vector<16x8xf32>
    %27 = arith.truncf %26 : vector<16x8xf32> to vector<16x8xbf16>
    %c0_15 = arith.constant 0 : index
    %c0_16 = arith.constant 0 : index
    %c0_17 = arith.constant 0 : index
    %28 = vector.load %arg6[%c0_15, %c0_16, %c0_17] : memref<4x8x32xbf16, #tpu.memory_space<vmem>>, vector<1x8x32xbf16>
    %29 = vector.shape_cast %28 : vector<1x8x32xbf16> to vector<8x32xbf16>
    %cst_18 = arith.constant dense<0.000000e+00> : vector<16x32xf32>
    %30 = tpu.matmul %27, %29, %cst_18 {dimension_numbers = #tpu.dot_dimension_numbers<[1], [0], [0], [1], [0, 0, 1, 1], [], []>} : vector<16x8xbf16>, vector<8x32xbf16>, vector<16x32xf32> -> vector<16x32xf32>
    %31 = vector.extract_strided_slice %3 {offsets = [0, 8], sizes = [16, 8], strides = [1, 1]} : vector<16x32xbf16> to vector<16x8xbf16>
    %32 = vector.extract_strided_slice %5 {offsets = [0, 8], sizes = [16, 8], strides = [1, 1]} : vector<16x64xbf16> to vector<16x8xbf16>
    %33 = vector.extract_strided_slice %5 {offsets = [0, 40], sizes = [16, 8], strides = [1, 1]} : vector<16x64xbf16> to vector<16x8xbf16>
    %cst_19 = arith.constant dense<0.000000e+00> : vector<16x16xf32>
    %34 = tpu.matmul %31, %32, %cst_19 {dimension_numbers = #tpu.dot_dimension_numbers<[1], [1], [0], [0], [0, 0, 1, 0], [], []>} : vector<16x8xbf16>, vector<16x8xbf16>, vector<16x16xf32> -> vector<16x16xf32>
    %cst_20 = arith.constant 0.353553385 : f32
    %35 = vector.broadcast %cst_20 : f32 to vector<16x16xf32>
    %36 = arith.mulf %34, %35 : vector<16x16xf32>
    %37 = vector.broadcast %7 : vector<1x16xf32> to vector<16x16xf32>
    %38 = arith.addf %36, %37 : vector<16x16xf32>
    %cst_21 = arith.constant dense<0xFF800000> : vector<16xf32>
    %39 = vector.multi_reduction <maximumf>, %38, %cst_21 [1] : vector<16x16xf32> to vector<16xf32>
    %40 = vector.shape_cast %39 : vector<16xf32> to vector<16x1xf32>
    %41 = vector.broadcast %40 : vector<16x1xf32> to vector<16x16xf32>
    %42 = arith.subf %38, %41 : vector<16x16xf32>
    %43 = math.exp %42 : vector<16x16xf32>
    %cst_22 = arith.constant dense<0.000000e+00> : vector<16xf32>
    %44 = vector.multi_reduction <add>, %43, %cst_22 [1] : vector<16x16xf32> to vector<16xf32>
    %45 = vector.shape_cast %44 : vector<16xf32> to vector<16x1xf32>
    %46 = vector.broadcast %45 : vector<16x1xf32> to vector<16x16xf32>
    %47 = arith.divf %43, %46 : vector<16x16xf32>
    %48 = arith.truncf %47 : vector<16x16xf32> to vector<16x16xbf16>
    %cst_23 = arith.constant dense<0.000000e+00> : vector<16x8xf32>
    %49 = tpu.matmul %48, %33, %cst_23 {dimension_numbers = #tpu.dot_dimension_numbers<[1], [0], [0], [1], [0, 0, 1, 1], [], []>} : vector<16x16xbf16>, vector<16x8xbf16>, vector<16x8xf32> -> vector<16x8xf32>
    %50 = arith.truncf %49 : vector<16x8xf32> to vector<16x8xbf16>
    %c1 = arith.constant 1 : index
    %c0_24 = arith.constant 0 : index
    %c0_25 = arith.constant 0 : index
    %51 = vector.load %arg6[%c1, %c0_24, %c0_25] : memref<4x8x32xbf16, #tpu.memory_space<vmem>>, vector<1x8x32xbf16>
    %52 = vector.shape_cast %51 : vector<1x8x32xbf16> to vector<8x32xbf16>
    %cst_26 = arith.constant dense<0.000000e+00> : vector<16x32xf32>
    %53 = tpu.matmul %50, %52, %cst_26 {dimension_numbers = #tpu.dot_dimension_numbers<[1], [0], [0], [1], [0, 0, 1, 1], [], []>} : vector<16x8xbf16>, vector<8x32xbf16>, vector<16x32xf32> -> vector<16x32xf32>
    %54 = arith.addf %30, %53 : vector<16x32xf32>
    %55 = vector.extract_strided_slice %3 {offsets = [0, 16], sizes = [16, 8], strides = [1, 1]} : vector<16x32xbf16> to vector<16x8xbf16>
    %56 = vector.extract_strided_slice %5 {offsets = [0, 16], sizes = [16, 8], strides = [1, 1]} : vector<16x64xbf16> to vector<16x8xbf16>
    %57 = vector.extract_strided_slice %5 {offsets = [0, 48], sizes = [16, 8], strides = [1, 1]} : vector<16x64xbf16> to vector<16x8xbf16>
    %cst_27 = arith.constant dense<0.000000e+00> : vector<16x16xf32>
    %58 = tpu.matmul %55, %56, %cst_27 {dimension_numbers = #tpu.dot_dimension_numbers<[1], [1], [0], [0], [0, 0, 1, 0], [], []>} : vector<16x8xbf16>, vector<16x8xbf16>, vector<16x16xf32> -> vector<16x16xf32>
    %cst_28 = arith.constant 0.353553385 : f32
    %59 = vector.broadcast %cst_28 : f32 to vector<16x16xf32>
    %60 = arith.mulf %58, %59 : vector<16x16xf32>
    %61 = vector.broadcast %7 : vector<1x16xf32> to vector<16x16xf32>
    %62 = arith.addf %60, %61 : vector<16x16xf32>
    %cst_29 = arith.constant dense<0xFF800000> : vector<16xf32>
    %63 = vector.multi_reduction <maximumf>, %62, %cst_29 [1] : vector<16x16xf32> to vector<16xf32>
    %64 = vector.shape_cast %63 : vector<16xf32> to vector<16x1xf32>
    %65 = vector.broadcast %64 : vector<16x1xf32> to vector<16x16xf32>
    %66 = arith.subf %62, %65 : vector<16x16xf32>
    %67 = math.exp %66 : vector<16x16xf32>
    %cst_30 = arith.constant dense<0.000000e+00> : vector<16xf32>
    %68 = vector.multi_reduction <add>, %67, %cst_30 [1] : vector<16x16xf32> to vector<16xf32>
    %69 = vector.shape_cast %68 : vector<16xf32> to vector<16x1xf32>
    %70 = vector.broadcast %69 : vector<16x1xf32> to vector<16x16xf32>
    %71 = arith.divf %67, %70 : vector<16x16xf32>
    %72 = arith.truncf %71 : vector<16x16xf32> to vector<16x16xbf16>
    %cst_31 = arith.constant dense<0.000000e+00> : vector<16x8xf32>
    %73 = tpu.matmul %72, %57, %cst_31 {dimension_numbers = #tpu.dot_dimension_numbers<[1], [0], [0], [1], [0, 0, 1, 1], [], []>} : vector<16x16xbf16>, vector<16x8xbf16>, vector<16x8xf32> -> vector<16x8xf32>
    %74 = arith.truncf %73 : vector<16x8xf32> to vector<16x8xbf16>
    %c2 = arith.constant 2 : index
    %c0_32 = arith.constant 0 : index
    %c0_33 = arith.constant 0 : index
    %75 = vector.load %arg6[%c2, %c0_32, %c0_33] : memref<4x8x32xbf16, #tpu.memory_space<vmem>>, vector<1x8x32xbf16>
    %76 = vector.shape_cast %75 : vector<1x8x32xbf16> to vector<8x32xbf16>
    %cst_34 = arith.constant dense<0.000000e+00> : vector<16x32xf32>
    %77 = tpu.matmul %74, %76, %cst_34 {dimension_numbers = #tpu.dot_dimension_numbers<[1], [0], [0], [1], [0, 0, 1, 1], [], []>} : vector<16x8xbf16>, vector<8x32xbf16>, vector<16x32xf32> -> vector<16x32xf32>
    %78 = arith.addf %54, %77 : vector<16x32xf32>
    %79 = vector.extract_strided_slice %3 {offsets = [0, 24], sizes = [16, 8], strides = [1, 1]} : vector<16x32xbf16> to vector<16x8xbf16>
    %80 = vector.extract_strided_slice %5 {offsets = [0, 24], sizes = [16, 8], strides = [1, 1]} : vector<16x64xbf16> to vector<16x8xbf16>
    %81 = vector.extract_strided_slice %5 {offsets = [0, 56], sizes = [16, 8], strides = [1, 1]} : vector<16x64xbf16> to vector<16x8xbf16>
    %cst_35 = arith.constant dense<0.000000e+00> : vector<16x16xf32>
    %82 = tpu.matmul %79, %80, %cst_35 {dimension_numbers = #tpu.dot_dimension_numbers<[1], [1], [0], [0], [0, 0, 1, 0], [], []>} : vector<16x8xbf16>, vector<16x8xbf16>, vector<16x16xf32> -> vector<16x16xf32>
    %cst_36 = arith.constant 0.353553385 : f32
    %83 = vector.broadcast %cst_36 : f32 to vector<16x16xf32>
    %84 = arith.mulf %82, %83 : vector<16x16xf32>
    %85 = vector.broadcast %7 : vector<1x16xf32> to vector<16x16xf32>
    %86 = arith.addf %84, %85 : vector<16x16xf32>
    %cst_37 = arith.constant dense<0xFF800000> : vector<16xf32>
    %87 = vector.multi_reduction <maximumf>, %86, %cst_37 [1] : vector<16x16xf32> to vector<16xf32>
    %88 = vector.shape_cast %87 : vector<16xf32> to vector<16x1xf32>
    %89 = vector.broadcast %88 : vector<16x1xf32> to vector<16x16xf32>
    %90 = arith.subf %86, %89 : vector<16x16xf32>
    %91 = math.exp %90 : vector<16x16xf32>
    %cst_38 = arith.constant dense<0.000000e+00> : vector<16xf32>
    %92 = vector.multi_reduction <add>, %91, %cst_38 [1] : vector<16x16xf32> to vector<16xf32>
    %93 = vector.shape_cast %92 : vector<16xf32> to vector<16x1xf32>
    %94 = vector.broadcast %93 : vector<16x1xf32> to vector<16x16xf32>
    %95 = arith.divf %91, %94 : vector<16x16xf32>
    %96 = arith.truncf %95 : vector<16x16xf32> to vector<16x16xbf16>
    %cst_39 = arith.constant dense<0.000000e+00> : vector<16x8xf32>
    %97 = tpu.matmul %96, %81, %cst_39 {dimension_numbers = #tpu.dot_dimension_numbers<[1], [0], [0], [1], [0, 0, 1, 1], [], []>} : vector<16x16xbf16>, vector<16x8xbf16>, vector<16x8xf32> -> vector<16x8xf32>
    %98 = arith.truncf %97 : vector<16x8xf32> to vector<16x8xbf16>
    %c3 = arith.constant 3 : index
    %c0_40 = arith.constant 0 : index
    %c0_41 = arith.constant 0 : index
    %99 = vector.load %arg6[%c3, %c0_40, %c0_41] : memref<4x8x32xbf16, #tpu.memory_space<vmem>>, vector<1x8x32xbf16>
    %100 = vector.shape_cast %99 : vector<1x8x32xbf16> to vector<8x32xbf16>
    %cst_42 = arith.constant dense<0.000000e+00> : vector<16x32xf32>
    %101 = tpu.matmul %98, %100, %cst_42 {dimension_numbers = #tpu.dot_dimension_numbers<[1], [0], [0], [1], [0, 0, 1, 1], [], []>} : vector<16x8xbf16>, vector<8x32xbf16>, vector<16x32xf32> -> vector<16x32xf32>
    %102 = arith.addf %78, %101 : vector<16x32xf32>
    %c0_43 = arith.constant 0 : index
    %c0_44 = arith.constant 0 : index
    %103 = vector.load %arg7[%c0_43, %c0_44] : memref<1x32xf32, #tpu.memory_space<vmem>>, vector<1x32xf32>
    %104 = vector.broadcast %103 : vector<1x32xf32> to vector<16x32xf32>
    %105 = arith.addf %102, %104 : vector<16x32xf32>
    %106 = arith.extf %1 : vector<16x32xbf16> to vector<16x32xf32>
    %107 = arith.addf %106, %105 : vector<16x32xf32>
    %c0_45 = arith.constant 0 : index
    %c0_46 = arith.constant 0 : index
    %108 = vector.load %arg8[%c0_45, %c0_46] : memref<1x32xf32, #tpu.memory_space<vmem>>, vector<1x32xf32>
    %c0_47 = arith.constant 0 : index
    %c0_48 = arith.constant 0 : index
    %109 = vector.load %arg9[%c0_47, %c0_48] : memref<1x32xf32, #tpu.memory_space<vmem>>, vector<1x32xf32>
    %cst_49 = arith.constant dense<0.000000e+00> : vector<16xf32>
    %110 = vector.multi_reduction <add>, %107, %cst_49 [1] : vector<16x32xf32> to vector<16xf32>
    %111 = vector.shape_cast %110 : vector<16xf32> to vector<16x1xf32>
    %cst_50 = arith.constant 3.200000e+01 : f32
    %112 = vector.broadcast %cst_50 : f32 to vector<16x1xf32>
    %113 = arith.divf %111, %112 : vector<16x1xf32>
    %114 = vector.broadcast %113 : vector<16x1xf32> to vector<16x32xf32>
    %115 = arith.subf %107, %114 : vector<16x32xf32>
    %116 = arith.mulf %115, %115 : vector<16x32xf32>
    %cst_51 = arith.constant dense<0.000000e+00> : vector<16xf32>
    %117 = vector.multi_reduction <add>, %116, %cst_51 [1] : vector<16x32xf32> to vector<16xf32>
    %118 = vector.shape_cast %117 : vector<16xf32> to vector<16x1xf32>
    %cst_52 = arith.constant 3.200000e+01 : f32
    %119 = vector.broadcast %cst_52 : f32 to vector<16x1xf32>
    %120 = arith.divf %118, %119 : vector<16x1xf32>
    %121 = vector.broadcast %113 : vector<16x1xf32> to vector<16x32xf32>
    %122 = arith.subf %107, %121 : vector<16x32xf32>
    %cst_53 = arith.constant 9.99999996E-13 : f32
    %123 = vector.broadcast %cst_53 : f32 to vector<16x1xf32>
    %124 = arith.addf %120, %123 : vector<16x1xf32>
    %125 = math.rsqrt %124 : vector<16x1xf32>
    %126 = vector.broadcast %125 : vector<16x1xf32> to vector<16x32xf32>
    %127 = arith.mulf %122, %126 : vector<16x32xf32>
    %128 = vector.broadcast %108 : vector<1x32xf32> to vector<16x32xf32>
    %129 = arith.mulf %127, %128 : vector<16x32xf32>
    %130 = vector.broadcast %109 : vector<1x32xf32> to vector<16x32xf32>
    %131 = arith.addf %129, %130 : vector<16x32xf32>
    %132 = arith.truncf %131 : vector<16x32xf32> to vector<16x32xbf16>
    %c0_54 = arith.constant 0 : index
    %c0_55 = arith.constant 0 : index
    %133 = vector.load %arg10[%c0_54, %c0_55] : memref<32x64xbf16, #tpu.memory_space<vmem>>, vector<32x64xbf16>
    %cst_56 = arith.constant dense<0.000000e+00> : vector<16x64xf32>
    %134 = tpu.matmul %132, %133, %cst_56 {dimension_numbers = #tpu.dot_dimension_numbers<[1], [0], [0], [1], [0, 0, 1, 1], [], []>} : vector<16x32xbf16>, vector<32x64xbf16>, vector<16x64xf32> -> vector<16x64xf32>
    %c0_57 = arith.constant 0 : index
    %c0_58 = arith.constant 0 : index
    %135 = vector.load %arg11[%c0_57, %c0_58] : memref<1x64xf32, #tpu.memory_space<vmem>>, vector<1x64xf32>
    %136 = vector.broadcast %135 : vector<1x64xf32> to vector<16x64xf32>
    %137 = arith.addf %134, %136 : vector<16x64xf32>
    %138 = arith.mulf %137, %137 : vector<16x64xf32>
    %139 = arith.mulf %137, %138 : vector<16x64xf32>
    %cst_59 = arith.constant 4.471500e-02 : f32
    %140 = vector.broadcast %cst_59 : f32 to vector<16x64xf32>
    %141 = arith.mulf %140, %139 : vector<16x64xf32>
    %142 = arith.addf %137, %141 : vector<16x64xf32>
    %cst_60 = arith.constant 0.797884583 : f32
    %143 = vector.broadcast %cst_60 : f32 to vector<16x64xf32>
    %144 = arith.mulf %143, %142 : vector<16x64xf32>
    %145 = math.tanh %144 : vector<16x64xf32>
    %cst_61 = arith.constant 1.000000e+00 : f32
    %146 = vector.broadcast %cst_61 : f32 to vector<16x64xf32>
    %147 = arith.addf %146, %145 : vector<16x64xf32>
    %cst_62 = arith.constant 5.000000e-01 : f32
    %148 = vector.broadcast %cst_62 : f32 to vector<16x64xf32>
    %149 = arith.mulf %148, %147 : vector<16x64xf32>
    %150 = arith.mulf %137, %149 : vector<16x64xf32>
    %151 = arith.truncf %150 : vector<16x64xf32> to vector<16x64xbf16>
    %c0_63 = arith.constant 0 : index
    %c0_64 = arith.constant 0 : index
    %152 = vector.load %arg12[%c0_63, %c0_64] : memref<64x32xbf16, #tpu.memory_space<vmem>>, vector<64x32xbf16>
    %cst_65 = arith.constant dense<0.000000e+00> : vector<16x32xf32>
    %153 = tpu.matmul %151, %152, %cst_65 {dimension_numbers = #tpu.dot_dimension_numbers<[1], [0], [0], [1], [0, 0, 1, 1], [], []>} : vector<16x64xbf16>, vector<64x32xbf16>, vector<16x32xf32> -> vector<16x32xf32>
    %c0_66 = arith.constant 0 : index
    %c0_67 = arith.constant 0 : index
    %154 = vector.load %arg13[%c0_66, %c0_67] : memref<1x32xf32, #tpu.memory_space<vmem>>, vector<1x32xf32>
    %155 = vector.broadcast %154 : vector<1x32xf32> to vector<16x32xf32>
    %156 = arith.addf %153, %155 : vector<16x32xf32>
    %157 = arith.addf %131, %156 : vector<16x32xf32>
    %c0_68 = arith.constant 0 : index
    %c0_69 = arith.constant 0 : index
    %158 = vector.load %arg14[%c0_68, %c0_69] : memref<1x32xf32, #tpu.memory_space<vmem>>, vector<1x32xf32>
    %c0_70 = arith.constant 0 : index
    %c0_71 = arith.constant 0 : index
    %159 = vector.load %arg15[%c0_70, %c0_71] : memref<1x32xf32, #tpu.memory_space<vmem>>, vector<1x32xf32>
    %cst_72 = arith.constant dense<0.000000e+00> : vector<16xf32>
    %160 = vector.multi_reduction <add>, %157, %cst_72 [1] : vector<16x32xf32> to vector<16xf32>
    %161 = vector.shape_cast %160 : vector<16xf32> to vector<16x1xf32>
    %cst_73 = arith.constant 3.200000e+01 : f32
    %162 = vector.broadcast %cst_73 : f32 to vector<16x1xf32>
    %163 = arith.divf %161, %162 : vector<16x1xf32>
    %164 = vector.broadcast %163 : vector<16x1xf32> to vector<16x32xf32>
    %165 = arith.subf %157, %164 : vector<16x32xf32>
    %166 = arith.mulf %165, %165 : vector<16x32xf32>
    %cst_74 = arith.constant dense<0.000000e+00> : vector<16xf32>
    %167 = vector.multi_reduction <add>, %166, %cst_74 [1] : vector<16x32xf32> to vector<16xf32>
    %168 = vector.shape_cast %167 : vector<16xf32> to vector<16x1xf32>
    %cst_75 = arith.constant 3.200000e+01 : f32
    %169 = vector.broadcast %cst_75 : f32 to vector<16x1xf32>
    %170 = arith.divf %168, %169 : vector<16x1xf32>
    %171 = vector.broadcast %163 : vector<16x1xf32> to vector<16x32xf32>
    %172 = arith.subf %157, %171 : vector<16x32xf32>
    %cst_76 = arith.constant 9.99999996E-13 : f32
    %173 = vector.broadcast %cst_76 : f32 to vector<16x1xf32>
    %174 = arith.addf %170, %173 : vector<16x1xf32>
    %175 = math.rsqrt %174 : vector<16x1xf32>
    %176 = vector.broadcast %175 : vector<16x1xf32> to vector<16x32xf32>
    %177 = arith.mulf %172, %176 : vector<16x32xf32>
    %178 = vector.broadcast %158 : vector<1x32xf32> to vector<16x32xf32>
    %179 = arith.mulf %177, %178 : vector<16x32xf32>
    %180 = vector.broadcast %159 : vector<1x32xf32> to vector<16x32xf32>
    %181 = arith.addf %179, %180 : vector<16x32xf32>
    %182 = arith.truncf %181 : vector<16x32xf32> to vector<16x32xbf16>
    %c0_77 = arith.constant 0 : index
    %c0_78 = arith.constant 0 : index
    %c0_79 = arith.constant 0 : index
    %183 = vector.load %arg16[%c0_77, %c0_78, %c0_79] : memref<1x16x32xbf16, #tpu.memory_space<vmem>>, vector<1x16x32xbf16>
    %184 = vector.shape_cast %183 : vector<1x16x32xbf16> to vector<16x32xbf16>
    %185 = vector.shape_cast %182 : vector<16x32xbf16> to vector<1x16x32xbf16>
    tpu.vector_store %arg16[%c0_77, %c0_78, %c0_79], %185 {strides = array<i32>} : memref<1x16x32xbf16, #tpu.memory_space<vmem>>, vector<1x16x32xbf16>,
    return
  }
  func.func @transform_0(%arg0: i32, %arg1: i32) -> (i32, i32, i32) {
    %c0_i32 = arith.constant 0 : i32
    %c0_i32_0 = arith.constant 0 : i32
    return %arg0, %arg1, %c0_i32 : i32, i32, i32
  }
  func.func @transform_1(%arg0: i32, %arg1: i32) -> (i32, i32, i32) {
    %c0_i32 = arith.constant 0 : i32
    %c0_i32_0 = arith.constant 0 : i32
    return %arg0, %arg1, %c0_i32 : i32, i32, i32
  }
  func.func @transform_2(%arg0: i32, %arg1: i32) -> (i32, i32, i32) {
    %c0_i32 = arith.constant 0 : i32
    %c0_i32_0 = arith.constant 0 : i32
    %c0_i32_1 = arith.constant 0 : i32
    return %arg0, %c0_i32, %c0_i32_0 : i32, i32, i32
  }
  func.func @transform_3(%arg0: i32, %arg1: i32) -> (i32, i32, i32) {
    %c0_i32 = arith.constant 0 : i32
    %c0_i32_0 = arith.constant 0 : i32
    %c0_i32_1 = arith.constant 0 : i32
    return %arg0, %c0_i32, %c0_i32_0 : i32, i32, i32
  }
  func.func @transform_4(%arg0: i32, %arg1: i32) -> (i32, i32, i32) {
    %c0_i32 = arith.constant 0 : i32
    %c0_i32_0 = arith.constant 0 : i32
    %c0_i32_1 = arith.constant 0 : i32
    %c0_i32_2 = arith.constant 0 : i32
    return %c0_i32, %c0_i32_0, %c0_i32_1 : i32, i32, i32
  }
  func.func @transform_5(%arg0: i32, %arg1: i32) -> (i32, i32) {
    %c0_i32 = arith.constant 0 : i32
    %c0_i32_0 = arith.constant 0 : i32
    %c0_i32_1 = arith.constant 0 : i32
    return %c0_i32, %c0_i32_0 : i32, i32
  }
  func.func @transform_6(%arg0: i32, %arg1: i32) -> (i32, i32) {
    %c0_i32 = arith.constant 0 : i32
    %c0_i32_0 = arith.constant 0 : i32
    %c0_i32_1 = arith.constant 0 : i32
    return %c0_i32, %c0_i32_0 : i32, i32
  }
  func.func @transform_7(%arg0: i32, %arg1: i32) -> (i32, i32) {
    %c0_i32 = arith.constant 0 : i32
    %c0_i32_0 = arith.constant 0 : i32
    %c0_i32_1 = arith.constant 0 : i32
    return %c0_i32, %c0_i32_0 : i32, i32
  }
  func.func @transform_8(%arg0: i32, %arg1: i32) -> (i32, i32) {
    %c0_i32 = arith.constant 0 : i32
    %c0_i32_0 = arith.constant 0 : i32
    %c0_i32_1 = arith.constant 0 : i32
    return %c0_i32, %c0_i32_0 : i32, i32
  }
  func.func @transform_9(%arg0: i32, %arg1: i32) -> (i32, i32) {
    %c0_i32 = arith.constant 0 : i32
    %c0_i32_0 = arith.constant 0 : i32
    %c0_i32_1 = arith.constant 0 : i32
    return %c0_i32, %c0_i32_0 : i32, i32
  }
  func.func @transform_10(%arg0: i32, %arg1: i32) -> (i32, i32) {
    %c0_i32 = arith.constant 0 : i32
    %c0_i32_0 = arith.constant 0 : i32
    %c0_i32_1 = arith.constant 0 : i32
    return %c0_i32, %c0_i32_0 : i32, i32
  }
  func.func @transform_11(%arg0: i32, %arg1: i32) -> (i32, i32) {
    %c0_i32 = arith.constant 0 : i32
    %c0_i32_0 = arith.constant 0 : i32
    %c0_i32_1 = arith.constant 0 : i32
    return %c0_i32, %c0_i32_0 : i32, i32
  }
  func.func @transform_12(%arg0: i32, %arg1: i32) -> (i32, i32) {
    %c0_i32 = arith.constant 0 : i32
    %c0_i32_0 = arith.constant 0 : i32
    %c0_i32_1 = arith.constant 0 : i32
    return %c0_i32, %c0_i32_0 : i32, i32
  }
  func.func @transform_13(%arg0: i32, %arg1: i32) -> (i32, i32) {
    %c0_i32 = arith.constant 0 : i32
    %c0_i32_0 = arith.constant 0 : i32
    %c0_i32_1 = arith.constant 0 : i32
    return %c0_i32, %c0_i32_0 : i32, i32
  }
  func.func @transform_14(%arg0: i32, %arg1: i32) -> (i32, i32, i32) {
    %c0_i32 = arith.constant 0 : i32
    %c0_i32_0 = arith.constant 0 : i32
    return %arg0, %arg1, %c0_i32 : i32, i32, i32
  }
}

module attributes {stable_mosaic.version = 11 : i64} {
  func.func @head_kernel(%arg0: i32, %arg1: memref<6x32xbf16, #tpu.memory_space<vmem>>, %arg2: memref<32x128xbf16, #tpu.memory_space<vmem>>, %arg3: memref<1x128xf32, #tpu.memory_space<vmem>>, %arg4: memref<6x128xf32, #tpu.memory_space<vmem>>, %arg5: memref<6x128xf32, #tpu.memory_space<vmem>>) attributes {dimension_semantics = [#tpu.dimension_semantics<arbitrary>], iteration_bounds = array<i64: 1>, scalar_prefetch = 0 : i64, scratch_operands = 0 : i64, tpu.core_type = #tpu.core_type<tc>, window_params = [{pipeline_mode = #tpu.pipeline_mode<synchronous>, transform_indices = @transform_0, window_bounds = array<i64: 6, 32>}, {pipeline_mode = #tpu.pipeline_mode<synchronous>, transform_indices = @transform_1, window_bounds = array<i64: 32, 128>}, {pipeline_mode = #tpu.pipeline_mode<synchronous>, transform_indices = @transform_2, window_bounds = array<i64: 1, 128>}, {pipeline_mode = #tpu.pipeline_mode<synchronous>, transform_indices = @transform_3, window_bounds = array<i64: 6, 128>}, {pipeline_mode = #tpu.pipeline_mode<synchronous>, transform_indices = @transform_4, window_bounds = array<i64: 6, 128>}]} {
    %c0 = arith.constant 0 : index
    %c0_0 = arith.constant 0 : index
    %0 = vector.load %arg1[%c0, %c0_0] : memref<6x32xbf16, #tpu.memory_space<vmem>>, vector<6x32xbf16>
    %c0_1 = arith.constant 0 : index
    %c0_2 = arith.constant 0 : index
    %1 = vector.load %arg2[%c0_1, %c0_2] : memref<32x128xbf16, #tpu.memory_space<vmem>>, vector<32x128xbf16>
    %cst = arith.constant dense<0.000000e+00> : vector<6x128xf32>
    %2 = tpu.matmul %0, %1, %cst {dimension_numbers = #tpu.dot_dimension_numbers<[1], [0], [0], [1], [0, 0, 1, 1], [], []>} : vector<6x32xbf16>, vector<32x128xbf16>, vector<6x128xf32> -> vector<6x128xf32>
    %c0_3 = arith.constant 0 : index
    %c0_4 = arith.constant 0 : index
    %3 = vector.load %arg3[%c0_3, %c0_4] : memref<1x128xf32, #tpu.memory_space<vmem>>, vector<1x128xf32>
    %4 = vector.broadcast %3 : vector<1x128xf32> to vector<6x128xf32>
    %5 = arith.addf %2, %4 : vector<6x128xf32>
    %6 = tpu.iota {dimensions = array<i32: 1>} : vector<6x128xi32>
    %c4_i32 = arith.constant 4 : i32
    %7 = vector.broadcast %c4_i32 : i32 to vector<6x128xi32>
    %8 = arith.cmpi slt, %6, %7 : vector<6x128xi32>
    %cst_5 = arith.constant -1.000000e+30 : f32
    %9 = vector.broadcast %cst_5 : f32 to vector<6x128xf32>
    %10 = arith.select %8, %5, %9 : vector<6x128xi1>, vector<6x128xf32>
    %cst_6 = arith.constant dense<0xFF800000> : vector<6xf32>
    %11 = vector.multi_reduction <maximumf>, %10, %cst_6 [1] : vector<6x128xf32> to vector<6xf32>
    %12 = vector.shape_cast %11 : vector<6xf32> to vector<6x1xf32>
    %13 = vector.broadcast %12 : vector<6x1xf32> to vector<6x128xf32>
    %14 = arith.subf %10, %13 : vector<6x128xf32>
    %15 = math.exp %14 : vector<6x128xf32>
    %cst_7 = arith.constant dense<0.000000e+00> : vector<6xf32>
    %16 = vector.multi_reduction <add>, %15, %cst_7 [1] : vector<6x128xf32> to vector<6xf32>
    %17 = vector.shape_cast %16 : vector<6xf32> to vector<6x1xf32>
    %18 = vector.broadcast %17 : vector<6x1xf32> to vector<6x128xf32>
    %19 = arith.divf %15, %18 : vector<6x128xf32>
    %c0_8 = arith.constant 0 : index
    %c0_9 = arith.constant 0 : index
    %20 = vector.load %arg4[%c0_8, %c0_9] : memref<6x128xf32, #tpu.memory_space<vmem>>, vector<6x128xf32>
    tpu.vector_store %arg4[%c0_8, %c0_9], %19 {strides = array<i32>} : memref<6x128xf32, #tpu.memory_space<vmem>>, vector<6x128xf32>,
    %cst_10 = arith.constant -1.000000e+30 : f32
    %21 = vector.broadcast %cst_10 : f32 to vector<6x128xf32>
    %22 = arith.select %8, %19, %21 : vector<6x128xi1>, vector<6x128xf32>
    %cst_11 = arith.constant dense<0xFF800000> : vector<6xf32>
    %23 = vector.multi_reduction <maximumf>, %22, %cst_11 [1] : vector<6x128xf32> to vector<6xf32>
    %24 = vector.shape_cast %23 : vector<6xf32> to vector<6x1xf32>
    %25 = vector.broadcast %24 : vector<6x1xf32> to vector<6x128xf32>
    %26 = arith.subf %22, %25 : vector<6x128xf32>
    %27 = math.exp %26 : vector<6x128xf32>
    %28 = vector.broadcast %24 : vector<6x1xf32> to vector<6x128xf32>
    %29 = arith.subf %22, %28 : vector<6x128xf32>
    %cst_12 = arith.constant dense<0.000000e+00> : vector<6xf32>
    %30 = vector.multi_reduction <add>, %27, %cst_12 [1] : vector<6x128xf32> to vector<6xf32>
    %31 = vector.shape_cast %30 : vector<6xf32> to vector<6x1xf32>
    %32 = math.log %31 : vector<6x1xf32>
    %33 = vector.broadcast %32 : vector<6x1xf32> to vector<6x128xf32>
    %34 = arith.subf %29, %33 : vector<6x128xf32>
    %c0_13 = arith.constant 0 : index
    %c0_14 = arith.constant 0 : index
    %35 = vector.load %arg5[%c0_13, %c0_14] : memref<6x128xf32, #tpu.memory_space<vmem>>, vector<6x128xf32>
    tpu.vector_store %arg5[%c0_13, %c0_14], %34 {strides = array<i32>} : memref<6x128xf32, #tpu.memory_space<vmem>>, vector<6x128xf32>,
    return
  }
  func.func @transform_0(%arg0: i32) -> (i32, i32) {
    %c0_i32 = arith.constant 0 : i32
    %c0_i32_0 = arith.constant 0 : i32
    %c0_i32_1 = arith.constant 0 : i32
    return %c0_i32, %c0_i32_0 : i32, i32
  }
  func.func @transform_1(%arg0: i32) -> (i32, i32) {
    %c0_i32 = arith.constant 0 : i32
    %c0_i32_0 = arith.constant 0 : i32
    %c0_i32_1 = arith.constant 0 : i32
    return %c0_i32, %c0_i32_0 : i32, i32
  }
  func.func @transform_2(%arg0: i32) -> (i32, i32) {
    %c0_i32 = arith.constant 0 : i32
    %c0_i32_0 = arith.constant 0 : i32
    %c0_i32_1 = arith.constant 0 : i32
    return %c0_i32, %c0_i32_0 : i32, i32
  }
  func.func @transform_3(%arg0: i32) -> (i32, i32) {
    %c0_i32 = arith.constant 0 : i32
    %c0_i32_0 = arith.constant 0 : i32
    %c0_i32_1 = arith.constant 0 : i32
    return %c0_i32, %c0_i32_0 : i32, i32
  }
  func.func @transform_4(%arg0: i32) -> (i32, i32) {
    %c0_i32 = arith.constant 0 : i32
    %c0_i32_0 = arith.constant 0 : i32
    %c0_i32_1 = arith.constant 0 : i32
    return %c0_i32, %c0_i32_0 : i32, i32
  }
}

</mosaic_0001>

<llo_original>
// kernel: nbest_align_bert_forward.7
$region0: #{nbest_align_bert_forward.7}
  #allocation0 [shape = 'u32[]', space=smem, size = 0x4, offset = 0x4, fixed_abs, tag = 'smem constant byte address 0x4 - core index']
  #allocation1 [shape = 'u32[144,128]{1,0:T(1,128)}', space=vmem, size = 0x12000, scoped, tag = 'internal scratch']
  %s0 = inlined_call_operand.vmem [shape: bf16[2,16,32], index: 0, kind: input, shape index: {}]
  %s1 = inlined_call_operand.vmem [shape: bf16[32,96], index: 1, kind: input, shape index: {}]
  %s2 = inlined_call_operand.vmem [shape: f32[1,96], index: 2, kind: input, shape index: {}]
  %s3 = inlined_call_operand.vmem [shape: bf16[2,16,32], index: 3, kind: output, shape index: {0}]
  %s4 = inlined_call_operand.vmem [shape: bf16[2,16,64], index: 4, kind: output, shape index: {1}]
  %5 = xla_tuple %s3, %s4
  %s6 = sld [smem:[#allocation0]]
  $region53: #{nbest_align_bert_forward.7} parent=0
    _
  %s8 = ssub.s32 1, %s6
  %s9 = scalar_select 0, %s8, %s6
  loop: start=0, step=1, limit=4
  $region2: #{nbest_align_bert_forward.7} parent=0 // loop_pre_header
    _
  $region3: #{nbest_align_bert_forward.7} parent=0 // loop_header
    %s11 = sphi 0, %s15
    %p12 = scmp.ge.s32.totalorder %s11, 4
    %s18 = sphi 0, %s30
    %s19 = sphi 0, %s26
    %s20 = sphi 0, %s18
    %s21 = sphi 0, %s19
    %s22 = sphi 0, %s20
    %s23 = sphi 0, %s21
    %s35 = sphi 0, %s37
    %s38 = sphi 0, %s35
    %s39 = sphi 0, %s38
    %s55 = sphi 0, %s39
    %s59 = sphi 0, %s59
    %s61 = sphi 0, %s59
    %s62 = sphi 0, %s61
    %s76 = sphi 0, %s62
    %s80 = sphi 0, %s80
    %s82 = sphi 0, %s80
    %s83 = sphi 0, %s82
    %s97 = sphi 0, %s83
    %s105 = sphi 0, %s107
    %s108 = sphi 0, %s105
    %s109 = sphi 0, %s108
    %s125 = sphi 0, %s109
    %s133 = sphi 0, %s135
    %s136 = sphi 0, %s133
    %s137 = sphi 0, %s136
    %s153 = sphi 0, %s137
  $region4: #{nbest_align_bert_forward.7} parent=0 // loop_header_branch
    %14 = sbr.rel (%p12) target = $region8
  $region5: #{nbest_align_bert_forward.7} parent=0 // loop_body
    %s16 = ssub.s32 %s11, 1
    %s17 = ssub.s32 %s11, 2
    %s24 = sadd.s32 1, %s19
    %p25 = scmp.ge.s32.totalorder %s24, 1
    %s26 = scalar_select %p25, 0, %s24
    %s27 = sadd.s32 1, %s18
    %s28 = scalar_select %p25, %s27, %s18
    %p29 = scmp.ge.s32.totalorder %s28, 2
    %s30 = scalar_select %p29, 0, %s28
    %s31 = ssub.s32 %s18, %s30
    %s32 = ssub.s32 %s19, %s26
    %s33 = sor.u32 %s31, %s32
    %p34 = scmp.eq.s32.totalorder %s33, 0
    %s36 = sadd.s32 %s35, 1
    %s37 = scalar_select %p34, %s35, %s36
    %p40 = pneg %p34
    %p41 = scmp.eq.s32.totalorder %s11, 1
    %p42 = por %p40, %p41
    %p43 = scmp.ne.s32.totalorder %s35, %s38
    %p44 = scmp.eq.s32.totalorder %s11, 0
    %p45 = por %p43, %p44
    %p46 = scmp.ne.s32.totalorder %s35, %s38
    %p47 = scmp.eq.s32.totalorder %s16, 1
    %p48 = por %p46, %p47
    %p49 = scmp.ne.s32.totalorder %s38, %s39
    %p50 = scmp.eq.s32.totalorder %s16, 0
    %p51 = por %p49, %p50
    %p52 = scmp.ne.s32.totalorder %s38, %s39
    %p53 = scmp.eq.s32.totalorder %s17, 1
    %p54 = por %p52, %p53
    %p56 = scmp.ne.s32.totalorder %s39, %s55
    %p57 = scmp.eq.s32.totalorder %s17, 0
    %p58 = por %p56, %p57
    %s60 = sadd.s32 %s59, 1
    %p63 = scmp.eq.s32.totalorder %s11, 1
    %p64 = scmp.ne.s32.totalorder %s59, %s61
    %p65 = scmp.eq.s32.totalorder %s11, 0
    %p66 = por %p64, %p65
    %p67 = scmp.ne.s32.totalorder %s59, %s61
    %p68 = scmp.eq.s32.totalorder %s16, 1
    %p69 = por %p67, %p68
    %p70 = scmp.ne.s32.totalorder %s61, %s62
    %p71 = scmp.eq.s32.totalorder %s16, 0
    %p72 = por %p70, %p71
    %p73 = scmp.ne.s32.totalorder %s61, %s62
    %p74 = scmp.eq.s32.totalorder %s17, 1
    %p75 = por %p73, %p74
    %p77 = scmp.ne.s32.totalorder %s62, %s76
    %p78 = scmp.eq.s32.totalorder %s17, 0
    %p79 = por %p77, %p78
    %s81 = sadd.s32 %s80, 1
    %p84 = scmp.eq.s32.totalorder %s11, 1
    %p85 = scmp.ne.s32.totalorder %s80, %s82
    %p86 = scmp.eq.s32.totalorder %s11, 0
    %p87 = por %p85, %p86
    %p88 = scmp.ne.s32.totalorder %s80, %s82
    %p89 = scmp.eq.s32.totalorder %s16, 1
    %p90 = por %p88, %p89
    %p91 = scmp.ne.s32.totalorder %s82, %s83
    %p92 = scmp.eq.s32.totalorder %s16, 0
    %p93 = por %p91, %p92
    %p94 = scmp.ne.s32.totalorder %s82, %s83
    %p95 = scmp.eq.s32.totalorder %s17, 1
    %p96 = por %p94, %p95
    %p98 = scmp.ne.s32.totalorder %s83, %s97
    %p99 = scmp.eq.s32.totalorder %s17, 0
    %p100 = por %p98, %p99
    %s101 = ssub.s32 %s18, %s30
    %s102 = ssub.s32 %s19, %s26
    %s103 = sor.u32 %s101, %s102
    %p104 = scmp.eq.s32.totalorder %s103, 0
    %s106 = sadd.s32 %s105, 1
    %s107 = scalar_select %p104, %s105, %s106
    %p110 = pneg %p104
    %p111 = scmp.eq.s32.totalorder %s11, 1
    %p112 = por %p110, %p111
    %p113 = scmp.ne.s32.totalorder %s105, %s108
    %p114 = scmp.eq.s32.totalorder %s11, 0
    %p115 = por %p113, %p114
    %p116 = scmp.ne.s32.totalorder %s105, %s108
    %p117 = scmp.eq.s32.totalorder %s16, 1
    %p118 = por %p116, %p117
    %p119 = scmp.ne.s32.totalorder %s108, %s109
    %p120 = scmp.eq.s32.totalorder %s16, 0
    %p121 = por %p119, %p120
    %p122 = scmp.ne.s32.totalorder %s108, %s109
    %p123 = scmp.eq.s32.totalorder %s17, 1
    %p124 = por %p122, %p123
    %p126 = scmp.ne.s32.totalorder %s109, %s125
    %p127 = scmp.eq.s32.totalorder %s17, 0
    %p128 = por %p126, %p127
    %s129 = ssub.s32 %s18, %s30
    %s130 = ssub.s32 %s19, %s26
    %s131 = sor.u32 %s129, %s130
    %p132 = scmp.eq.s32.totalorder %s131, 0
    %s134 = sadd.s32 %s133, 1
    %s135 = scalar_select %p132, %s133, %s134
    %p138 = pneg %p132
    %p139 = scmp.eq.s32.totalorder %s11, 1
    %p140 = por %p138, %p139
    %p141 = scmp.ne.s32.totalorder %s133, %s136
    %p142 = scmp.eq.s32.totalorder %s11, 0
    %p143 = por %p141, %p142
    %p144 = scmp.ne.s32.totalorder %s133, %s136
    %p145 = scmp.eq.s32.totalorder %s16, 1
    %p146 = por %p144, %p145
    %p147 = scmp.ne.s32.totalorder %s136, %s137
    %p148 = scmp.eq.s32.totalorder %s16, 0
    %p149 = por %p147, %p148
    %p150 = scmp.ne.s32.totalorder %s136, %s137
    %p151 = scmp.eq.s32.totalorder %s17, 1
    %p152 = por %p150, %p151
    %p154 = scmp.ne.s32.totalorder %s137, %s153
    %p155 = scmp.eq.s32.totalorder %s17, 0
    %p156 = por %p154, %p155
    %p157 = scmp.le.s32.totalorder 1, %s11
    %p158 = scmp.lt.s32.totalorder %s11, 3
    %p159 = pnand %p157, %p158
    %p160 = pneg %p159
    // Predicated region
    $region9: #{nbest_align_bert_forward.7} parent=5 // pred_check
      _
    $region10: #{nbest_align_bert_forward.7} parent=5 // pred_check_branch
      %162 = sbr.rel (%p159) target = $region12
    $region11: #{nbest_align_bert_forward.7} parent=5 // pred_region
      %s163 = ssub.s32 %s11, 1
      // Predicated region
      $region13: #{nbest_align_bert_forward.7} parent=11 // pred_check
        %p164 = pneg %p72
      $region14: #{nbest_align_bert_forward.7} parent=11 // pred_check_branch
        %166 = sbr.rel (%p164) target = $region16
      $region15: #{nbest_align_bert_forward.7} parent=11 // pred_region
        _
      $region16: #{nbest_align_bert_forward.7} parent=11 // pred_fallthru
        _
      // Predicated region
      $region17: #{nbest_align_bert_forward.7} parent=11 // pred_check
        %p167 = pneg %p93
      $region18: #{nbest_align_bert_forward.7} parent=11 // pred_check_branch
        %169 = sbr.rel (%p167) target = $region20
      $region19: #{nbest_align_bert_forward.7} parent=11 // pred_region
        _
      $region20: #{nbest_align_bert_forward.7} parent=11 // pred_fallthru
        _
    $region12: #{nbest_align_bert_forward.7} parent=5 // pred_fallthru
      _
    %p170 = scmp.lt.s32.totalorder %s11, 2
    // Predicated region
    $region21: #{nbest_align_bert_forward.7} parent=5 // pred_check
      %p171 = pneg %p170
    $region22: #{nbest_align_bert_forward.7} parent=5 // pred_check_branch
      %173 = sbr.rel (%p171) target = $region24
    $region23: #{nbest_align_bert_forward.7} parent=5 // pred_region
      // Predicated region
      $region25: #{nbest_align_bert_forward.7} parent=23 // pred_check
        %p174 = pneg %p45
      $region26: #{nbest_align_bert_forward.7} parent=23 // pred_check_branch
        %176 = sbr.rel (%p174) target = $region28
      $region27: #{nbest_align_bert_forward.7} parent=23 // pred_region
        %s177 = smul.u32 2, %s19
        %p178 = scmp.lt.s32.totalorder %s18, 1
        %s179 = scalar_select %p178, %s18, 1
        %p180 = scmp.lt.s32.totalorder %s177, 1
        %s181 = scalar_select %p180, %s177, 1
        %s182 = smul.addr %s179, 2
        %s183 = sadd.s32 %s181, %s182
        %s184 = smul.addr %s183, 4
        %s185 = scalar_lea.vmem %s0, %s184
        %s186 = smul.u32 2, %s19
      $region28: #{nbest_align_bert_forward.7} parent=23 // pred_fallthru
        _
    $region24: #{nbest_align_bert_forward.7} parent=5 // pred_fallthru
      _
    %p187 = scmp.le.s32.totalorder 1, %s11
    %p188 = scmp.lt.s32.totalorder %s11, 3
    %p189 = pnand %p187, %p188
    %p190 = pneg %p189
    // Predicated region
    $region29: #{nbest_align_bert_forward.7} parent=5 // pred_check
      _
    $region30: #{nbest_align_bert_forward.7} parent=5 // pred_check_branch
      %192 = sbr.rel (%p189) target = $region32
    $region31: #{nbest_align_bert_forward.7} parent=5 // pred_region
      %s193 = ssub.s32 %s11, 1
      %s194 = smul.u32 2, %s21
      %p195 = scmp.lt.s32.totalorder %s20, 1
      %s196 = scalar_select %p195, %s20, 1
      %p197 = scmp.lt.s32.totalorder %s194, 1
      %s198 = scalar_select %p197, %s194, 1
      %s199 = smul.addr %s196, 2
      %s200 = sadd.s32 %s198, %s199
      %s201 = smul.addr %s200, 4
      %s202 = scalar_lea.vmem %s0, %s201
      %p203 = pneg %p51
      %p204 = pneg %p48
      %p205 = pneg %p72
      %p206 = pneg %p69
      %p207 = pneg %p93
      %p208 = pneg %p90
      %p209 = pneg %p121
      %p210 = pneg %p118
      %s211 = smul.u32 2, %s21
      %p212 = scmp.lt.s32.totalorder %s20, 1
      %s213 = scalar_select %p212, %s20, 1
      %p214 = scmp.lt.s32.totalorder %s211, 1
      %s215 = scalar_select %p214, %s211, 1
      %s216 = smul.addr %s213, 2
      %s217 = sadd.s32 %s215, %s216
      %s218 = smul.addr %s217, 4
      %s219 = scalar_lea.vmem %s3, %s218
      %p220 = pneg %p149
      %p221 = pneg %p146
      %s222 = smul.u32 2, %s21
      %p223 = scmp.lt.s32.totalorder %s20, 1
      %s224 = scalar_select %p223, %s20, 1
      %p225 = scmp.lt.s32.totalorder %s222, 1
      %s226 = scalar_select %p225, %s222, 1
      %s227 = smul.addr %s224, 2
      %s228 = sadd.s32 %s226, %s227
      %s229 = smul.addr %s228, 4
      %s230 = scalar_lea.vmem %s4, %s229
      %s231 = smul.u32 2, %s21
      %p232 = scmp.lt.s32.totalorder %s20, 1
      %s233 = scalar_select %p232, %s20, 1
      %p234 = scmp.lt.s32.totalorder %s231, 1
      %s235 = scalar_select %p234, %s231, 1
      %s236 = smul.addr %s233, 2
      %s237 = sadd.s32 %s235, %s236
      %s238 = smul.addr %s237, 4
      %s239 = scalar_lea.vmem %s0, %s238
      %s240 = smul.u32 2, %s21
      %s241 = smul.u32 2, %s21
      %p242 = scmp.lt.s32.totalorder %s20, 1
      %s243 = scalar_select %p242, %s20, 1
      %p244 = scmp.lt.s32.totalorder %s241, 1
      %s245 = scalar_select %p244, %s241, 1
      %s246 = smul.addr %s243, 2
      %s247 = sadd.s32 %s245, %s246
      %s248 = smul.addr %s247, 4
      %s249 = scalar_lea.vmem %s3, %s248
      %s250 = smul.u32 2, %s21
      %s251 = smul.u32 2, %s21
      %p252 = scmp.lt.s32.totalorder %s20, 1
      %s253 = scalar_select %p252, %s20, 1
      %p254 = scmp.lt.s32.totalorder %s251, 1
      %s255 = scalar_select %p254, %s251, 1
      %s256 = smul.addr %s253, 2
      %s257 = sadd.s32 %s255, %s256
      %s258 = smul.addr %s257, 4
      %s259 = scalar_lea.vmem %s4, %s258
      %s260 = smul.u32 2, %s21
      %v262 = vld [vmem:[%s239] sm:$0xf]
      %v263 = vld [vmem:[%s239 + $0x4] sm:$0xf]
      %v264 = vld [vmem:[%s1] sm:$0xf]
      %v265 = vld [vmem:[%s1 + $0x4] sm:$0xf]
      %v266 = vld [vmem:[%s1 + $0x8] sm:$0xf]
      %v267 = vld [vmem:[%s1 + $0xc] sm:$0xf]
      %v268 = vld [vmem:[%s2] sm:$0x1]
      %v270 = vlaneseq
      %v271 = vshrl.u32 %v270, 7
      %v272 = vsub.s32 0, %v271
      %v273 = vrot.slane %v268, %v272
      %v277 = vunpack.c.l.b16 %v262
      %v278 = vunpack.c.l.b16 %v263
      %v279 = vpack.c.b16 %v278, %v277
      %v284 = vunpack.c.l.b16 %v264
      %v285 = vunpack.c.l.b16 %v265
      %v286 = vunpack.c.l.b16 %v266
      %v287 = vunpack.c.l.b16 %v267
      %v288 = vpack.c.b16 %v285, %v284
      %v289 = vpack.c.b16 %v287, %v286
      %vm292 = vcmask 261120
      %v294 = vsel %vm292, %v279, 0
      %296 = vmatprep.subr.bf16.mxu0 0
      %297 = vmatpush1.bf16.msra.mxu0 %v288
      %298 = vmatprep.subr.bf16.mxu0 0
      %299 = vmatpush1.bf16.msra.mxu0 %v289
      %300 = vmatprep.subr.bf16.mxu0 0
      %301 = vmatpush1.bf16.msra.mxu0 0
      %302 = vmatprep.subr.bf16.mxu0 0
      %303 = vmatpush1.bf16.msra.mxu0 0
      %304 = vmatprep.subr.bf16.mxu0 0
      %305 = vmatpush1.bf16.msra.mxu0 0
      %306 = vmatprep.subr.bf16.mxu0 0
      %307 = vmatpush1.bf16.msra.mxu0 0
      %308 = vmatprep.subr.bf16.mxu0 0
      %309 = vmatpush1.bf16.msra.mxu0 0
      %310 = vmatprep.subr.bf16.mxu0 0
      %311 = vmatpush1.bf16.msra.mxu0 0
      %312 = vmatprep.subr.bf16.mxu0 0
      %313 = vmatpush1.bf16.msra.mxu0 0
      %314 = vmatprep.subr.bf16.mxu0 0
      %315 = vmatpush1.bf16.msra.mxu0 0
      %316 = vmatprep.subr.bf16.mxu0 0
      %317 = vmatpush1.bf16.msra.mxu0 0
      %318 = vmatprep.subr.bf16.mxu0 0
      %319 = vmatpush1.bf16.msra.mxu0 0
      %320 = vmatprep.subr.bf16.mxu0 0
      %321 = vmatpush1.bf16.msra.mxu0 0
      %322 = vmatprep.subr.bf16.mxu0 0
      %323 = vmatpush1.bf16.msra.mxu0 0
      %324 = vmatprep.subr.bf16.mxu0 0
      %325 = vmatpush1.bf16.msra.mxu0 0
      %326 = vmatprep.subr.bf16.mxu0 0
      %327 = vmatpush1.bf16.msra.mxu0 0
      %328 = vmatprep.mubr.bf16.mxu0 0
      %329 = vmatmul.mubr.bf16.gmra.mrb[0].mxu0 %v294
      %v330 = vpop.f32.mrb[0].mxu0
      %v331 = vadd.f32 %v273, %v330
      %v332 = vpop.f32.mrb[0].mxu0
      %v333 = vpop.f32.mrb[0].mxu0
      %v334 = vadd.f32 %v273, %v333
      %v335 = vpop.f32.mrb[0].mxu0
      %336 = vdwg.mxu0
      %v337 = vpack.c.bf16 %v334, %v331
      %v339 = vunpack.c.l.b16 %v337
      %v340 = vunpack.c.h.b16 %v337
      %v341 = vpack.c.b16 %v339, %v339
      %v342 = vpack.c.b16 %v340, %v340
      %vm345 = vcmask 257024
      %346 = vst.msk [vmem:[%s249] sm:$0xf] %vm345, %v341
      %347 = vst.msk [vmem:[%s249 + $0x4] sm:$0xf] %vm345, %v342
      %348 = vrot.lane.b32.xlu0 %v341, 96
      %v349 = vpop.permute.xlu0 %348
      %350 = vrot.lane.b32.xlu0 %v342, 96
      %v351 = vpop.permute.xlu0 %350
      %vm354 = vcmask 519168
      %355 = vst.msk [vmem:[%s259] sm:$0xf] %vm354, %v349
      %356 = vst.msk [vmem:[%s259 + $0x4] sm:$0xf] %vm354, %v351
      %s357 = smul.u32 2, %s21
      %p358 = scmp.lt.s32.totalorder %s20, 1
      %s359 = scalar_select %p358, %s20, 1
      %p360 = scmp.lt.s32.totalorder %s357, 1
      %s361 = scalar_select %p360, %s357, 1
      %s362 = smul.addr %s359, 2
      %s363 = sadd.s32 %s361, %s362
      %s364 = smul.addr %s363, 4
      %s365 = scalar_lea.vmem %s3, %s364
      %s366 = smul.u32 2, %s21
      %p367 = scmp.lt.s32.totalorder %s20, 1
      %s368 = scalar_select %p367, %s20, 1
      %p369 = scmp.lt.s32.totalorder %s366, 1
      %s370 = scalar_select %p369, %s366, 1
      %s371 = smul.addr %s368, 2
      %s372 = sadd.s32 %s370, %s371
      %s373 = smul.addr %s372, 4
      %s374 = scalar_lea.vmem %s4, %s373
      // Predicated region
      $region33: #{nbest_align_bert_forward.7} parent=31 // pred_check
        %p375 = pneg %p118
      $region34: #{nbest_align_bert_forward.7} parent=31 // pred_check_branch
        %377 = sbr.rel (%p375) target = $region36
      $region35: #{nbest_align_bert_forward.7} parent=31 // pred_region
        %s378 = smul.u32 2, %s21
      $region36: #{nbest_align_bert_forward.7} parent=31 // pred_fallthru
        _
      // Predicated region
      $region37: #{nbest_align_bert_forward.7} parent=31 // pred_check
        %p379 = pneg %p146
      $region38: #{nbest_align_bert_forward.7} parent=31 // pred_check_branch
        %381 = sbr.rel (%p379) target = $region40
      $region39: #{nbest_align_bert_forward.7} parent=31 // pred_region
        %s382 = smul.u32 2, %s21
      $region40: #{nbest_align_bert_forward.7} parent=31 // pred_fallthru
        _
    $region32: #{nbest_align_bert_forward.7} parent=5 // pred_fallthru
      _
    %p383 = scmp.le.s32.totalorder 2, %s11
    // Predicated region
    $region41: #{nbest_align_bert_forward.7} parent=5 // pred_check
      %p384 = pneg %p383
    $region42: #{nbest_align_bert_forward.7} parent=5 // pred_check_branch
      %386 = sbr.rel (%p384) target = $region44
    $region43: #{nbest_align_bert_forward.7} parent=5 // pred_region
      %s387 = ssub.s32 %s11, 2
      // Predicated region
      $region45: #{nbest_align_bert_forward.7} parent=43 // pred_check
        %p388 = pneg %p124
      $region46: #{nbest_align_bert_forward.7} parent=43 // pred_check_branch
        %390 = sbr.rel (%p388) target = $region48
      $region47: #{nbest_align_bert_forward.7} parent=43 // pred_region
        %s391 = smul.u32 2, %s23
        %p392 = scmp.lt.s32.totalorder %s22, 1
        %s393 = scalar_select %p392, %s22, 1
        %p394 = scmp.lt.s32.totalorder %s391, 1
        %s395 = scalar_select %p394, %s391, 1
        %s396 = smul.addr %s393, 2
        %s397 = sadd.s32 %s395, %s396
        %s398 = smul.addr %s397, 4
        %s399 = scalar_lea.vmem %s3, %s398
      $region48: #{nbest_align_bert_forward.7} parent=43 // pred_fallthru
        _
      // Predicated region
      $region49: #{nbest_align_bert_forward.7} parent=43 // pred_check
        %p400 = pneg %p152
      $region50: #{nbest_align_bert_forward.7} parent=43 // pred_check_branch
        %402 = sbr.rel (%p400) target = $region52
      $region51: #{nbest_align_bert_forward.7} parent=43 // pred_region
        %s403 = smul.u32 2, %s23
        %p404 = scmp.lt.s32.totalorder %s22, 1
        %s405 = scalar_select %p404, %s22, 1
        %p406 = scmp.lt.s32.totalorder %s403, 1
        %s407 = scalar_select %p406, %s403, 1
        %s408 = smul.addr %s405, 2
        %s409 = sadd.s32 %s407, %s408
        %s410 = smul.addr %s409, 4
        %s411 = scalar_lea.vmem %s4, %s410
      $region52: #{nbest_align_bert_forward.7} parent=43 // pred_fallthru
        _
    $region44: #{nbest_align_bert_forward.7} parent=5 // pred_fallthru
      _
  $region6: #{nbest_align_bert_forward.7} parent=0 // loop_footer
    %s15 = sadd.s32 1, %s11
  $region7: #{nbest_align_bert_forward.7} parent=0 // loop_footer_branch
    %10 = sbr.rel target = $region3
  $region8: #{nbest_align_bert_forward.7} parent=0 // loop_exit
    _

// kernel: nbest_align_bert_forward.6
$region0: #{nbest_align_bert_forward.6}
  #allocation0 [shape = 'u32[]', space=smem, size = 0x4, offset = 0x4, fixed_abs, tag = 'smem constant byte address 0x4 - core index']
  #allocation1 [shape = 'u32[144,128]{1,0:T(1,128)}', space=vmem, size = 0x12000, scoped, tag = 'internal scratch']
  %s0 = inlined_call_operand.vmem [shape: bf16[2,16,32], index: 0, kind: input, shape index: {}]
  %s1 = inlined_call_operand.vmem [shape: bf16[16,32], index: 1, kind: input, shape index: {}]
  %s2 = inlined_call_operand.vmem [shape: bf16[2,16,32], index: 2, kind: input, shape index: {}]
  %s3 = inlined_call_operand.vmem [shape: f32[1,32], index: 3, kind: input, shape index: {}]
  %s4 = inlined_call_operand.vmem [shape: f32[1,32], index: 4, kind: input, shape index: {}]
  %s5 = inlined_call_operand.vmem [shape: bf16[2,16,32], index: 5, kind: output, shape index: {}]
  %s6 = sld [smem:[#allocation0]]
  $region53: #{nbest_align_bert_forward.6} parent=0
    _
  %s8 = ssub.s32 1, %s6
  %s9 = scalar_select 0, %s8, %s6
  loop: start=0, step=1, limit=4
  $region2: #{nbest_align_bert_forward.6} parent=0 // loop_pre_header
    _
  $region3: #{nbest_align_bert_forward.6} parent=0 // loop_header
    %s11 = sphi 0, %s15
    %p12 = scmp.ge.s32.totalorder %s11, 4
    %s18 = sphi 0, %s30
    %s19 = sphi 0, %s26
    %s20 = sphi 0, %s18
    %s21 = sphi 0, %s19
    %s22 = sphi 0, %s20
    %s23 = sphi 0, %s21
    %s35 = sphi 0, %s37
    %s38 = sphi 0, %s35
    %s39 = sphi 0, %s38
    %s55 = sphi 0, %s39
    %s61 = sphi 0, %s63
    %s64 = sphi 0, %s61
    %s65 = sphi 0, %s64
    %s81 = sphi 0, %s65
    %s89 = sphi 0, %s91
    %s92 = sphi 0, %s89
    %s93 = sphi 0, %s92
    %s109 = sphi 0, %s93
    %s113 = sphi 0, %s113
    %s115 = sphi 0, %s113
    %s116 = sphi 0, %s115
    %s130 = sphi 0, %s116
    %s134 = sphi 0, %s134
    %s136 = sphi 0, %s134
    %s137 = sphi 0, %s136
    %s151 = sphi 0, %s137
    %s159 = sphi 0, %s161
    %s162 = sphi 0, %s159
    %s163 = sphi 0, %s162
    %s179 = sphi 0, %s163
  $region4: #{nbest_align_bert_forward.6} parent=0 // loop_header_branch
    %14 = sbr.rel (%p12) target = $region8
  $region5: #{nbest_align_bert_forward.6} parent=0 // loop_body
    %s16 = ssub.s32 %s11, 1
    %s17 = ssub.s32 %s11, 2
    %s24 = sadd.s32 1, %s19
    %p25 = scmp.ge.s32.totalorder %s24, 1
    %s26 = scalar_select %p25, 0, %s24
    %s27 = sadd.s32 1, %s18
    %s28 = scalar_select %p25, %s27, %s18
    %p29 = scmp.ge.s32.totalorder %s28, 2
    %s30 = scalar_select %p29, 0, %s28
    %s31 = ssub.s32 %s18, %s30
    %s32 = ssub.s32 %s19, %s26
    %s33 = sor.u32 %s31, %s32
    %p34 = scmp.eq.s32.totalorder %s33, 0
    %s36 = sadd.s32 %s35, 1
    %s37 = scalar_select %p34, %s35, %s36
    %p40 = pneg %p34
    %p41 = scmp.eq.s32.totalorder %s11, 1
    %p42 = por %p40, %p41
    %p43 = scmp.ne.s32.totalorder %s35, %s38
    %p44 = scmp.eq.s32.totalorder %s11, 0
    %p45 = por %p43, %p44
    %p46 = scmp.ne.s32.totalorder %s35, %s38
    %p47 = scmp.eq.s32.totalorder %s16, 1
    %p48 = por %p46, %p47
    %p49 = scmp.ne.s32.totalorder %s38, %s39
    %p50 = scmp.eq.s32.totalorder %s16, 0
    %p51 = por %p49, %p50
    %p52 = scmp.ne.s32.totalorder %s38, %s39
    %p53 = scmp.eq.s32.totalorder %s17, 1
    %p54 = por %p52, %p53
    %p56 = scmp.ne.s32.totalorder %s39, %s55
    %p57 = scmp.eq.s32.totalorder %s17, 0
    %p58 = por %p56, %p57
    %s59 = ssub.s32 %s19, %s26
    %p60 = scmp.eq.s32.totalorder %s59, 0
    %s62 = sadd.s32 %s61, 1
    %s63 = scalar_select %p60, %s61, %s62
    %p66 = pneg %p60
    %p67 = scmp.eq.s32.totalorder %s11, 1
    %p68 = por %p66, %p67
    %p69 = scmp.ne.s32.totalorder %s61, %s64
    %p70 = scmp.eq.s32.totalorder %s11, 0
    %p71 = por %p69, %p70
    %p72 = scmp.ne.s32.totalorder %s61, %s64
    %p73 = scmp.eq.s32.totalorder %s16, 1
    %p74 = por %p72, %p73
    %p75 = scmp.ne.s32.totalorder %s64, %s65
    %p76 = scmp.eq.s32.totalorder %s16, 0
    %p77 = por %p75, %p76
    %p78 = scmp.ne.s32.totalorder %s64, %s65
    %p79 = scmp.eq.s32.totalorder %s17, 1
    %p80 = por %p78, %p79
    %p82 = scmp.ne.s32.totalorder %s65, %s81
    %p83 = scmp.eq.s32.totalorder %s17, 0
    %p84 = por %p82, %p83
    %s85 = ssub.s32 %s18, %s30
    %s86 = ssub.s32 %s19, %s26
    %s87 = sor.u32 %s85, %s86
    %p88 = scmp.eq.s32.totalorder %s87, 0
    %s90 = sadd.s32 %s89, 1
    %s91 = scalar_select %p88, %s89, %s90
    %p94 = pneg %p88
    %p95 = scmp.eq.s32.totalorder %s11, 1
    %p96 = por %p94, %p95
    %p97 = scmp.ne.s32.totalorder %s89, %s92
    %p98 = scmp.eq.s32.totalorder %s11, 0
    %p99 = por %p97, %p98
    %p100 = scmp.ne.s32.totalorder %s89, %s92
    %p101 = scmp.eq.s32.totalorder %s16, 1
    %p102 = por %p100, %p101
    %p103 = scmp.ne.s32.totalorder %s92, %s93
    %p104 = scmp.eq.s32.totalorder %s16, 0
    %p105 = por %p103, %p104
    %p106 = scmp.ne.s32.totalorder %s92, %s93
    %p107 = scmp.eq.s32.totalorder %s17, 1
    %p108 = por %p106, %p107
    %p110 = scmp.ne.s32.totalorder %s93, %s109
    %p111 = scmp.eq.s32.totalorder %s17, 0
    %p112 = por %p110, %p111
    %s114 = sadd.s32 %s113, 1
    %p117 = scmp.eq.s32.totalorder %s11, 1
    %p118 = scmp.ne.s32.totalorder %s113, %s115
    %p119 = scmp.eq.s32.totalorder %s11, 0
    %p120 = por %p118, %p119
    %p121 = scmp.ne.s32.totalorder %s113, %s115
    %p122 = scmp.eq.s32.totalorder %s16, 1
    %p123 = por %p121, %p122
    %p124 = scmp.ne.s32.totalorder %s115, %s116
    %p125 = scmp.eq.s32.totalorder %s16, 0
    %p126 = por %p124, %p125
    %p127 = scmp.ne.s32.totalorder %s115, %s116
    %p128 = scmp.eq.s32.totalorder %s17, 1
    %p129 = por %p127, %p128
    %p131 = scmp.ne.s32.totalorder %s116, %s130
    %p132 = scmp.eq.s32.totalorder %s17, 0
    %p133 = por %p131, %p132
    %s135 = sadd.s32 %s134, 1
    %p138 = scmp.eq.s32.totalorder %s11, 1
    %p139 = scmp.ne.s32.totalorder %s134, %s136
    %p140 = scmp.eq.s32.totalorder %s11, 0
    %p141 = por %p139, %p140
    %p142 = scmp.ne.s32.totalorder %s134, %s136
    %p143 = scmp.eq.s32.totalorder %s16, 1
    %p144 = por %p142, %p143
    %p145 = scmp.ne.s32.totalorder %s136, %s137
    %p146 = scmp.eq.s32.totalorder %s16, 0
    %p147 = por %p145, %p146
    %p148 = scmp.ne.s32.totalorder %s136, %s137
    %p149 = scmp.eq.s32.totalorder %s17, 1
    %p150 = por %p148, %p149
    %p152 = scmp.ne.s32.totalorder %s137, %s151
    %p153 = scmp.eq.s32.totalorder %s17, 0
    %p154 = por %p152, %p153
    %s155 = ssub.s32 %s18, %s30
    %s156 = ssub.s32 %s19, %s26
    %s157 = sor.u32 %s155, %s156
    %p158 = scmp.eq.s32.totalorder %s157, 0
    %s160 = sadd.s32 %s159, 1
    %s161 = scalar_select %p158, %s159, %s160
    %p164 = pneg %p158
    %p165 = scmp.eq.s32.totalorder %s11, 1
    %p166 = por %p164, %p165
    %p167 = scmp.ne.s32.totalorder %s159, %s162
    %p168 = scmp.eq.s32.totalorder %s11, 0
    %p169 = por %p167, %p168
    %p170 = scmp.ne.s32.totalorder %s159, %s162
    %p171 = scmp.eq.s32.totalorder %s16, 1
    %p172 = por %p170, %p171
    %p173 = scmp.ne.s32.totalorder %s162, %s163
    %p174 = scmp.eq.s32.totalorder %s16, 0
    %p175 = por %p173, %p174
    %p176 = scmp.ne.s32.totalorder %s162, %s163
    %p177 = scmp.eq.s32.totalorder %s17, 1
    %p178 = por %p176, %p177
    %p180 = scmp.ne.s32.totalorder %s163, %s179
    %p181 = scmp.eq.s32.totalorder %s17, 0
    %p182 = por %p180, %p181
    %p183 = scmp.le.s32.totalorder 1, %s11
    %p184 = scmp.lt.s32.totalorder %s11, 3
    %p185 = pnand %p183, %p184
    %p186 = pneg %p185
    // Predicated region
    $region9: #{nbest_align_bert_forward.6} parent=5 // pred_check
      _
    $region10: #{nbest_align_bert_forward.6} parent=5 // pred_check_branch
      %188 = sbr.rel (%p185) target = $region12
    $region11: #{nbest_align_bert_forward.6} parent=5 // pred_region
      %s189 = ssub.s32 %s11, 1
      // Predicated region
      $region13: #{nbest_align_bert_forward.6} parent=11 // pred_check
        %p190 = pneg %p77
      $region14: #{nbest_align_bert_forward.6} parent=11 // pred_check_branch
        %192 = sbr.rel (%p190) target = $region16
      $region15: #{nbest_align_bert_forward.6} parent=11 // pred_region
        %s193 = smul.u32 2, %s21
        %p194 = scmp.lt.s32.totalorder %s193, 1
        %s195 = scalar_select %p194, %s193, 1
        %s196 = smul.addr %s195, 4
        %s197 = scalar_lea.vmem %s1, %s196
        %s198 = smul.u32 2, %s21
      $region16: #{nbest_align_bert_forward.6} parent=11 // pred_fallthru
        _
      // Predicated region
      $region17: #{nbest_align_bert_forward.6} parent=11 // pred_check
        %p199 = pneg %p126
      $region18: #{nbest_align_bert_forward.6} parent=11 // pred_check_branch
        %201 = sbr.rel (%p199) target = $region20
      $region19: #{nbest_align_bert_forward.6} parent=11 // pred_region
        _
      $region20: #{nbest_align_bert_forward.6} parent=11 // pred_fallthru
        _
      // Predicated region
      $region21: #{nbest_align_bert_forward.6} parent=11 // pred_check
        %p202 = pneg %p147
      $region22: #{nbest_align_bert_forward.6} parent=11 // pred_check_branch
        %204 = sbr.rel (%p202) target = $region24
      $region23: #{nbest_align_bert_forward.6} parent=11 // pred_region
        _
      $region24: #{nbest_align_bert_forward.6} parent=11 // pred_fallthru
        _
    $region12: #{nbest_align_bert_forward.6} parent=5 // pred_fallthru
      _
    %p205 = scmp.lt.s32.totalorder %s11, 2
    // Predicated region
    $region25: #{nbest_align_bert_forward.6} parent=5 // pred_check
      %p206 = pneg %p205
    $region26: #{nbest_align_bert_forward.6} parent=5 // pred_check_branch
      %208 = sbr.rel (%p206) target = $region28
    $region27: #{nbest_align_bert_forward.6} parent=5 // pred_region
      // Predicated region
      $region29: #{nbest_align_bert_forward.6} parent=27 // pred_check
        %p209 = pneg %p45
      $region30: #{nbest_align_bert_forward.6} parent=27 // pred_check_branch
        %211 = sbr.rel (%p209) target = $region32
      $region31: #{nbest_align_bert_forward.6} parent=27 // pred_region
        %s212 = smul.u32 2, %s19
        %p213 = scmp.lt.s32.totalorder %s18, 1
        %s214 = scalar_select %p213, %s18, 1
        %p215 = scmp.lt.s32.totalorder %s212, 1
        %s216 = scalar_select %p215, %s212, 1
        %s217 = smul.addr %s214, 2
        %s218 = sadd.s32 %s216, %s217
        %s219 = smul.addr %s218, 4
        %s220 = scalar_lea.vmem %s0, %s219
        %s221 = smul.u32 2, %s19
      $region32: #{nbest_align_bert_forward.6} parent=27 // pred_fallthru
        _
      // Predicated region
      $region33: #{nbest_align_bert_forward.6} parent=27 // pred_check
        %p222 = pneg %p99
      $region34: #{nbest_align_bert_forward.6} parent=27 // pred_check_branch
        %224 = sbr.rel (%p222) target = $region36
      $region35: #{nbest_align_bert_forward.6} parent=27 // pred_region
        %s225 = smul.u32 2, %s19
        %p226 = scmp.lt.s32.totalorder %s18, 1
        %s227 = scalar_select %p226, %s18, 1
        %p228 = scmp.lt.s32.totalorder %s225, 1
        %s229 = scalar_select %p228, %s225, 1
        %s230 = smul.addr %s227, 2
        %s231 = sadd.s32 %s229, %s230
        %s232 = smul.addr %s231, 4
        %s233 = scalar_lea.vmem %s2, %s232
        %s234 = smul.u32 2, %s19
      $region36: #{nbest_align_bert_forward.6} parent=27 // pred_fallthru
        _
    $region28: #{nbest_align_bert_forward.6} parent=5 // pred_fallthru
      _
    %p235 = scmp.le.s32.totalorder 1, %s11
    %p236 = scmp.lt.s32.totalorder %s11, 3
    %p237 = pnand %p235, %p236
    %p238 = pneg %p237
    // Predicated region
    $region37: #{nbest_align_bert_forward.6} parent=5 // pred_check
      _
    $region38: #{nbest_align_bert_forward.6} parent=5 // pred_check_branch
      %240 = sbr.rel (%p237) target = $region40
    $region39: #{nbest_align_bert_forward.6} parent=5 // pred_region
      %s241 = ssub.s32 %s11, 1
      %s242 = smul.u32 2, %s21
      %p243 = scmp.lt.s32.totalorder %s20, 1
      %s244 = scalar_select %p243, %s20, 1
      %p245 = scmp.lt.s32.totalorder %s242, 1
      %s246 = scalar_select %p245, %s242, 1
      %s247 = smul.addr %s244, 2
      %s248 = sadd.s32 %s246, %s247
      %s249 = smul.addr %s248, 4
      %s250 = scalar_lea.vmem %s0, %s249
      %p251 = pneg %p51
      %p252 = pneg %p48
      %s253 = smul.u32 2, %s21
      %p254 = scmp.lt.s32.totalorder %s253, 1
      %s255 = scalar_select %p254, %s253, 1
      %s256 = smul.addr %s255, 4
      %s257 = scalar_lea.vmem %s1, %s256
      %p258 = pneg %p77
      %p259 = pneg %p74
      %s260 = smul.u32 2, %s21
      %p261 = scmp.lt.s32.totalorder %s20, 1
      %s262 = scalar_select %p261, %s20, 1
      %p263 = scmp.lt.s32.totalorder %s260, 1
      %s264 = scalar_select %p263, %s260, 1
      %s265 = smul.addr %s262, 2
      %s266 = sadd.s32 %s264, %s265
      %s267 = smul.addr %s266, 4
      %s268 = scalar_lea.vmem %s2, %s267
      %p269 = pneg %p105
      %p270 = pneg %p102
      %p271 = pneg %p126
      %p272 = pneg %p123
      %p273 = pneg %p147
      %p274 = pneg %p144
      %p275 = pneg %p175
      %p276 = pneg %p172
      %s277 = smul.u32 2, %s21
      %p278 = scmp.lt.s32.totalorder %s20, 1
      %s279 = scalar_select %p278, %s20, 1
      %p280 = scmp.lt.s32.totalorder %s277, 1
      %s281 = scalar_select %p280, %s277, 1
      %s282 = smul.addr %s279, 2
      %s283 = sadd.s32 %s281, %s282
      %s284 = smul.addr %s283, 4
      %s285 = scalar_lea.vmem %s5, %s284
      %s286 = smul.u32 2, %s21
      %p287 = scmp.lt.s32.totalorder %s20, 1
      %s288 = scalar_select %p287, %s20, 1
      %p289 = scmp.lt.s32.totalorder %s286, 1
      %s290 = scalar_select %p289, %s286, 1
      %s291 = smul.addr %s288, 2
      %s292 = sadd.s32 %s290, %s291
      %s293 = smul.addr %s292, 4
      %s294 = scalar_lea.vmem %s0, %s293
      %s295 = smul.u32 2, %s21
      %s296 = smul.u32 2, %s21
      %p297 = scmp.lt.s32.totalorder %s296, 1
      %s298 = scalar_select %p297, %s296, 1
      %s299 = smul.addr %s298, 4
      %s300 = scalar_lea.vmem %s1, %s299
      %s301 = smul.u32 2, %s21
      %s302 = smul.u32 2, %s21
      %p303 = scmp.lt.s32.totalorder %s20, 1
      %s304 = scalar_select %p303, %s20, 1
      %p305 = scmp.lt.s32.totalorder %s302, 1
      %s306 = scalar_select %p305, %s302, 1
      %s307 = smul.addr %s304, 2
      %s308 = sadd.s32 %s306, %s307
      %s309 = smul.addr %s308, 4
      %s310 = scalar_lea.vmem %s2, %s309
      %s311 = smul.u32 2, %s21
      %s312 = smul.u32 2, %s21
      %p313 = scmp.lt.s32.totalorder %s20, 1
      %s314 = scalar_select %p313, %s20, 1
      %p315 = scmp.lt.s32.totalorder %s312, 1
      %s316 = scalar_select %p315, %s312, 1
      %s317 = smul.addr %s314, 2
      %s318 = sadd.s32 %s316, %s317
      %s319 = smul.addr %s318, 4
      %s320 = scalar_lea.vmem %s5, %s319
      %s321 = smul.u32 2, %s21
      %v322 = vld [vmem:[%s294] sm:$0xf]
      %v323 = vld [vmem:[%s294 + $0x4] sm:$0xf]
      %v324 = vunpack.c.l.bf16 %v322
      %v325 = vunpack.c.l.bf16 %v323
      %v326 = vld [vmem:[%s300] sm:$0xf]
      %v327 = vld [vmem:[%s300 + $0x4] sm:$0xf]
      %v328 = vunpack.c.l.bf16 %v326
      %v329 = vunpack.c.l.bf16 %v327
      %v330 = vadd.f32 %v324, %v328
      %v331 = vadd.f32 %v325, %v329
      %v332 = vld [vmem:[%s310] sm:$0xf]
      %v333 = vld [vmem:[%s310 + $0x4] sm:$0xf]
      %v334 = vunpack.c.l.bf16 %v332
      %v335 = vunpack.c.l.bf16 %v333
      %v336 = vadd.f32 %v330, %v334
      %v337 = vadd.f32 %v331, %v335
      %v338 = vld [vmem:[%s3] sm:$0x1]
      %v339 = vld [vmem:[%s4] sm:$0x1]
      %vm340 = vcmask 261120
      %v341 = vsel %vm340, %v336, 0.0
      %342 = vadd.xlane.f32.xlu0 %v341
      %v343 = vpop.xlane.xlu0 %342
      %v344 = vsel %vm340, %v337, 0.0
      %345 = vadd.xlane.f32.xlu0 %v344
      %v346 = vpop.xlane.xlu0 %345
      %v347 = vrcp.pop 32.0
      %v348 = vmul.f32 %v343, %v347
      %v349 = vmul.f32 %v346, %v347
      %v350 = vsub.f32 %v336, %v348
      %v351 = vsub.f32 %v337, %v349
      %v352 = vmul.f32 %v350, %v350
      %v353 = vmul.f32 %v351, %v351
      %v354 = vsel %vm340, %v352, 0.0
      %355 = vadd.xlane.f32.xlu0 %v354
      %v356 = vpop.xlane.xlu0 %355
      %v357 = vsel %vm340, %v353, 0.0
      %358 = vadd.xlane.f32.xlu0 %v357
      %v359 = vpop.xlane.xlu0 %358
      %v360 = vmul.f32 %v356, %v347
      %v361 = vmul.f32 %v359, %v347
      %v362 = vadd.f32 %v360, 1e-12
      %v363 = vadd.f32 %v361, 1e-12
      %v364 = vrsqrt.pop %v362
      %v365 = vrsqrt.pop %v363
      %v366 = vmul.f32 %v350, %v364
      %v367 = vmul.f32 %v351, %v365
      %v369 = vlaneseq
      %v370 = vshrl.u32 %v369, 7
      %v371 = vsub.s32 0, %v370
      %v372 = vrot.slane %v338, %v371
      %v374 = vmul.f32 %v366, %v372
      %v375 = vmul.f32 %v367, %v372
      %v377 = vlaneseq
      %v378 = vshrl.u32 %v377, 7
      %v379 = vsub.s32 0, %v378
      %v380 = vrot.slane %v339, %v379
      %v382 = vadd.f32 %v374, %v380
      %v383 = vadd.f32 %v375, %v380
      %v384 = vpack.c.bf16 %v383, %v382
      %v386 = vunpack.c.l.b16 %v384
      %v387 = vunpack.c.h.b16 %v384
      %v388 = vpack.c.b16 %v386, %v386
      %v389 = vpack.c.b16 %v387, %v387
      %vm392 = vcmask 257024
      %393 = vst.msk [vmem:[%s320] sm:$0xf] %vm392, %v388
      %394 = vst.msk [vmem:[%s320 + $0x4] sm:$0xf] %vm392, %v389
      %s395 = smul.u32 2, %s21
      %p396 = scmp.lt.s32.totalorder %s20, 1
      %s397 = scalar_select %p396, %s20, 1
      %p398 = scmp.lt.s32.totalorder %s395, 1
      %s399 = scalar_select %p398, %s395, 1
      %s400 = smul.addr %s397, 2
      %s401 = sadd.s32 %s399, %s400
      %s402 = smul.addr %s401, 4
      %s403 = scalar_lea.vmem %s5, %s402
      // Predicated region
      $region41: #{nbest_align_bert_forward.6} parent=39 // pred_check
        %p404 = pneg %p172
      $region42: #{nbest_align_bert_forward.6} parent=39 // pred_check_branch
        %406 = sbr.rel (%p404) target = $region44
      $region43: #{nbest_align_bert_forward.6} parent=39 // pred_region
        %s407 = smul.u32 2, %s21
      $region44: #{nbest_align_bert_forward.6} parent=39 // pred_fallthru
        _
    $region40: #{nbest_align_bert_forward.6} parent=5 // pred_fallthru
      _
    %p408 = scmp.le.s32.totalorder 2, %s11
    // Predicated region
    $region45: #{nbest_align_bert_forward.6} parent=5 // pred_check
      %p409 = pneg %p408
    $region46: #{nbest_align_bert_forward.6} parent=5 // pred_check_branch
      %411 = sbr.rel (%p409) target = $region48
    $region47: #{nbest_align_bert_forward.6} parent=5 // pred_region
      %s412 = ssub.s32 %s11, 2
      // Predicated region
      $region49: #{nbest_align_bert_forward.6} parent=47 // pred_check
        %p413 = pneg %p178
      $region50: #{nbest_align_bert_forward.6} parent=47 // pred_check_branch
        %415 = sbr.rel (%p413) target = $region52
      $region51: #{nbest_align_bert_forward.6} parent=47 // pred_region
        %s416 = smul.u32 2, %s23
        %p417 = scmp.lt.s32.totalorder %s22, 1
        %s418 = scalar_select %p417, %s22, 1
        %p419 = scmp.lt.s32.totalorder %s416, 1
        %s420 = scalar_select %p419, %s416, 1
        %s421 = smul.addr %s418, 2
        %s422 = sadd.s32 %s420, %s421
        %s423 = smul.addr %s422, 4
        %s424 = scalar_lea.vmem %s5, %s423
      $region52: #{nbest_align_bert_forward.6} parent=47 // pred_fallthru
        _
    $region48: #{nbest_align_bert_forward.6} parent=5 // pred_fallthru
      _
  $region6: #{nbest_align_bert_forward.6} parent=0 // loop_footer
    %s15 = sadd.s32 1, %s11
  $region7: #{nbest_align_bert_forward.6} parent=0 // loop_footer_branch
    %10 = sbr.rel target = $region3
  $region8: #{nbest_align_bert_forward.6} parent=0 // loop_exit
    _

// kernel: nbest_align_bert_forward.11
$region0: #{nbest_align_bert_forward.11}
  #allocation0 [shape = 'u32[]', space=smem, size = 0x4, offset = 0x4, fixed_abs, tag = 'smem constant byte address 0x4 - core index']
  #allocation1 [shape = 'u32[144,128]{1,0:T(1,128)}', space=vmem, size = 0x12000, scoped, tag = 'internal scratch']
  %s0 = inlined_call_operand.vmem [shape: bf16[6,32], index: 0, kind: input, shape index: {}]
  %s1 = inlined_call_operand.vmem [shape: bf16[32,128], index: 1, kind: input, shape index: {}]
  %s2 = inlined_call_operand.vmem [shape: f32[1,128], index: 2, kind: input, shape index: {}]
  %s3 = inlined_call_operand.vmem [shape: f32[6,128], index: 3, kind: output, shape index: {0}]
  %s4 = inlined_call_operand.vmem [shape: f32[6,128], index: 4, kind: output, shape index: {1}]
  %5 = xla_tuple %s3, %s4
  %s6 = sld [smem:[#allocation0]]
  $region30: #{nbest_align_bert_forward.11} parent=0
    _
  %s8 = ssub.s32 1, %s6
  %s9 = scalar_select 0, %s8, %s6
  // Predicated region
  $region2: #{nbest_align_bert_forward.11} parent=0 // pred_check
    _
  $region3: #{nbest_align_bert_forward.11} parent=0 // pred_check_branch
    %11 = sbr.rel (0) target = $region5
  $region4: #{nbest_align_bert_forward.11} parent=0 // pred_region
    _
  $region5: #{nbest_align_bert_forward.11} parent=0 // pred_fallthru
    _
  // Predicated region
  $region6: #{nbest_align_bert_forward.11} parent=0 // pred_check
    _
  $region7: #{nbest_align_bert_forward.11} parent=0 // pred_check_branch
    %13 = sbr.rel (0) target = $region9
  $region8: #{nbest_align_bert_forward.11} parent=0 // pred_region
    _
  $region9: #{nbest_align_bert_forward.11} parent=0 // pred_fallthru
    _
  // Predicated region
  $region10: #{nbest_align_bert_forward.11} parent=0 // pred_check
    _
  $region11: #{nbest_align_bert_forward.11} parent=0 // pred_check_branch
    %15 = sbr.rel (0) target = $region13
  $region12: #{nbest_align_bert_forward.11} parent=0 // pred_region
    _
  $region13: #{nbest_align_bert_forward.11} parent=0 // pred_fallthru
    _
  %v17 = vld [vmem:[%s0] sm:$0x7]
  %v18 = vld [vmem:[%s1] sm:$0xf]
  %v19 = vld [vmem:[%s1 + $0x4] sm:$0xf]
  %v20 = vld [vmem:[%s1 + $0x8] sm:$0xf]
  %v21 = vld [vmem:[%s1 + $0xc] sm:$0xf]
  %v22 = vld [vmem:[%s2] sm:$0x1]
  %v24 = vlaneseq
  %v25 = vshrl.u32 %v24, 7
  %v26 = vsub.s32 0, %v25
  %v27 = vrot.slane %v22, %v26
  %v33 = vunpack.c.l.b16 %v18
  %v34 = vunpack.c.l.b16 %v19
  %v35 = vunpack.c.l.b16 %v20
  %v36 = vunpack.c.l.b16 %v21
  %v37 = vpack.c.b16 %v34, %v33
  %v38 = vpack.c.b16 %v36, %v35
  %vm41 = vcmask 261120
  %v43 = vsel %vm41, %v17, 0
  %45 = vmatprep.subr.bf16.mxu0 0
  %46 = vmatpush1.bf16.msra.mxu0 %v37
  %47 = vmatprep.subr.bf16.mxu0 0
  %48 = vmatpush1.bf16.msra.mxu0 %v38
  %49 = vmatprep.subr.bf16.mxu0 0
  %50 = vmatpush1.bf16.msra.mxu0 0
  %51 = vmatprep.subr.bf16.mxu0 0
  %52 = vmatpush1.bf16.msra.mxu0 0
  %53 = vmatprep.subr.bf16.mxu0 0
  %54 = vmatpush1.bf16.msra.mxu0 0
  %55 = vmatprep.subr.bf16.mxu0 0
  %56 = vmatpush1.bf16.msra.mxu0 0
  %57 = vmatprep.subr.bf16.mxu0 0
  %58 = vmatpush1.bf16.msra.mxu0 0
  %59 = vmatprep.subr.bf16.mxu0 0
  %60 = vmatpush1.bf16.msra.mxu0 0
  %61 = vmatprep.subr.bf16.mxu0 0
  %62 = vmatpush1.bf16.msra.mxu0 0
  %63 = vmatprep.subr.bf16.mxu0 0
  %64 = vmatpush1.bf16.msra.mxu0 0
  %65 = vmatprep.subr.bf16.mxu0 0
  %66 = vmatpush1.bf16.msra.mxu0 0
  %67 = vmatprep.subr.bf16.mxu0 0
  %68 = vmatpush1.bf16.msra.mxu0 0
  %69 = vmatprep.subr.bf16.mxu0 0
  %70 = vmatpush1.bf16.msra.mxu0 0
  %71 = vmatprep.subr.bf16.mxu0 0
  %72 = vmatpush1.bf16.msra.mxu0 0
  %73 = vmatprep.subr.bf16.mxu0 0
  %74 = vmatpush1.bf16.msra.mxu0 0
  %75 = vmatprep.subr.bf16.mxu0 0
  %76 = vmatpush1.bf16.msra.mxu0 0
  %77 = vmatprep.mubr.bf16.mxu0 0
  %78 = vmatmul.mubr.bf16.gmra.mrb[0].mxu0 %v43
  %v79 = vpop.f32.mrb[0].mxu0
  %v80 = vadd.f32 %v27, %v79
  %v81 = vpop.f32.mrb[0].mxu0
  %v82 = vpop.f32.mrb[0].mxu0
  %v83 = vpop.f32.mrb[0].mxu0
  %84 = vdwg.mxu0
  %v85 = vlaneseq
  %v86 = vand.u32 %v85, 127
  %vm87 = vcmp.lt.s32.totalorder %v86, 4
  %v88 = vsel %vm87, %v80, -1e+30
  %vm89 = vcmask 1045504
  %v90 = vsel %vm89, %v88, -inf
  %91 = vmax.xlane.f32.xlu0 %v90
  %v92 = vpop.xlane.xlu0 %91
  %v93 = vsub.f32 %v88, %v92
  %v94 = vmul.f32 %v93, 1.442695
  %v95 = vpow.pop %v94
  %v96 = vsel %vm89, %v95, 0.0
  %97 = vadd.xlane.f32.xlu0 %v96
  %v98 = vpop.xlane.xlu0 %97
  %v99 = vrcp.pop %v98
  %v100 = vmul.f32 %v95, %v99
  %101 = vst [vmem:[%s3] sm:$0x3f] %v100
  %v102 = vsel %vm87, %v100, -1e+30
  %v103 = vsel %vm89, %v102, -inf
  %104 = vmax.xlane.f32.xlu0 %v103
  %v105 = vpop.xlane.xlu0 %104
  %v106 = vsub.f32 %v102, %v105
  %v107 = vmul.f32 %v106, 1.442695
  %v108 = vpow.pop %v107
  %v109 = vsel %vm89, %v108, 0.0
  %110 = vadd.xlane.f32.xlu0 %v109
  %v111 = vpop.xlane.xlu0 %110
  %v112 = vlog2.pop %v111
  %v113 = vmul.f32 %v112, 0.6931472
  %v114 = vsub.f32 %v106, %v113
  %115 = vst [vmem:[%s4] sm:$0x3f] %v114
  // Predicated region
  $region14: #{nbest_align_bert_forward.11} parent=0 // pred_check
    _
  $region15: #{nbest_align_bert_forward.11} parent=0 // pred_check_branch
    %117 = sbr.rel (0) target = $region17
  $region16: #{nbest_align_bert_forward.11} parent=0 // pred_region
    _
  $region17: #{nbest_align_bert_forward.11} parent=0 // pred_fallthru
    _
  // Predicated region
  $region18: #{nbest_align_bert_forward.11} parent=0 // pred_check
    _
  $region19: #{nbest_align_bert_forward.11} parent=0 // pred_check_branch
    %119 = sbr.rel (0) target = $region21
  $region20: #{nbest_align_bert_forward.11} parent=0 // pred_region
    _
  $region21: #{nbest_align_bert_forward.11} parent=0 // pred_fallthru
    _
  // Predicated region
  $region22: #{nbest_align_bert_forward.11} parent=0 // pred_check
    _
  $region23: #{nbest_align_bert_forward.11} parent=0 // pred_check_branch
    %121 = sbr.rel (0) target = $region25
  $region24: #{nbest_align_bert_forward.11} parent=0 // pred_region
    _
  $region25: #{nbest_align_bert_forward.11} parent=0 // pred_fallthru
    _
  // Predicated region
  $region26: #{nbest_align_bert_forward.11} parent=0 // pred_check
    _
  $region27: #{nbest_align_bert_forward.11} parent=0 // pred_check_branch
    %123 = sbr.rel (0) target = $region29
  $region28: #{nbest_align_bert_forward.11} parent=0 // pred_region
    _
  $region29: #{nbest_align_bert_forward.11} parent=0 // pred_fallthru
    _

// kernel: nbest_align_bert_forward.8
$region0: #{nbest_align_bert_forward.8}
  #allocation0 [shape = 'u32[]', space=smem, size = 0x4, offset = 0x4, fixed_abs, tag = 'smem constant byte address 0x4 - core index']
  #allocation1 [shape = 'u32[144,128]{1,0:T(1,128)}', space=vmem, size = 0x12000, scoped, tag = 'internal scratch']
  %s0 = inlined_call_operand.vmem [shape: bf16[2,16,32], index: 0, kind: input, shape index: {}, may-alias: {0,14}]
  %s1 = inlined_call_operand.vmem [shape: bf16[2,16,32], index: 1, kind: input, shape index: {}]
  %s2 = inlined_call_operand.vmem [shape: bf16[2,16,64], index: 2, kind: input, shape index: {}]
  %s3 = inlined_call_operand.vmem [shape: f32[2,1,16], index: 3, kind: input, shape index: {}]
  %s4 = inlined_call_operand.vmem [shape: bf16[4,8,32], index: 4, kind: input, shape index: {}]
  %s5 = inlined_call_operand.vmem [shape: f32[1,32], index: 5, kind: input, shape index: {}]
  %s6 = inlined_call_operand.vmem [shape: f32[1,32], index: 6, kind: input, shape index: {}]
  %s7 = inlined_call_operand.vmem [shape: f32[1,32], index: 7, kind: input, shape index: {}]
  %s8 = inlined_call_operand.vmem [shape: bf16[32,64], index: 8, kind: input, shape index: {}]
  %s9 = inlined_call_operand.vmem [shape: f32[1,64], index: 9, kind: input, shape index: {}]
  %s10 = inlined_call_operand.vmem [shape: bf16[64,32], index: 10, kind: input, shape index: {}]
  %s11 = inlined_call_operand.vmem [shape: f32[1,32], index: 11, kind: input, shape index: {}]
  %s12 = inlined_call_operand.vmem [shape: f32[1,32], index: 12, kind: input, shape index: {}]
  %s13 = inlined_call_operand.vmem [shape: f32[1,32], index: 13, kind: input, shape index: {}]
  %s14 = inlined_call_operand.vmem [shape: bf16[2,16,32], index: 14, kind: output, shape index: {}, may-alias: {0,14}]
  %s15 = sld [smem:[#allocation0]]
  $region89: #{nbest_align_bert_forward.8} parent=0
    _
  %s17 = ssub.s32 1, %s15
  %s18 = scalar_select 0, %s17, %s15
  loop: start=0, step=1, limit=4
  $region2: #{nbest_align_bert_forward.8} parent=0 // loop_pre_header
    _
  $region3: #{nbest_align_bert_forward.8} parent=0 // loop_header
    %s20 = sphi 0, %s24
    %p21 = scmp.ge.s32.totalorder %s20, 4
    %s27 = sphi 0, %s39
    %s28 = sphi 0, %s35
    %s29 = sphi 0, %s27
    %s30 = sphi 0, %s28
    %s31 = sphi 0, %s29
    %s32 = sphi 0, %s30
    %s44 = sphi 0, %s46
    %s47 = sphi 0, %s44
    %s48 = sphi 0, %s47
    %s64 = sphi 0, %s48
    %s72 = sphi 0, %s74
    %s75 = sphi 0, %s72
    %s76 = sphi 0, %s75
    %s92 = sphi 0, %s76
    %s98 = sphi 0, %s100
    %s101 = sphi 0, %s98
    %s102 = sphi 0, %s101
    %s118 = sphi 0, %s102
    %s124 = sphi 0, %s126
    %s127 = sphi 0, %s124
    %s128 = sphi 0, %s127
    %s144 = sphi 0, %s128
    %s148 = sphi 0, %s148
    %s150 = sphi 0, %s148
    %s151 = sphi 0, %s150
    %s165 = sphi 0, %s151
    %s169 = sphi 0, %s169
    %s171 = sphi 0, %s169
    %s172 = sphi 0, %s171
    %s186 = sphi 0, %s172
    %s190 = sphi 0, %s190
    %s192 = sphi 0, %s190
    %s193 = sphi 0, %s192
    %s207 = sphi 0, %s193
    %s211 = sphi 0, %s211
    %s213 = sphi 0, %s211
    %s214 = sphi 0, %s213
    %s228 = sphi 0, %s214
    %s232 = sphi 0, %s232
    %s234 = sphi 0, %s232
    %s235 = sphi 0, %s234
    %s249 = sphi 0, %s235
    %s253 = sphi 0, %s253
    %s255 = sphi 0, %s253
    %s256 = sphi 0, %s255
    %s270 = sphi 0, %s256
    %s274 = sphi 0, %s274
    %s276 = sphi 0, %s274
    %s277 = sphi 0, %s276
    %s291 = sphi 0, %s277
    %s295 = sphi 0, %s295
    %s297 = sphi 0, %s295
    %s298 = sphi 0, %s297
    %s312 = sphi 0, %s298
    %s316 = sphi 0, %s316
    %s318 = sphi 0, %s316
    %s319 = sphi 0, %s318
    %s333 = sphi 0, %s319
    %s337 = sphi 0, %s337
    %s339 = sphi 0, %s337
    %s340 = sphi 0, %s339
    %s354 = sphi 0, %s340
    %s362 = sphi 0, %s364
    %s365 = sphi 0, %s362
    %s366 = sphi 0, %s365
    %s382 = sphi 0, %s366
  $region4: #{nbest_align_bert_forward.8} parent=0 // loop_header_branch
    %23 = sbr.rel (%p21) target = $region8
  $region5: #{nbest_align_bert_forward.8} parent=0 // loop_body
    %s25 = ssub.s32 %s20, 1
    %s26 = ssub.s32 %s20, 2
    %s33 = sadd.s32 1, %s28
    %p34 = scmp.ge.s32.totalorder %s33, 1
    %s35 = scalar_select %p34, 0, %s33
    %s36 = sadd.s32 1, %s27
    %s37 = scalar_select %p34, %s36, %s27
    %p38 = scmp.ge.s32.totalorder %s37, 2
    %s39 = scalar_select %p38, 0, %s37
    %s40 = ssub.s32 %s27, %s39
    %s41 = ssub.s32 %s28, %s35
    %s42 = sor.u32 %s40, %s41
    %p43 = scmp.eq.s32.totalorder %s42, 0
    %s45 = sadd.s32 %s44, 1
    %s46 = scalar_select %p43, %s44, %s45
    %p49 = pneg %p43
    %p50 = scmp.eq.s32.totalorder %s20, 1
    %p51 = por %p49, %p50
    %p52 = scmp.ne.s32.totalorder %s44, %s47
    %p53 = scmp.eq.s32.totalorder %s20, 0
    %p54 = por %p52, %p53
    %p55 = scmp.ne.s32.totalorder %s44, %s47
    %p56 = scmp.eq.s32.totalorder %s25, 1
    %p57 = por %p55, %p56
    %p58 = scmp.ne.s32.totalorder %s47, %s48
    %p59 = scmp.eq.s32.totalorder %s25, 0
    %p60 = por %p58, %p59
    %p61 = scmp.ne.s32.totalorder %s47, %s48
    %p62 = scmp.eq.s32.totalorder %s26, 1
    %p63 = por %p61, %p62
    %p65 = scmp.ne.s32.totalorder %s48, %s64
    %p66 = scmp.eq.s32.totalorder %s26, 0
    %p67 = por %p65, %p66
    %s68 = ssub.s32 %s27, %s39
    %s69 = ssub.s32 %s28, %s35
    %s70 = sor.u32 %s68, %s69
    %p71 = scmp.eq.s32.totalorder %s70, 0
    %s73 = sadd.s32 %s72, 1
    %s74 = scalar_select %p71, %s72, %s73
    %p77 = pneg %p71
    %p78 = scmp.eq.s32.totalorder %s20, 1
    %p79 = por %p77, %p78
    %p80 = scmp.ne.s32.totalorder %s72, %s75
    %p81 = scmp.eq.s32.totalorder %s20, 0
    %p82 = por %p80, %p81
    %p83 = scmp.ne.s32.totalorder %s72, %s75
    %p84 = scmp.eq.s32.totalorder %s25, 1
    %p85 = por %p83, %p84
    %p86 = scmp.ne.s32.totalorder %s75, %s76
    %p87 = scmp.eq.s32.totalorder %s25, 0
    %p88 = por %p86, %p87
    %p89 = scmp.ne.s32.totalorder %s75, %s76
    %p90 = scmp.eq.s32.totalorder %s26, 1
    %p91 = por %p89, %p90
    %p93 = scmp.ne.s32.totalorder %s76, %s92
    %p94 = scmp.eq.s32.totalorder %s26, 0
    %p95 = por %p93, %p94
    %s96 = ssub.s32 %s27, %s39
    %p97 = scmp.eq.s32.totalorder %s96, 0
    %s99 = sadd.s32 %s98, 1
    %s100 = scalar_select %p97, %s98, %s99
    %p103 = pneg %p97
    %p104 = scmp.eq.s32.totalorder %s20, 1
    %p105 = por %p103, %p104
    %p106 = scmp.ne.s32.totalorder %s98, %s101
    %p107 = scmp.eq.s32.totalorder %s20, 0
    %p108 = por %p106, %p107
    %p109 = scmp.ne.s32.totalorder %s98, %s101
    %p110 = scmp.eq.s32.totalorder %s25, 1
    %p111 = por %p109, %p110
    %p112 = scmp.ne.s32.totalorder %s101, %s102
    %p113 = scmp.eq.s32.totalorder %s25, 0
    %p114 = por %p112, %p113
    %p115 = scmp.ne.s32.totalorder %s101, %s102
    %p116 = scmp.eq.s32.totalorder %s26, 1
    %p117 = por %p115, %p116
    %p119 = scmp.ne.s32.totalorder %s102, %s118
    %p120 = scmp.eq.s32.totalorder %s26, 0
    %p121 = por %p119, %p120
    %s122 = ssub.s32 %s27, %s39
    %p123 = scmp.eq.s32.totalorder %s122, 0
    %s125 = sadd.s32 %s124, 1
    %s126 = scalar_select %p123, %s124, %s125
    %p129 = pneg %p123
    %p130 = scmp.eq.s32.totalorder %s20, 1
    %p131 = por %p129, %p130
    %p132 = scmp.ne.s32.totalorder %s124, %s127
    %p133 = scmp.eq.s32.totalorder %s20, 0
    %p134 = por %p132, %p133
    %p135 = scmp.ne.s32.totalorder %s124, %s127
    %p136 = scmp.eq.s32.totalorder %s25, 1
    %p137 = por %p135, %p136
    %p138 = scmp.ne.s32.totalorder %s127, %s128
    %p139 = scmp.eq.s32.totalorder %s25, 0
    %p140 = por %p138, %p139
    %p141 = scmp.ne.s32.totalorder %s127, %s128
    %p142 = scmp.eq.s32.totalorder %s26, 1
    %p143 = por %p141, %p142
    %p145 = scmp.ne.s32.totalorder %s128, %s144
    %p146 = scmp.eq.s32.totalorder %s26, 0
    %p147 = por %p145, %p146
    %s149 = sadd.s32 %s148, 1
    %p152 = scmp.eq.s32.totalorder %s20, 1
    %p153 = scmp.ne.s32.totalorder %s148, %s150
    %p154 = scmp.eq.s32.totalorder %s20, 0
    %p155 = por %p153, %p154
    %p156 = scmp.ne.s32.totalorder %s148, %s150
    %p157 = scmp.eq.s32.totalorder %s25, 1
    %p158 = por %p156, %p157
    %p159 = scmp.ne.s32.totalorder %s150, %s151
    %p160 = scmp.eq.s32.totalorder %s25, 0
    %p161 = por %p159, %p160
    %p162 = scmp.ne.s32.totalorder %s150, %s151
    %p163 = scmp.eq.s32.totalorder %s26, 1
    %p164 = por %p162, %p163
    %p166 = scmp.ne.s32.totalorder %s151, %s165
    %p167 = scmp.eq.s32.totalorder %s26, 0
    %p168 = por %p166, %p167
    %s170 = sadd.s32 %s169, 1
    %p173 = scmp.eq.s32.totalorder %s20, 1
    %p174 = scmp.ne.s32.totalorder %s169, %s171
    %p175 = scmp.eq.s32.totalorder %s20, 0
    %p176 = por %p174, %p175
    %p177 = scmp.ne.s32.totalorder %s169, %s171
    %p178 = scmp.eq.s32.totalorder %s25, 1
    %p179 = por %p177, %p178
    %p180 = scmp.ne.s32.totalorder %s171, %s172
    %p181 = scmp.eq.s32.totalorder %s25, 0
    %p182 = por %p180, %p181
    %p183 = scmp.ne.s32.totalorder %s171, %s172
    %p184 = scmp.eq.s32.totalorder %s26, 1
    %p185 = por %p183, %p184
    %p187 = scmp.ne.s32.totalorder %s172, %s186
    %p188 = scmp.eq.s32.totalorder %s26, 0
    %p189 = por %p187, %p188
    %s191 = sadd.s32 %s190, 1
    %p194 = scmp.eq.s32.totalorder %s20, 1
    %p195 = scmp.ne.s32.totalorder %s190, %s192
    %p196 = scmp.eq.s32.totalorder %s20, 0
    %p197 = por %p195, %p196
    %p198 = scmp.ne.s32.totalorder %s190, %s192
    %p199 = scmp.eq.s32.totalorder %s25, 1
    %p200 = por %p198, %p199
    %p201 = scmp.ne.s32.totalorder %s192, %s193
    %p202 = scmp.eq.s32.totalorder %s25, 0
    %p203 = por %p201, %p202
    %p204 = scmp.ne.s32.totalorder %s192, %s193
    %p205 = scmp.eq.s32.totalorder %s26, 1
    %p206 = por %p204, %p205
    %p208 = scmp.ne.s32.totalorder %s193, %s207
    %p209 = scmp.eq.s32.totalorder %s26, 0
    %p210 = por %p208, %p209
    %s212 = sadd.s32 %s211, 1
    %p215 = scmp.eq.s32.totalorder %s20, 1
    %p216 = scmp.ne.s32.totalorder %s211, %s213
    %p217 = scmp.eq.s32.totalorder %s20, 0
    %p218 = por %p216, %p217
    %p219 = scmp.ne.s32.totalorder %s211, %s213
    %p220 = scmp.eq.s32.totalorder %s25, 1
    %p221 = por %p219, %p220
    %p222 = scmp.ne.s32.totalorder %s213, %s214
    %p223 = scmp.eq.s32.totalorder %s25, 0
    %p224 = por %p222, %p223
    %p225 = scmp.ne.s32.totalorder %s213, %s214
    %p226 = scmp.eq.s32.totalorder %s26, 1
    %p227 = por %p225, %p226
    %p229 = scmp.ne.s32.totalorder %s214, %s228
    %p230 = scmp.eq.s32.totalorder %s26, 0
    %p231 = por %p229, %p230
    %s233 = sadd.s32 %s232, 1
    %p236 = scmp.eq.s32.totalorder %s20, 1
    %p237 = scmp.ne.s32.totalorder %s232, %s234
    %p238 = scmp.eq.s32.totalorder %s20, 0
    %p239 = por %p237, %p238
    %p240 = scmp.ne.s32.totalorder %s232, %s234
    %p241 = scmp.eq.s32.totalorder %s25, 1
    %p242 = por %p240, %p241
    %p243 = scmp.ne.s32.totalorder %s234, %s235
    %p244 = scmp.eq.s32.totalorder %s25, 0
    %p245 = por %p243, %p244
    %p246 = scmp.ne.s32.totalorder %s234, %s235
    %p247 = scmp.eq.s32.totalorder %s26, 1
    %p248 = por %p246, %p247
    %p250 = scmp.ne.s32.totalorder %s235, %s249
    %p251 = scmp.eq.s32.totalorder %s26, 0
    %p252 = por %p250, %p251
    %s254 = sadd.s32 %s253, 1
    %p257 = scmp.eq.s32.totalorder %s20, 1
    %p258 = scmp.ne.s32.totalorder %s253, %s255
    %p259 = scmp.eq.s32.totalorder %s20, 0
    %p260 = por %p258, %p259
    %p261 = scmp.ne.s32.totalorder %s253, %s255
    %p262 = scmp.eq.s32.totalorder %s25, 1
    %p263 = por %p261, %p262
    %p264 = scmp.ne.s32.totalorder %s255, %s256
    %p265 = scmp.eq.s32.totalorder %s25, 0
    %p266 = por %p264, %p265
    %p267 = scmp.ne.s32.totalorder %s255, %s256
    %p268 = scmp.eq.s32.totalorder %s26, 1
    %p269 = por %p267, %p268
    %p271 = scmp.ne.s32.totalorder %s256, %s270
    %p272 = scmp.eq.s32.totalorder %s26, 0
    %p273 = por %p271, %p272
    %s275 = sadd.s32 %s274, 1
    %p278 = scmp.eq.s32.totalorder %s20, 1
    %p279 = scmp.ne.s32.totalorder %s274, %s276
    %p280 = scmp.eq.s32.totalorder %s20, 0
    %p281 = por %p279, %p280
    %p282 = scmp.ne.s32.totalorder %s274, %s276
    %p283 = scmp.eq.s32.totalorder %s25, 1
    %p284 = por %p282, %p283
    %p285 = scmp.ne.s32.totalorder %s276, %s277
    %p286 = scmp.eq.s32.totalorder %s25, 0
    %p287 = por %p285, %p286
    %p288 = scmp.ne.s32.totalorder %s276, %s277
    %p289 = scmp.eq.s32.totalorder %s26, 1
    %p290 = por %p288, %p289
    %p292 = scmp.ne.s32.totalorder %s277, %s291
    %p293 = scmp.eq.s32.totalorder %s26, 0
    %p294 = por %p292, %p293
    %s296 = sadd.s32 %s295, 1
    %p299 = scmp.eq.s32.totalorder %s20, 1
    %p300 = scmp.ne.s32.totalorder %s295, %s297
    %p301 = scmp.eq.s32.totalorder %s20, 0
    %p302 = por %p300, %p301
    %p303 = scmp.ne.s32.totalorder %s295, %s297
    %p304 = scmp.eq.s32.totalorder %s25, 1
    %p305 = por %p303, %p304
    %p306 = scmp.ne.s32.totalorder %s297, %s298
    %p307 = scmp.eq.s32.totalorder %s25, 0
    %p308 = por %p306, %p307
    %p309 = scmp.ne.s32.totalorder %s297, %s298
    %p310 = scmp.eq.s32.totalorder %s26, 1
    %p311 = por %p309, %p310
    %p313 = scmp.ne.s32.totalorder %s298, %s312
    %p314 = scmp.eq.s32.totalorder %s26, 0
    %p315 = por %p313, %p314
    %s317 = sadd.s32 %s316, 1
    %p320 = scmp.eq.s32.totalorder %s20, 1
    %p321 = scmp.ne.s32.totalorder %s316, %s318
    %p322 = scmp.eq.s32.totalorder %s20, 0
    %p323 = por %p321, %p322
    %p324 = scmp.ne.s32.totalorder %s316, %s318
    %p325 = scmp.eq.s32.totalorder %s25, 1
    %p326 = por %p324, %p325
    %p327 = scmp.ne.s32.totalorder %s318, %s319
    %p328 = scmp.eq.s32.totalorder %s25, 0
    %p329 = por %p327, %p328
    %p330 = scmp.ne.s32.totalorder %s318, %s319
    %p331 = scmp.eq.s32.totalorder %s26, 1
    %p332 = por %p330, %p331
    %p334 = scmp.ne.s32.totalorder %s319, %s333
    %p335 = scmp.eq.s32.totalorder %s26, 0
    %p336 = por %p334, %p335
    %s338 = sadd.s32 %s337, 1
    %p341 = scmp.eq.s32.totalorder %s20, 1
    %p342 = scmp.ne.s32.totalorder %s337, %s339
    %p343 = scmp.eq.s32.totalorder %s20, 0
    %p344 = por %p342, %p343
    %p345 = scmp.ne.s32.totalorder %s337, %s339
    %p346 = scmp.eq.s32.totalorder %s25, 1
    %p347 = por %p345, %p346
    %p348 = scmp.ne.s32.totalorder %s339, %s340
    %p349 = scmp.eq.s32.totalorder %s25, 0
    %p350 = por %p348, %p349
    %p351 = scmp.ne.s32.totalorder %s339, %s340
    %p352 = scmp.eq.s32.totalorder %s26, 1
    %p353 = por %p351, %p352
    %p355 = scmp.ne.s32.totalorder %s340, %s354
    %p356 = scmp.eq.s32.totalorder %s26, 0
    %p357 = por %p355, %p356
    %s358 = ssub.s32 %s27, %s39
    %s359 = ssub.s32 %s28, %s35
    %s360 = sor.u32 %s358, %s359
    %p361 = scmp.eq.s32.totalorder %s360, 0
    %s363 = sadd.s32 %s362, 1
    %s364 = scalar_select %p361, %s362, %s363
    %p367 = pneg %p361
    %p368 = scmp.eq.s32.totalorder %s20, 1
    %p369 = por %p367, %p368
    %p370 = scmp.ne.s32.totalorder %s362, %s365
    %p371 = scmp.eq.s32.totalorder %s20, 0
    %p372 = por %p370, %p371
    %p373 = scmp.ne.s32.totalorder %s362, %s365
    %p374 = scmp.eq.s32.totalorder %s25, 1
    %p375 = por %p373, %p374
    %p376 = scmp.ne.s32.totalorder %s365, %s366
    %p377 = scmp.eq.s32.totalorder %s25, 0
    %p378 = por %p376, %p377
    %p379 = scmp.ne.s32.totalorder %s365, %s366
    %p380 = scmp.eq.s32.totalorder %s26, 1
    %p381 = por %p379, %p380
    %p383 = scmp.ne.s32.totalorder %s366, %s382
    %p384 = scmp.eq.s32.totalorder %s26, 0
    %p385 = por %p383, %p384
    %p386 = scmp.le.s32.totalorder 1, %s20
    %p387 = scmp.lt.s32.totalorder %s20, 3
    %p388 = pnand %p386, %p387
    %p389 = pneg %p388
    // Predicated region
    $region9: #{nbest_align_bert_forward.8} parent=5 // pred_check
      _
    $region10: #{nbest_align_bert_forward.8} parent=5 // pred_check_branch
      %391 = sbr.rel (%p388) target = $region12
    $region11: #{nbest_align_bert_forward.8} parent=5 // pred_region
      %s392 = ssub.s32 %s20, 1
      // Predicated region
      $region13: #{nbest_align_bert_forward.8} parent=11 // pred_check
        %p393 = pneg %p161
      $region14: #{nbest_align_bert_forward.8} parent=11 // pred_check_branch
        %395 = sbr.rel (%p393) target = $region16
      $region15: #{nbest_align_bert_forward.8} parent=11 // pred_region
        _
      $region16: #{nbest_align_bert_forward.8} parent=11 // pred_fallthru
        _
      // Predicated region
      $region17: #{nbest_align_bert_forward.8} parent=11 // pred_check
        %p396 = pneg %p182
      $region18: #{nbest_align_bert_forward.8} parent=11 // pred_check_branch
        %398 = sbr.rel (%p396) target = $region20
      $region19: #{nbest_align_bert_forward.8} parent=11 // pred_region
        _
      $region20: #{nbest_align_bert_forward.8} parent=11 // pred_fallthru
        _
      // Predicated region
      $region21: #{nbest_align_bert_forward.8} parent=11 // pred_check
        %p399 = pneg %p203
      $region22: #{nbest_align_bert_forward.8} parent=11 // pred_check_branch
        %401 = sbr.rel (%p399) target = $region24
      $region23: #{nbest_align_bert_forward.8} parent=11 // pred_region
        _
      $region24: #{nbest_align_bert_forward.8} parent=11 // pred_fallthru
        _
      // Predicated region
      $region25: #{nbest_align_bert_forward.8} parent=11 // pred_check
        %p402 = pneg %p224
      $region26: #{nbest_align_bert_forward.8} parent=11 // pred_check_branch
        %404 = sbr.rel (%p402) target = $region28
      $region27: #{nbest_align_bert_forward.8} parent=11 // pred_region
        _
      $region28: #{nbest_align_bert_forward.8} parent=11 // pred_fallthru
        _
      // Predicated region
      $region29: #{nbest_align_bert_forward.8} parent=11 // pred_check
        %p405 = pneg %p245
      $region30: #{nbest_align_bert_forward.8} parent=11 // pred_check_branch
        %407 = sbr.rel (%p405) target = $region32
      $region31: #{nbest_align_bert_forward.8} parent=11 // pred_region
        _
      $region32: #{nbest_align_bert_forward.8} parent=11 // pred_fallthru
        _
      // Predicated region
      $region33: #{nbest_align_bert_forward.8} parent=11 // pred_check
        %p408 = pneg %p266
      $region34: #{nbest_align_bert_forward.8} parent=11 // pred_check_branch
        %410 = sbr.rel (%p408) target = $region36
      $region35: #{nbest_align_bert_forward.8} parent=11 // pred_region
        _
      $region36: #{nbest_align_bert_forward.8} parent=11 // pred_fallthru
        _
      // Predicated region
      $region37: #{nbest_align_bert_forward.8} parent=11 // pred_check
        %p411 = pneg %p287
      $region38: #{nbest_align_bert_forward.8} parent=11 // pred_check_branch
        %413 = sbr.rel (%p411) target = $region40
      $region39: #{nbest_align_bert_forward.8} parent=11 // pred_region
        _
      $region40: #{nbest_align_bert_forward.8} parent=11 // pred_fallthru
        _
      // Predicated region
      $region41: #{nbest_align_bert_forward.8} parent=11 // pred_check
        %p414 = pneg %p308
      $region42: #{nbest_align_bert_forward.8} parent=11 // pred_check_branch
        %416 = sbr.rel (%p414) target = $region44
      $region43: #{nbest_align_bert_forward.8} parent=11 // pred_region
        _
      $region44: #{nbest_align_bert_forward.8} parent=11 // pred_fallthru
        _
      // Predicated region
      $region45: #{nbest_align_bert_forward.8} parent=11 // pred_check
        %p417 = pneg %p329
      $region46: #{nbest_align_bert_forward.8} parent=11 // pred_check_branch
        %419 = sbr.rel (%p417) target = $region48
      $region47: #{nbest_align_bert_forward.8} parent=11 // pred_region
        _
      $region48: #{nbest_align_bert_forward.8} parent=11 // pred_fallthru
        _
      // Predicated region
      $region49: #{nbest_align_bert_forward.8} parent=11 // pred_check
        %p420 = pneg %p350
      $region50: #{nbest_align_bert_forward.8} parent=11 // pred_check_branch
        %422 = sbr.rel (%p420) target = $region52
      $region51: #{nbest_align_bert_forward.8} parent=11 // pred_region
        _
      $region52: #{nbest_align_bert_forward.8} parent=11 // pred_fallthru
        _
    $region12: #{nbest_align_bert_forward.8} parent=5 // pred_fallthru
      _
    %p423 = scmp.lt.s32.totalorder %s20, 2
    // Predicated region
    $region53: #{nbest_align_bert_forward.8} parent=5 // pred_check
      %p424 = pneg %p423
    $region54: #{nbest_align_bert_forward.8} parent=5 // pred_check_branch
      %426 = sbr.rel (%p424) target = $region56
    $region55: #{nbest_align_bert_forward.8} parent=5 // pred_region
      // Predicated region
      $region57: #{nbest_align_bert_forward.8} parent=55 // pred_check
        %p427 = pneg %p54
      $region58: #{nbest_align_bert_forward.8} parent=55 // pred_check_branch
        %429 = sbr.rel (%p427) target = $region60
      $region59: #{nbest_align_bert_forward.8} parent=55 // pred_region
        %s430 = smul.u32 2, %s28
        %p431 = scmp.lt.s32.totalorder %s27, 1
        %s432 = scalar_select %p431, %s27, 1
        %p433 = scmp.lt.s32.totalorder %s430, 1
        %s434 = scalar_select %p433, %s430, 1
        %s435 = smul.addr %s432, 2
        %s436 = sadd.s32 %s434, %s435
        %s437 = smul.addr %s436, 4
        %s438 = scalar_lea.vmem %s0, %s437
        %s439 = smul.u32 2, %s28
      $region60: #{nbest_align_bert_forward.8} parent=55 // pred_fallthru
        _
      // Predicated region
      $region61: #{nbest_align_bert_forward.8} parent=55 // pred_check
        %p440 = pneg %p82
      $region62: #{nbest_align_bert_forward.8} parent=55 // pred_check_branch
        %442 = sbr.rel (%p440) target = $region64
      $region63: #{nbest_align_bert_forward.8} parent=55 // pred_region
        %s443 = smul.u32 2, %s28
        %p444 = scmp.lt.s32.totalorder %s27, 1
        %s445 = scalar_select %p444, %s27, 1
        %p446 = scmp.lt.s32.totalorder %s443, 1
        %s447 = scalar_select %p446, %s443, 1
        %s448 = smul.addr %s445, 2
        %s449 = sadd.s32 %s447, %s448
        %s450 = smul.addr %s449, 4
        %s451 = scalar_lea.vmem %s1, %s450
        %s452 = smul.u32 2, %s28
      $region64: #{nbest_align_bert_forward.8} parent=55 // pred_fallthru
        _
      // Predicated region
      $region65: #{nbest_align_bert_forward.8} parent=55 // pred_check
        %p453 = pneg %p108
      $region66: #{nbest_align_bert_forward.8} parent=55 // pred_check_branch
        %455 = sbr.rel (%p453) target = $region68
      $region67: #{nbest_align_bert_forward.8} parent=55 // pred_region
        %p456 = scmp.lt.s32.totalorder %s27, 1
        %s457 = scalar_select %p456, %s27, 1
        %s458 = smul.addr %s457, 2
        %s459 = smul.addr %s458, 4
        %s460 = scalar_lea.vmem %s2, %s459
      $region68: #{nbest_align_bert_forward.8} parent=55 // pred_fallthru
        _
      // Predicated region
      $region69: #{nbest_align_bert_forward.8} parent=55 // pred_check
        %p461 = pneg %p134
      $region70: #{nbest_align_bert_forward.8} parent=55 // pred_check_branch
        %463 = sbr.rel (%p461) target = $region72
      $region71: #{nbest_align_bert_forward.8} parent=55 // pred_region
        %p464 = scmp.lt.s32.totalorder %s27, 1
        %s465 = scalar_select %p464, %s27, 1
        %s466 = scalar_lea.vmem %s3, %s465
      $region72: #{nbest_align_bert_forward.8} parent=55 // pred_fallthru
        _
    $region56: #{nbest_align_bert_forward.8} parent=5 // pred_fallthru
      _
    %p467 = scmp.le.s32.totalorder 1, %s20
    %p468 = scmp.lt.s32.totalorder %s20, 3
    %p469 = pnand %p467, %p468
    %p470 = pneg %p469
    // Predicated region
    $region73: #{nbest_align_bert_forward.8} parent=5 // pred_check
      _
    $region74: #{nbest_align_bert_forward.8} parent=5 // pred_check_branch
      %472 = sbr.rel (%p469) target = $region76
    $region75: #{nbest_align_bert_forward.8} parent=5 // pred_region
      %s473 = ssub.s32 %s20, 1
      %s474 = smul.u32 2, %s30
      %p475 = scmp.lt.s32.totalorder %s29, 1
      %s476 = scalar_select %p475, %s29, 1
      %p477 = scmp.lt.s32.totalorder %s474, 1
      %s478 = scalar_select %p477, %s474, 1
      %s479 = smul.addr %s476, 2
      %s480 = sadd.s32 %s478, %s479
      %s481 = smul.addr %s480, 4
      %s482 = scalar_lea.vmem %s0, %s481
      %p483 = pneg %p60
      %p484 = pneg %p57
      %s485 = smul.u32 2, %s30
      %p486 = scmp.lt.s32.totalorder %s29, 1
      %s487 = scalar_select %p486, %s29, 1
      %p488 = scmp.lt.s32.totalorder %s485, 1
      %s489 = scalar_select %p488, %s485, 1
      %s490 = smul.addr %s487, 2
      %s491 = sadd.s32 %s489, %s490
      %s492 = smul.addr %s491, 4
      %s493 = scalar_lea.vmem %s1, %s492
      %p494 = pneg %p88
      %p495 = pneg %p85
      %p496 = scmp.lt.s32.totalorder %s29, 1
      %s497 = scalar_select %p496, %s29, 1
      %s498 = smul.addr %s497, 2
      %s499 = smul.addr %s498, 4
      %s500 = scalar_lea.vmem %s2, %s499
      %p501 = pneg %p114
      %p502 = pneg %p111
      %p503 = scmp.lt.s32.totalorder %s29, 1
      %s504 = scalar_select %p503, %s29, 1
      %s505 = scalar_lea.vmem %s3, %s504
      %p506 = pneg %p140
      %p507 = pneg %p137
      %p508 = pneg %p161
      %p509 = pneg %p158
      %p510 = pneg %p182
      %p511 = pneg %p179
      %p512 = pneg %p203
      %p513 = pneg %p200
      %p514 = pneg %p224
      %p515 = pneg %p221
      %p516 = pneg %p245
      %p517 = pneg %p242
      %p518 = pneg %p266
      %p519 = pneg %p263
      %p520 = pneg %p287
      %p521 = pneg %p284
      %p522 = pneg %p308
      %p523 = pneg %p305
      %p524 = pneg %p329
      %p525 = pneg %p326
      %p526 = pneg %p350
      %p527 = pneg %p347
      %p528 = pneg %p378
      %p529 = pneg %p375
      %s530 = smul.u32 2, %s30
      %p531 = scmp.lt.s32.totalorder %s29, 1
      %s532 = scalar_select %p531, %s29, 1
      %p533 = scmp.lt.s32.totalorder %s530, 1
      %s534 = scalar_select %p533, %s530, 1
      %s535 = smul.addr %s532, 2
      %s536 = sadd.s32 %s534, %s535
      %s537 = smul.addr %s536, 4
      %s538 = scalar_lea.vmem %s14, %s537
      %s539 = smul.u32 2, %s30
      %p540 = scmp.lt.s32.totalorder %s29, 1
      %s541 = scalar_select %p540, %s29, 1
      %p542 = scmp.lt.s32.totalorder %s539, 1
      %s543 = scalar_select %p542, %s539, 1
      %s544 = smul.addr %s541, 2
      %s545 = sadd.s32 %s543, %s544
      %s546 = smul.addr %s545, 4
      %s547 = scalar_lea.vmem %s0, %s546
      %s548 = smul.u32 2, %s30
      %s549 = smul.u32 2, %s30
      %p550 = scmp.lt.s32.totalorder %s29, 1
      %s551 = scalar_select %p550, %s29, 1
      %p552 = scmp.lt.s32.totalorder %s549, 1
      %s553 = scalar_select %p552, %s549, 1
      %s554 = smul.addr %s551, 2
      %s555 = sadd.s32 %s553, %s554
      %s556 = smul.addr %s555, 4
      %s557 = scalar_lea.vmem %s1, %s556
      %s558 = smul.u32 2, %s30
      %p559 = scmp.lt.s32.totalorder %s29, 1
      %s560 = scalar_select %p559, %s29, 1
      %s561 = smul.addr %s560, 2
      %s562 = smul.addr %s561, 4
      %s563 = scalar_lea.vmem %s2, %s562
      %p564 = scmp.lt.s32.totalorder %s29, 1
      %s565 = scalar_select %p564, %s29, 1
      %s566 = scalar_lea.vmem %s3, %s565
      %s567 = smul.u32 2, %s30
      %p568 = scmp.lt.s32.totalorder %s29, 1
      %s569 = scalar_select %p568, %s29, 1
      %p570 = scmp.lt.s32.totalorder %s567, 1
      %s571 = scalar_select %p570, %s567, 1
      %s572 = smul.addr %s569, 2
      %s573 = sadd.s32 %s571, %s572
      %s574 = smul.addr %s573, 4
      %s575 = scalar_lea.vmem %s14, %s574
      %s576 = smul.u32 2, %s30
      %v578 = vld [vmem:[%s547] sm:$0xf]
      %v579 = vld [vmem:[%s547 + $0x4] sm:$0xf]
      %v580 = vld [vmem:[%s557] sm:$0xf]
      %v581 = vld [vmem:[%s557 + $0x4] sm:$0xf]
      %v582 = vld [vmem:[%s563] sm:$0xf]
      %v583 = vld [vmem:[%s563 + $0x4] sm:$0xf]
      %v584 = vld [vmem:[%s566] sm:$0x1]
      %v587 = vunpack.c.l.b16 %v580
      %v588 = vunpack.c.l.b16 %v581
      %v589 = vpack.c.b16 %v588, %v587
      %v592 = vunpack.c.l.b16 %v582
      %v593 = vunpack.c.l.b16 %v583
      %v594 = vpack.c.b16 %v593, %v592
      %vm595 = vcmask 64512
      %v597 = vsel %vm595, %v589, 0
      %v600 = vsel %vm595, %v594, 0
      %602 = vmatprep.subr.bf16.mxu0 0
      %603 = vmatpush1.bf16.xpose.msra.mxu0 %v600
      %604 = vmatprep.subr.bf16.mxu0 0
      %605 = vmatpush1.bf16.xpose.msra.mxu0 0
      %606 = vmatprep.subr.bf16.mxu0 0
      %607 = vmatpush1.bf16.xpose.msra.mxu0 0
      %608 = vmatprep.subr.bf16.mxu0 0
      %609 = vmatpush1.bf16.xpose.msra.mxu0 0
      %610 = vmatprep.subr.bf16.mxu0 0
      %611 = vmatpush1.bf16.xpose.msra.mxu0 0
      %612 = vmatprep.subr.bf16.mxu0 0
      %613 = vmatpush1.bf16.xpose.msra.mxu0 0
      %614 = vmatprep.subr.bf16.mxu0 0
      %615 = vmatpush1.bf16.xpose.msra.mxu0 0
      %616 = vmatprep.subr.bf16.mxu0 0
      %617 = vmatpush1.bf16.xpose.msra.mxu0 0
      %618 = vmatprep.subr.bf16.mxu0 0
      %619 = vmatpush1.bf16.xpose.msra.mxu0 0
      %620 = vmatprep.subr.bf16.mxu0 0
      %621 = vmatpush1.bf16.xpose.msra.mxu0 0
      %622 = vmatprep.subr.bf16.mxu0 0
      %623 = vmatpush1.bf16.xpose.msra.mxu0 0
      %624 = vmatprep.subr.bf16.mxu0 0
      %625 = vmatpush1.bf16.xpose.msra.mxu0 0
      %626 = vmatprep.subr.bf16.mxu0 0
      %627 = vmatpush1.bf16.xpose.msra.mxu0 0
      %628 = vmatprep.subr.bf16.mxu0 0
      %629 = vmatpush1.bf16.xpose.msra.mxu0 0
      %630 = vmatprep.subr.bf16.mxu0 0
      %631 = vmatpush1.bf16.xpose.msra.mxu0 0
      %632 = vmatprep.subr.bf16.mxu0 0
      %633 = vmatpush1.bf16.xpose.msra.mxu0 0
      %634 = vmatprep.mubr.bf16.mxu0 0
      %635 = vmatmul.mubr.bf16.gmra.mrb[0].mxu0 %v597
      %v636 = vpop.f32.mrb[0].mxu0
      %v637 = vadd.f32 0.0, %v636
      %v638 = vpop.f32.mrb[0].mxu0
      %v639 = vpop.f32.mrb[0].mxu0
      %v640 = vadd.f32 0.0, %v639
      %v641 = vpop.f32.mrb[0].mxu0
      %642 = vdwg.mxu0
      %v643 = vmul.f32 %v637, 0.35355338
      %v644 = vmul.f32 %v640, 0.35355338
      %v646 = vlaneseq
      %v647 = vshrl.u32 %v646, 7
      %v648 = vsub.s32 0, %v647
      %v649 = vrot.slane %v584, %v648
      %v651 = vadd.f32 %v643, %v649
      %v652 = vadd.f32 %v644, %v649
      %vm653 = vcmask 130048
      %v654 = vsel %vm653, %v651, -inf
      %655 = vmax.xlane.f32.xlu0 %v654
      %v656 = vpop.xlane.xlu0 %655
      %v657 = vsel %vm653, %v652, -inf
      %658 = vmax.xlane.f32.xlu0 %v657
      %v659 = vpop.xlane.xlu0 %658
      %v660 = vsub.f32 %v651, %v656
      %v661 = vsub.f32 %v652, %v659
      %v662 = vmul.f32 %v660, 1.442695
      %v663 = vpow.pop %v662
      %v664 = vmul.f32 %v661, 1.442695
      %v665 = vpow.pop %v664
      %v666 = vsel %vm653, %v663, 0.0
      %667 = vadd.xlane.f32.xlu0 %v666
      %v668 = vpop.xlane.xlu0 %667
      %v669 = vsel %vm653, %v665, 0.0
      %670 = vadd.xlane.f32.xlu0 %v669
      %v671 = vpop.xlane.xlu0 %670
      %v672 = vrcp.pop %v668
      %v673 = vmul.f32 %v663, %v672
      %v674 = vrcp.pop %v671
      %v675 = vmul.f32 %v665, %v674
      %v676 = vpack.c.bf16 %v675, %v673
      %677 = vrot.lane.b32.xlu0 %v594, 96
      %v678 = vpop.permute.xlu0 %677
      %v681 = vsel %vm653, %v676, 0
      %683 = vmatprep.subr.bf16.mxu0 0
      %684 = vmatpush1.bf16.msra.mxu0 %v678
      %685 = vmatprep.subr.bf16.mxu0 0
      %686 = vmatpush1.bf16.msra.mxu0 0
      %687 = vmatprep.subr.bf16.mxu0 0
      %688 = vmatpush1.bf16.msra.mxu0 0
      %689 = vmatprep.subr.bf16.mxu0 0
      %690 = vmatpush1.bf16.msra.mxu0 0
      %691 = vmatprep.subr.bf16.mxu0 0
      %692 = vmatpush1.bf16.msra.mxu0 0
      %693 = vmatprep.subr.bf16.mxu0 0
      %694 = vmatpush1.bf16.msra.mxu0 0
      %695 = vmatprep.subr.bf16.mxu0 0
      %696 = vmatpush1.bf16.msra.mxu0 0
      %697 = vmatprep.subr.bf16.mxu0 0
      %698 = vmatpush1.bf16.msra.mxu0 0
      %699 = vmatprep.subr.bf16.mxu0 0
      %700 = vmatpush1.bf16.msra.mxu0 0
      %701 = vmatprep.subr.bf16.mxu0 0
      %702 = vmatpush1.bf16.msra.mxu0 0
      %703 = vmatprep.subr.bf16.mxu0 0
      %704 = vmatpush1.bf16.msra.mxu0 0
      %705 = vmatprep.subr.bf16.mxu0 0
      %706 = vmatpush1.bf16.msra.mxu0 0
      %707 = vmatprep.subr.bf16.mxu0 0
      %708 = vmatpush1.bf16.msra.mxu0 0
      %709 = vmatprep.subr.bf16.mxu0 0
      %710 = vmatpush1.bf16.msra.mxu0 0
      %711 = vmatprep.subr.bf16.mxu0 0
      %712 = vmatpush1.bf16.msra.mxu0 0
      %713 = vmatprep.subr.bf16.mxu0 0
      %714 = vmatpush1.bf16.msra.mxu0 0
      %715 = vmatprep.mubr.bf16.mxu0 0
      %716 = vmatmul.mubr.bf16.gmra.mrb[0].mxu0 %v681
      %v717 = vpop.f32.mrb[0].mxu0
      %v718 = vadd.f32 0.0, %v717
      %v719 = vpop.f32.mrb[0].mxu0
      %v720 = vpop.f32.mrb[0].mxu0
      %v721 = vadd.f32 0.0, %v720
      %v722 = vpop.f32.mrb[0].mxu0
      %723 = vdwg.mxu0
      %v724 = vpack.c.bf16 %v721, %v718
      %v725 = vld [vmem:[%s4] sm:$0xf]
      %726 = vrot.lane.b32.xlu0 %v589, 120
      %v727 = vpop.permute.xlu0 %726
      %728 = vrot.lane.b32.xlu0 %v594, 120
      %v729 = vpop.permute.xlu0 %728
      %v731 = vsel %vm595, %v727, 0
      %v734 = vsel %vm595, %v729, 0
      %736 = vmatprep.subr.bf16.mxu0 0
      %737 = vmatpush1.bf16.xpose.msra.mxu0 %v734
      %738 = vmatprep.subr.bf16.mxu0 0
      %739 = vmatpush1.bf16.xpose.msra.mxu0 0
      %740 = vmatprep.subr.bf16.mxu0 0
      %741 = vmatpush1.bf16.xpose.msra.mxu0 0
      %742 = vmatprep.subr.bf16.mxu0 0
      %743 = vmatpush1.bf16.xpose.msra.mxu0 0
      %744 = vmatprep.subr.bf16.mxu0 0
      %745 = vmatpush1.bf16.xpose.msra.mxu0 0
      %746 = vmatprep.subr.bf16.mxu0 0
      %747 = vmatpush1.bf16.xpose.msra.mxu0 0
      %748 = vmatprep.subr.bf16.mxu0 0
      %749 = vmatpush1.bf16.xpose.msra.mxu0 0
      %750 = vmatprep.subr.bf16.mxu0 0
      %751 = vmatpush1.bf16.xpose.msra.mxu0 0
      %752 = vmatprep.subr.bf16.mxu0 0
      %753 = vmatpush1.bf16.xpose.msra.mxu0 0
      %754 = vmatprep.subr.bf16.mxu0 0
      %755 = vmatpush1.bf16.xpose.msra.mxu0 0
      %756 = vmatprep.subr.bf16.mxu0 0
      %757 = vmatpush1.bf16.xpose.msra.mxu0 0
      %758 = vmatprep.subr.bf16.mxu0 0
      %759 = vmatpush1.bf16.xpose.msra.mxu0 0
      %760 = vmatprep.subr.bf16.mxu0 0
      %761 = vmatpush1.bf16.xpose.msra.mxu0 0
      %762 = vmatprep.subr.bf16.mxu0 0
      %763 = vmatpush1.bf16.xpose.msra.mxu0 0
      %764 = vmatprep.subr.bf16.mxu0 0
      %765 = vmatpush1.bf16.xpose.msra.mxu0 0
      %766 = vmatprep.subr.bf16.mxu0 0
      %767 = vmatpush1.bf16.xpose.msra.mxu0 0
      %768 = vmatprep.mubr.bf16.mxu0 0
      %769 = vmatmul.mubr.bf16.gmra.mrb[0].mxu0 %v731
      %v770 = vpop.f32.mrb[0].mxu0
      %v771 = vadd.f32 0.0, %v770
      %v772 = vpop.f32.mrb[0].mxu0
      %v773 = vpop.f32.mrb[0].mxu0
      %v774 = vadd.f32 0.0, %v773
      %v775 = vpop.f32.mrb[0].mxu0
      %776 = vdwg.mxu0
      %v777 = vmul.f32 %v771, 0.35355338
      %v778 = vmul.f32 %v774, 0.35355338
      %v779 = vadd.f32 %v777, %v649
      %v780 = vadd.f32 %v778, %v649
      %v781 = vsel %vm653, %v779, -inf
      %782 = vmax.xlane.f32.xlu0 %v781
      %v783 = vpop.xlane.xlu0 %782
      %v784 = vsel %vm653, %v780, -inf
      %785 = vmax.xlane.f32.xlu0 %v784
      %v786 = vpop.xlane.xlu0 %785
      %v787 = vsub.f32 %v779, %v783
      %v788 = vsub.f32 %v780, %v786
      %v789 = vmul.f32 %v787, 1.442695
      %v790 = vpow.pop %v789
      %v791 = vmul.f32 %v788, 1.442695
      %v792 = vpow.pop %v791
      %v793 = vsel %vm653, %v790, 0.0
      %794 = vadd.xlane.f32.xlu0 %v793
      %v795 = vpop.xlane.xlu0 %794
      %v796 = vsel %vm653, %v792, 0.0
      %797 = vadd.xlane.f32.xlu0 %v796
      %v798 = vpop.xlane.xlu0 %797
      %v799 = vrcp.pop %v795
      %v800 = vmul.f32 %v790, %v799
      %v801 = vrcp.pop %v798
      %v802 = vmul.f32 %v792, %v801
      %v803 = vpack.c.bf16 %v802, %v800
      %804 = vrot.lane.b32.xlu0 %v594, 88
      %v805 = vpop.permute.xlu0 %804
      %v808 = vsel %vm653, %v803, 0
      %810 = vmatprep.subr.bf16.mxu0 0
      %811 = vmatpush1.bf16.msra.mxu0 %v805
      %812 = vmatprep.subr.bf16.mxu0 0
      %813 = vmatpush1.bf16.msra.mxu0 0
      %814 = vmatprep.subr.bf16.mxu0 0
      %815 = vmatpush1.bf16.msra.mxu0 0
      %816 = vmatprep.subr.bf16.mxu0 0
      %817 = vmatpush1.bf16.msra.mxu0 0
      %818 = vmatprep.subr.bf16.mxu0 0
      %819 = vmatpush1.bf16.msra.mxu0 0
      %820 = vmatprep.subr.bf16.mxu0 0
      %821 = vmatpush1.bf16.msra.mxu0 0
      %822 = vmatprep.subr.bf16.mxu0 0
      %823 = vmatpush1.bf16.msra.mxu0 0
      %824 = vmatprep.subr.bf16.mxu0 0
      %825 = vmatpush1.bf16.msra.mxu0 0
      %826 = vmatprep.subr.bf16.mxu0 0
      %827 = vmatpush1.bf16.msra.mxu0 0
      %828 = vmatprep.subr.bf16.mxu0 0
      %829 = vmatpush1.bf16.msra.mxu0 0
      %830 = vmatprep.subr.bf16.mxu0 0
      %831 = vmatpush1.bf16.msra.mxu0 0
      %832 = vmatprep.subr.bf16.mxu0 0
      %833 = vmatpush1.bf16.msra.mxu0 0
      %834 = vmatprep.subr.bf16.mxu0 0
      %835 = vmatpush1.bf16.msra.mxu0 0
      %836 = vmatprep.subr.bf16.mxu0 0
      %837 = vmatpush1.bf16.msra.mxu0 0
      %838 = vmatprep.subr.bf16.mxu0 0
      %839 = vmatpush1.bf16.msra.mxu0 0
      %840 = vmatprep.subr.bf16.mxu0 0
      %841 = vmatpush1.bf16.msra.mxu0 0
      %842 = vmatprep.mubr.bf16.mxu0 0
      %843 = vmatmul.mubr.bf16.gmra.mrb[0].mxu0 %v808
      %v844 = vpop.f32.mrb[0].mxu0
      %v845 = vadd.f32 0.0, %v844
      %v846 = vpop.f32.mrb[0].mxu0
      %v847 = vpop.f32.mrb[0].mxu0
      %v848 = vadd.f32 0.0, %v847
      %v849 = vpop.f32.mrb[0].mxu0
      %850 = vdwg.mxu0
      %v851 = vpack.c.bf16 %v848, %v845
      %s852 = scalar_lea.vmem %s4, 4
      %v853 = vld [vmem:[%s852] sm:$0xf]
      %v855 = vsel %vm595, %v851, 0
      %vm857 = vcmask 1043456
      %v859 = vsel %vm857, %v853, 0
      %861 = vmatprep.subr.bf16.mxu0 0
      %862 = vmatpush1.bf16.msra.mxu0 %v859
      %863 = vmatprep.subr.bf16.mxu0 0
      %864 = vmatpush1.bf16.msra.mxu0 0
      %865 = vmatprep.subr.bf16.mxu0 0
      %866 = vmatpush1.bf16.msra.mxu0 0
      %867 = vmatprep.subr.bf16.mxu0 0
      %868 = vmatpush1.bf16.msra.mxu0 0
      %869 = vmatprep.subr.bf16.mxu0 0
      %870 = vmatpush1.bf16.msra.mxu0 0
      %871 = vmatprep.subr.bf16.mxu0 0
      %872 = vmatpush1.bf16.msra.mxu0 0
      %873 = vmatprep.subr.bf16.mxu0 0
      %874 = vmatpush1.bf16.msra.mxu0 0
      %875 = vmatprep.subr.bf16.mxu0 0
      %876 = vmatpush1.bf16.msra.mxu0 0
      %877 = vmatprep.subr.bf16.mxu0 0
      %878 = vmatpush1.bf16.msra.mxu0 0
      %879 = vmatprep.subr.bf16.mxu0 0
      %880 = vmatpush1.bf16.msra.mxu0 0
      %881 = vmatprep.subr.bf16.mxu0 0
      %882 = vmatpush1.bf16.msra.mxu0 0
      %883 = vmatprep.subr.bf16.mxu0 0
      %884 = vmatpush1.bf16.msra.mxu0 0
      %885 = vmatprep.subr.bf16.mxu0 0
      %886 = vmatpush1.bf16.msra.mxu0 0
      %887 = vmatprep.subr.bf16.mxu0 0
      %888 = vmatpush1.bf16.msra.mxu0 0
      %889 = vmatprep.subr.bf16.mxu0 0
      %890 = vmatpush1.bf16.msra.mxu0 0
      %891 = vmatprep.subr.bf16.mxu0 0
      %892 = vmatpush1.bf16.msra.mxu0 0
      %893 = vmatprep.mubr.bf16.mxu0 0
      %894 = vmatmul.mubr.bf16.gmra.mrb[0].mxu0 %v855
      %v895 = vpop.f32.mrb[0].mxu0
      %v896 = vadd.f32 0.0, %v895
      %v897 = vpop.f32.mrb[0].mxu0
      %v898 = vpop.f32.mrb[0].mxu0
      %v899 = vadd.f32 0.0, %v898
      %v900 = vpop.f32.mrb[0].mxu0
      %901 = vdwg.mxu0
      %v903 = vsel %vm595, %v724, 0
      %v906 = vsel %vm857, %v725, 0
      %908 = vmatprep.subr.bf16.mxu0 0
      %909 = vmatpush1.bf16.msra.mxu0 %v906
      %910 = vmatprep.subr.bf16.mxu0 0
      %911 = vmatpush1.bf16.msra.mxu0 0
      %912 = vmatprep.subr.bf16.mxu0 0
      %913 = vmatpush1.bf16.msra.mxu0 0
      %914 = vmatprep.subr.bf16.mxu0 0
      %915 = vmatpush1.bf16.msra.mxu0 0
      %916 = vmatprep.subr.bf16.mxu0 0
      %917 = vmatpush1.bf16.msra.mxu0 0
      %918 = vmatprep.subr.bf16.mxu0 0
      %919 = vmatpush1.bf16.msra.mxu0 0
      %920 = vmatprep.subr.bf16.mxu0 0
      %921 = vmatpush1.bf16.msra.mxu0 0
      %922 = vmatprep.subr.bf16.mxu0 0
      %923 = vmatpush1.bf16.msra.mxu0 0
      %924 = vmatprep.subr.bf16.mxu0 0
      %925 = vmatpush1.bf16.msra.mxu0 0
      %926 = vmatprep.subr.bf16.mxu0 0
      %927 = vmatpush1.bf16.msra.mxu0 0
      %928 = vmatprep.subr.bf16.mxu0 0
      %929 = vmatpush1.bf16.msra.mxu0 0
      %930 = vmatprep.subr.bf16.mxu0 0
      %931 = vmatpush1.bf16.msra.mxu0 0
      %932 = vmatprep.subr.bf16.mxu0 0
      %933 = vmatpush1.bf16.msra.mxu0 0
      %934 = vmatprep.subr.bf16.mxu0 0
      %935 = vmatpush1.bf16.msra.mxu0 0
      %936 = vmatprep.subr.bf16.mxu0 0
      %937 = vmatpush1.bf16.msra.mxu0 0
      %938 = vmatprep.subr.bf16.mxu0 0
      %939 = vmatpush1.bf16.msra.mxu0 0
      %940 = vmatprep.mubr.bf16.mxu0 0
      %941 = vmatmul.mubr.bf16.gmra.mrb[0].mxu0 %v903
      %v942 = vpop.f32.mrb[0].mxu0
      %v943 = vadd.f32 %v896, %v942
      %v944 = vpop.f32.mrb[0].mxu0
      %v945 = vpop.f32.mrb[0].mxu0
      %v946 = vadd.f32 %v899, %v945
      %v947 = vpop.f32.mrb[0].mxu0
      %948 = vdwg.mxu0
      %949 = vrot.lane.b32.xlu0 %v589, 112
      %v950 = vpop.permute.xlu0 %949
      %951 = vrot.lane.b32.xlu0 %v594, 112
      %v952 = vpop.permute.xlu0 %951
      %v954 = vsel %vm595, %v950, 0
      %v957 = vsel %vm595, %v952, 0
      %959 = vmatprep.subr.bf16.mxu0 0
      %960 = vmatpush1.bf16.xpose.msra.mxu0 %v957
      %961 = vmatprep.subr.bf16.mxu0 0
      %962 = vmatpush1.bf16.xpose.msra.mxu0 0
      %963 = vmatprep.subr.bf16.mxu0 0
      %964 = vmatpush1.bf16.xpose.msra.mxu0 0
      %965 = vmatprep.subr.bf16.mxu0 0
      %966 = vmatpush1.bf16.xpose.msra.mxu0 0
      %967 = vmatprep.subr.bf16.mxu0 0
      %968 = vmatpush1.bf16.xpose.msra.mxu0 0
      %969 = vmatprep.subr.bf16.mxu0 0
      %970 = vmatpush1.bf16.xpose.msra.mxu0 0
      %971 = vmatprep.subr.bf16.mxu0 0
      %972 = vmatpush1.bf16.xpose.msra.mxu0 0
      %973 = vmatprep.subr.bf16.mxu0 0
      %974 = vmatpush1.bf16.xpose.msra.mxu0 0
      %975 = vmatprep.subr.bf16.mxu0 0
      %976 = vmatpush1.bf16.xpose.msra.mxu0 0
      %977 = vmatprep.subr.bf16.mxu0 0
      %978 = vmatpush1.bf16.xpose.msra.mxu0 0
      %979 = vmatprep.subr.bf16.mxu0 0
      %980 = vmatpush1.bf16.xpose.msra.mxu0 0
      %981 = vmatprep.subr.bf16.mxu0 0
      %982 = vmatpush1.bf16.xpose.msra.mxu0 0
      %983 = vmatprep.subr.bf16.mxu0 0
      %984 = vmatpush1.bf16.xpose.msra.mxu0 0
      %985 = vmatprep.subr.bf16.mxu0 0
      %986 = vmatpush1.bf16.xpose.msra.mxu0 0
      %987 = vmatprep.subr.bf16.mxu0 0
      %988 = vmatpush1.bf16.xpose.msra.mxu0 0
      %989 = vmatprep.subr.bf16.mxu0 0
      %990 = vmatpush1.bf16.xpose.msra.mxu0 0
      %991 = vmatprep.mubr.bf16.mxu0 0
      %992 = vmatmul.mubr.bf16.gmra.mrb[0].mxu0 %v954
      %v993 = vpop.f32.mrb[0].mxu0
      %v994 = vadd.f32 0.0, %v993
      %v995 = vpop.f32.mrb[0].mxu0
      %v996 = vpop.f32.mrb[0].mxu0
      %v997 = vadd.f32 0.0, %v996
      %v998 = vpop.f32.mrb[0].mxu0
      %999 = vdwg.mxu0
      %v1000 = vmul.f32 %v994, 0.35355338
      %v1001 = vmul.f32 %v997, 0.35355338
      %v1002 = vadd.f32 %v1000, %v649
      %v1003 = vadd.f32 %v1001, %v649
      %v1004 = vsel %vm653, %v1002, -inf
      %1005 = vmax.xlane.f32.xlu0 %v1004
      %v1006 = vpop.xlane.xlu0 %1005
      %v1007 = vsel %vm653, %v1003, -inf
      %1008 = vmax.xlane.f32.xlu0 %v1007
      %v1009 = vpop.xlane.xlu0 %1008
      %v1010 = vsub.f32 %v1002, %v1006
      %v1011 = vsub.f32 %v1003, %v1009
      %v1012 = vmul.f32 %v1010, 1.442695
      %v1013 = vpow.pop %v1012
      %v1014 = vmul.f32 %v1011, 1.442695
      %v1015 = vpow.pop %v1014
      %v1016 = vsel %vm653, %v1013, 0.0
      %1017 = vadd.xlane.f32.xlu0 %v1016
      %v1018 = vpop.xlane.xlu0 %1017
      %v1019 = vsel %vm653, %v1015, 0.0
      %1020 = vadd.xlane.f32.xlu0 %v1019
      %v1021 = vpop.xlane.xlu0 %1020
      %v1022 = vrcp.pop %v1018
      %v1023 = vmul.f32 %v1013, %v1022
      %v1024 = vrcp.pop %v1021
      %v1025 = vmul.f32 %v1015, %v1024
      %v1026 = vpack.c.bf16 %v1025, %v1023
      %1027 = vrot.lane.b32.xlu0 %v594, 80
      %v1028 = vpop.permute.xlu0 %1027
      %v1031 = vsel %vm653, %v1026, 0
      %1033 = vmatprep.subr.bf16.mxu0 0
      %1034 = vmatpush1.bf16.msra.mxu0 %v1028
      %1035 = vmatprep.subr.bf16.mxu0 0
      %1036 = vmatpush1.bf16.msra.mxu0 0
      %1037 = vmatprep.subr.bf16.mxu0 0
      %1038 = vmatpush1.bf16.msra.mxu0 0
      %1039 = vmatprep.subr.bf16.mxu0 0
      %1040 = vmatpush1.bf16.msra.mxu0 0
      %1041 = vmatprep.subr.bf16.mxu0 0
      %1042 = vmatpush1.bf16.msra.mxu0 0
      %1043 = vmatprep.subr.bf16.mxu0 0
      %1044 = vmatpush1.bf16.msra.mxu0 0
      %1045 = vmatprep.subr.bf16.mxu0 0
      %1046 = vmatpush1.bf16.msra.mxu0 0
      %1047 = vmatprep.subr.bf16.mxu0 0
      %1048 = vmatpush1.bf16.msra.mxu0 0
      %1049 = vmatprep.subr.bf16.mxu0 0
      %1050 = vmatpush1.bf16.msra.mxu0 0
      %1051 = vmatprep.subr.bf16.mxu0 0
      %1052 = vmatpush1.bf16.msra.mxu0 0
      %1053 = vmatprep.subr.bf16.mxu0 0
      %1054 = vmatpush1.bf16.msra.mxu0 0
      %1055 = vmatprep.subr.bf16.mxu0 0
      %1056 = vmatpush1.bf16.msra.mxu0 0
      %1057 = vmatprep.subr.bf16.mxu0 0
      %1058 = vmatpush1.bf16.msra.mxu0 0
      %1059 = vmatprep.subr.bf16.mxu0 0
      %1060 = vmatpush1.bf16.msra.mxu0 0
      %1061 = vmatprep.subr.bf16.mxu0 0
      %1062 = vmatpush1.bf16.msra.mxu0 0
      %1063 = vmatprep.subr.bf16.mxu0 0
      %1064 = vmatpush1.bf16.msra.mxu0 0
      %1065 = vmatprep.mubr.bf16.mxu0 0
      %1066 = vmatmul.mubr.bf16.gmra.mrb[0].mxu0 %v1031
      %v1067 = vpop.f32.mrb[0].mxu0
      %v1068 = vadd.f32 0.0, %v1067
      %v1069 = vpop.f32.mrb[0].mxu0
      %v1070 = vpop.f32.mrb[0].mxu0
      %v1071 = vadd.f32 0.0, %v1070
      %v1072 = vpop.f32.mrb[0].mxu0
      %1073 = vdwg.mxu0
      %v1074 = vpack.c.bf16 %v1071, %v1068
      %s1075 = scalar_lea.vmem %s4, 8
      %v1076 = vld [vmem:[%s1075] sm:$0xf]
      %v1078 = vsel %vm595, %v1074, 0
      %v1081 = vsel %vm857, %v1076, 0
      %1083 = vmatprep.subr.bf16.mxu0 0
      %1084 = vmatpush1.bf16.msra.mxu0 %v1081
      %1085 = vmatprep.subr.bf16.mxu0 0
      %1086 = vmatpush1.bf16.msra.mxu0 0
      %1087 = vmatprep.subr.bf16.mxu0 0
      %1088 = vmatpush1.bf16.msra.mxu0 0
      %1089 = vmatprep.subr.bf16.mxu0 0
      %1090 = vmatpush1.bf16.msra.mxu0 0
      %1091 = vmatprep.subr.bf16.mxu0 0
      %1092 = vmatpush1.bf16.msra.mxu0 0
      %1093 = vmatprep.subr.bf16.mxu0 0
      %1094 = vmatpush1.bf16.msra.mxu0 0
      %1095 = vmatprep.subr.bf16.mxu0 0
      %1096 = vmatpush1.bf16.msra.mxu0 0
      %1097 = vmatprep.subr.bf16.mxu0 0
      %1098 = vmatpush1.bf16.msra.mxu0 0
      %1099 = vmatprep.subr.bf16.mxu0 0
      %1100 = vmatpush1.bf16.msra.mxu0 0
      %1101 = vmatprep.subr.bf16.mxu0 0
      %1102 = vmatpush1.bf16.msra.mxu0 0
      %1103 = vmatprep.subr.bf16.mxu0 0
      %1104 = vmatpush1.bf16.msra.mxu0 0
      %1105 = vmatprep.subr.bf16.mxu0 0
      %1106 = vmatpush1.bf16.msra.mxu0 0
      %1107 = vmatprep.subr.bf16.mxu0 0
      %1108 = vmatpush1.bf16.msra.mxu0 0
      %1109 = vmatprep.subr.bf16.mxu0 0
      %1110 = vmatpush1.bf16.msra.mxu0 0
      %1111 = vmatprep.subr.bf16.mxu0 0
      %1112 = vmatpush1.bf16.msra.mxu0 0
      %1113 = vmatprep.subr.bf16.mxu0 0
      %1114 = vmatpush1.bf16.msra.mxu0 0
      %1115 = vmatprep.mubr.bf16.mxu0 0
      %1116 = vmatmul.mubr.bf16.gmra.mrb[0].mxu0 %v1078
      %v1117 = vpop.f32.mrb[0].mxu0
      %v1118 = vadd.f32 0.0, %v1117
      %v1119 = vpop.f32.mrb[0].mxu0
      %v1120 = vpop.f32.mrb[0].mxu0
      %v1121 = vadd.f32 0.0, %v1120
      %v1122 = vpop.f32.mrb[0].mxu0
      %1123 = vdwg.mxu0
      %v1124 = vadd.f32 %v943, %v1118
      %v1125 = vadd.f32 %v946, %v1121
      %1126 = vrot.lane.b32.xlu0 %v589, 104
      %v1127 = vpop.permute.xlu0 %1126
      %1128 = vrot.lane.b32.xlu0 %v594, 104
      %v1129 = vpop.permute.xlu0 %1128
      %v1131 = vsel %vm595, %v1127, 0
      %v1134 = vsel %vm595, %v1129, 0
      %1136 = vmatprep.subr.bf16.mxu0 0
      %1137 = vmatpush1.bf16.xpose.msra.mxu0 %v1134
      %1138 = vmatprep.subr.bf16.mxu0 0
      %1139 = vmatpush1.bf16.xpose.msra.mxu0 0
      %1140 = vmatprep.subr.bf16.mxu0 0
      %1141 = vmatpush1.bf16.xpose.msra.mxu0 0
      %1142 = vmatprep.subr.bf16.mxu0 0
      %1143 = vmatpush1.bf16.xpose.msra.mxu0 0
      %1144 = vmatprep.subr.bf16.mxu0 0
      %1145 = vmatpush1.bf16.xpose.msra.mxu0 0
      %1146 = vmatprep.subr.bf16.mxu0 0
      %1147 = vmatpush1.bf16.xpose.msra.mxu0 0
      %1148 = vmatprep.subr.bf16.mxu0 0
      %1149 = vmatpush1.bf16.xpose.msra.mxu0 0
      %1150 = vmatprep.subr.bf16.mxu0 0
      %1151 = vmatpush1.bf16.xpose.msra.mxu0 0
      %1152 = vmatprep.subr.bf16.mxu0 0
      %1153 = vmatpush1.bf16.xpose.msra.mxu0 0
      %1154 = vmatprep.subr.bf16.mxu0 0
      %1155 = vmatpush1.bf16.xpose.msra.mxu0 0
      %1156 = vmatprep.subr.bf16.mxu0 0
      %1157 = vmatpush1.bf16.xpose.msra.mxu0 0
      %1158 = vmatprep.subr.bf16.mxu0 0
      %1159 = vmatpush1.bf16.xpose.msra.mxu0 0
      %1160 = vmatprep.subr.bf16.mxu0 0
      %1161 = vmatpush1.bf16.xpose.msra.mxu0 0
      %1162 = vmatprep.subr.bf16.mxu0 0
      %1163 = vmatpush1.bf16.xpose.msra.mxu0 0
      %1164 = vmatprep.subr.bf16.mxu0 0
      %1165 = vmatpush1.bf16.xpose.msra.mxu0 0
      %1166 = vmatprep.subr.bf16.mxu0 0
      %1167 = vmatpush1.bf16.xpose.msra.mxu0 0
      %1168 = vmatprep.mubr.bf16.mxu0 0
      %1169 = vmatmul.mubr.bf16.gmra.mrb[0].mxu0 %v1131
      %v1170 = vpop.f32.mrb[0].mxu0
      %v1171 = vadd.f32 0.0, %v1170
      %v1172 = vpop.f32.mrb[0].mxu0
      %v1173 = vpop.f32.mrb[0].mxu0
      %v1174 = vadd.f32 0.0, %v1173
      %v1175 = vpop.f32.mrb[0].mxu0
      %1176 = vdwg.mxu0
      %v1177 = vmul.f32 %v1171, 0.35355338
      %v1178 = vmul.f32 %v1174, 0.35355338
      %v1179 = vadd.f32 %v1177, %v649
      %v1180 = vadd.f32 %v1178, %v649
      %v1181 = vsel %vm653, %v1179, -inf
      %1182 = vmax.xlane.f32.xlu0 %v1181
      %v1183 = vpop.xlane.xlu0 %1182
      %v1184 = vsel %vm653, %v1180, -inf
      %1185 = vmax.xlane.f32.xlu0 %v1184
      %v1186 = vpop.xlane.xlu0 %1185
      %v1187 = vsub.f32 %v1179, %v1183
      %v1188 = vsub.f32 %v1180, %v1186
      %v1189 = vmul.f32 %v1187, 1.442695
      %v1190 = vpow.pop %v1189
      %v1191 = vmul.f32 %v1188, 1.442695
      %v1192 = vpow.pop %v1191
      %v1193 = vsel %vm653, %v1190, 0.0
      %1194 = vadd.xlane.f32.xlu0 %v1193
      %v1195 = vpop.xlane.xlu0 %1194
      %v1196 = vsel %vm653, %v1192, 0.0
      %1197 = vadd.xlane.f32.xlu0 %v1196
      %v1198 = vpop.xlane.xlu0 %1197
      %v1199 = vrcp.pop %v1195
      %v1200 = vmul.f32 %v1190, %v1199
      %v1201 = vrcp.pop %v1198
      %v1202 = vmul.f32 %v1192, %v1201
      %v1203 = vpack.c.bf16 %v1202, %v1200
      %1204 = vrot.lane.b32.xlu0 %v594, 72
      %v1205 = vpop.permute.xlu0 %1204
      %v1208 = vsel %vm653, %v1203, 0
      %1210 = vmatprep.subr.bf16.mxu0 0
      %1211 = vmatpush1.bf16.msra.mxu0 %v1205
      %1212 = vmatprep.subr.bf16.mxu0 0
      %1213 = vmatpush1.bf16.msra.mxu0 0
      %1214 = vmatprep.subr.bf16.mxu0 0
      %1215 = vmatpush1.bf16.msra.mxu0 0
      %1216 = vmatprep.subr.bf16.mxu0 0
      %1217 = vmatpush1.bf16.msra.mxu0 0
      %1218 = vmatprep.subr.bf16.mxu0 0
      %1219 = vmatpush1.bf16.msra.mxu0 0
      %1220 = vmatprep.subr.bf16.mxu0 0
      %1221 = vmatpush1.bf16.msra.mxu0 0
      %1222 = vmatprep.subr.bf16.mxu0 0
      %1223 = vmatpush1.bf16.msra.mxu0 0
      %1224 = vmatprep.subr.bf16.mxu0 0
      %1225 = vmatpush1.bf16.msra.mxu0 0
      %1226 = vmatprep.subr.bf16.mxu0 0
      %1227 = vmatpush1.bf16.msra.mxu0 0
      %1228 = vmatprep.subr.bf16.mxu0 0
      %1229 = vmatpush1.bf16.msra.mxu0 0
      %1230 = vmatprep.subr.bf16.mxu0 0
      %1231 = vmatpush1.bf16.msra.mxu0 0
      %1232 = vmatprep.subr.bf16.mxu0 0
      %1233 = vmatpush1.bf16.msra.mxu0 0
      %1234 = vmatprep.subr.bf16.mxu0 0
      %1235 = vmatpush1.bf16.msra.mxu0 0
      %1236 = vmatprep.subr.bf16.mxu0 0
      %1237 = vmatpush1.bf16.msra.mxu0 0
      %1238 = vmatprep.subr.bf16.mxu0 0
      %1239 = vmatpush1.bf16.msra.mxu0 0
      %1240 = vmatprep.subr.bf16.mxu0 0
      %1241 = vmatpush1.bf16.msra.mxu0 0
      %1242 = vmatprep.mubr.bf16.mxu0 0
      %1243 = vmatmul.mubr.bf16.gmra.mrb[0].mxu0 %v1208
      %v1244 = vpop.f32.mrb[0].mxu0
      %v1245 = vadd.f32 0.0, %v1244
      %v1246 = vpop.f32.mrb[0].mxu0
      %v1247 = vpop.f32.mrb[0].mxu0
      %v1248 = vadd.f32 0.0, %v1247
      %v1249 = vpop.f32.mrb[0].mxu0
      %1250 = vdwg.mxu0
      %v1251 = vpack.c.bf16 %v1248, %v1245
      %s1252 = scalar_lea.vmem %s4, 12
      %v1253 = vld [vmem:[%s1252] sm:$0xf]
      %v1255 = vsel %vm595, %v1251, 0
      %v1258 = vsel %vm857, %v1253, 0
      %1260 = vmatprep.subr.bf16.mxu0 0
      %1261 = vmatpush1.bf16.msra.mxu0 %v1258
      %1262 = vmatprep.subr.bf16.mxu0 0
      %1263 = vmatpush1.bf16.msra.mxu0 0
      %1264 = vmatprep.subr.bf16.mxu0 0
      %1265 = vmatpush1.bf16.msra.mxu0 0
      %1266 = vmatprep.subr.bf16.mxu0 0
      %1267 = vmatpush1.bf16.msra.mxu0 0
      %1268 = vmatprep.subr.bf16.mxu0 0
      %1269 = vmatpush1.bf16.msra.mxu0 0
      %1270 = vmatprep.subr.bf16.mxu0 0
      %1271 = vmatpush1.bf16.msra.mxu0 0
      %1272 = vmatprep.subr.bf16.mxu0 0
      %1273 = vmatpush1.bf16.msra.mxu0 0
      %1274 = vmatprep.subr.bf16.mxu0 0
      %1275 = vmatpush1.bf16.msra.mxu0 0
      %1276 = vmatprep.subr.bf16.mxu0 0
      %1277 = vmatpush1.bf16.msra.mxu0 0
      %1278 = vmatprep.subr.bf16.mxu0 0
      %1279 = vmatpush1.bf16.msra.mxu0 0
      %1280 = vmatprep.subr.bf16.mxu0 0
      %1281 = vmatpush1.bf16.msra.mxu0 0
      %1282 = vmatprep.subr.bf16.mxu0 0
      %1283 = vmatpush1.bf16.msra.mxu0 0
      %1284 = vmatprep.subr.bf16.mxu0 0
      %1285 = vmatpush1.bf16.msra.mxu0 0
      %1286 = vmatprep.subr.bf16.mxu0 0
      %1287 = vmatpush1.bf16.msra.mxu0 0
      %1288 = vmatprep.subr.bf16.mxu0 0
      %1289 = vmatpush1.bf16.msra.mxu0 0
      %1290 = vmatprep.subr.bf16.mxu0 0
      %1291 = vmatpush1.bf16.msra.mxu0 0
      %1292 = vmatprep.mubr.bf16.mxu0 0
      %1293 = vmatmul.mubr.bf16.gmra.mrb[0].mxu0 %v1255
      %v1294 = vpop.f32.mrb[0].mxu0
      %v1295 = vadd.f32 0.0, %v1294
      %v1296 = vpop.f32.mrb[0].mxu0
      %v1297 = vpop.f32.mrb[0].mxu0
      %v1298 = vadd.f32 0.0, %v1297
      %v1299 = vpop.f32.mrb[0].mxu0
      %1300 = vdwg.mxu0
      %v1301 = vadd.f32 %v1124, %v1295
      %v1302 = vadd.f32 %v1125, %v1298
      %v1303 = vld [vmem:[%s5] sm:$0x1]
      %v1305 = vlaneseq
      %v1306 = vshrl.u32 %v1305, 7
      %v1307 = vsub.s32 0, %v1306
      %v1308 = vrot.slane %v1303, %v1307
      %v1310 = vadd.f32 %v1301, %v1308
      %v1311 = vadd.f32 %v1302, %v1308
      %v1312 = vunpack.c.l.bf16 %v578
      %v1313 = vunpack.c.l.bf16 %v579
      %v1314 = vadd.f32 %v1312, %v1310
      %v1315 = vadd.f32 %v1313, %v1311
      %v1316 = vld [vmem:[%s6] sm:$0x1]
      %v1317 = vld [vmem:[%s7] sm:$0x1]
      %vm1318 = vcmask 261120
      %v1319 = vsel %vm1318, %v1314, 0.0
      %1320 = vadd.xlane.f32.xlu0 %v1319
      %v1321 = vpop.xlane.xlu0 %1320
      %v1322 = vsel %vm1318, %v1315, 0.0
      %1323 = vadd.xlane.f32.xlu0 %v1322
      %v1324 = vpop.xlane.xlu0 %1323
      %v1325 = vrcp.pop 32.0
      %v1326 = vmul.f32 %v1321, %v1325
      %v1327 = vmul.f32 %v1324, %v1325
      %v1328 = vsub.f32 %v1314, %v1326
      %v1329 = vsub.f32 %v1315, %v1327
      %v1330 = vmul.f32 %v1328, %v1328
      %v1331 = vmul.f32 %v1329, %v1329
      %v1332 = vsel %vm1318, %v1330, 0.0
      %1333 = vadd.xlane.f32.xlu0 %v1332
      %v1334 = vpop.xlane.xlu0 %1333
      %v1335 = vsel %vm1318, %v1331, 0.0
      %1336 = vadd.xlane.f32.xlu0 %v1335
      %v1337 = vpop.xlane.xlu0 %1336
      %v1338 = vmul.f32 %v1334, %v1325
      %v1339 = vmul.f32 %v1337, %v1325
      %v1340 = vadd.f32 %v1338, 1e-12
      %v1341 = vadd.f32 %v1339, 1e-12
      %v1342 = vrsqrt.pop %v1340
      %v1343 = vrsqrt.pop %v1341
      %v1344 = vmul.f32 %v1328, %v1342
      %v1345 = vmul.f32 %v1329, %v1343
      %v1347 = vlaneseq
      %v1348 = vshrl.u32 %v1347, 7
      %v1349 = vsub.s32 0, %v1348
      %v1350 = vrot.slane %v1316, %v1349
      %v1352 = vmul.f32 %v1344, %v1350
      %v1353 = vmul.f32 %v1345, %v1350
      %v1355 = vlaneseq
      %v1356 = vshrl.u32 %v1355, 7
      %v1357 = vsub.s32 0, %v1356
      %v1358 = vrot.slane %v1317, %v1357
      %v1360 = vadd.f32 %v1352, %v1358
      %v1361 = vadd.f32 %v1353, %v1358
      %v1362 = vpack.c.bf16 %v1361, %v1360
      %v1363 = vld [vmem:[%s8] sm:$0xf]
      %v1364 = vld [vmem:[%s8 + $0x4] sm:$0xf]
      %v1365 = vld [vmem:[%s8 + $0x8] sm:$0xf]
      %v1366 = vld [vmem:[%s8 + $0xc] sm:$0xf]
      %v1367 = vld [vmem:[%s9] sm:$0x1]
      %v1369 = vlaneseq
      %v1370 = vshrl.u32 %v1369, 7
      %v1371 = vsub.s32 0, %v1370
      %v1372 = vrot.slane %v1367, %v1371
      %v1378 = vunpack.c.l.b16 %v1363
      %v1379 = vunpack.c.l.b16 %v1364
      %v1380 = vunpack.c.l.b16 %v1365
      %v1381 = vunpack.c.l.b16 %v1366
      %v1382 = vpack.c.b16 %v1379, %v1378
      %v1383 = vpack.c.b16 %v1381, %v1380
      %v1387 = vsel %vm1318, %v1362, 0
      %1389 = vmatprep.subr.bf16.mxu0 0
      %1390 = vmatpush1.bf16.msra.mxu0 %v1382
      %1391 = vmatprep.subr.bf16.mxu0 0
      %1392 = vmatpush1.bf16.msra.mxu0 %v1383
      %1393 = vmatprep.subr.bf16.mxu0 0
      %1394 = vmatpush1.bf16.msra.mxu0 0
      %1395 = vmatprep.subr.bf16.mxu0 0
      %1396 = vmatpush1.bf16.msra.mxu0 0
      %1397 = vmatprep.subr.bf16.mxu0 0
      %1398 = vmatpush1.bf16.msra.mxu0 0
      %1399 = vmatprep.subr.bf16.mxu0 0
      %1400 = vmatpush1.bf16.msra.mxu0 0
      %1401 = vmatprep.subr.bf16.mxu0 0
      %1402 = vmatpush1.bf16.msra.mxu0 0
      %1403 = vmatprep.subr.bf16.mxu0 0
      %1404 = vmatpush1.bf16.msra.mxu0 0
      %1405 = vmatprep.subr.bf16.mxu0 0
      %1406 = vmatpush1.bf16.msra.mxu0 0
      %1407 = vmatprep.subr.bf16.mxu0 0
      %1408 = vmatpush1.bf16.msra.mxu0 0
      %1409 = vmatprep.subr.bf16.mxu0 0
      %1410 = vmatpush1.bf16.msra.mxu0 0
      %1411 = vmatprep.subr.bf16.mxu0 0
      %1412 = vmatpush1.bf16.msra.mxu0 0
      %1413 = vmatprep.subr.bf16.mxu0 0
      %1414 = vmatpush1.bf16.msra.mxu0 0
      %1415 = vmatprep.subr.bf16.mxu0 0
      %1416 = vmatpush1.bf16.msra.mxu0 0
      %1417 = vmatprep.subr.bf16.mxu0 0
      %1418 = vmatpush1.bf16.msra.mxu0 0
      %1419 = vmatprep.subr.bf16.mxu0 0
      %1420 = vmatpush1.bf16.msra.mxu0 0
      %1421 = vmatprep.mubr.bf16.mxu0 0
      %1422 = vmatmul.mubr.bf16.gmra.mrb[0].mxu0 %v1387
      %v1423 = vpop.f32.mrb[0].mxu0
      %v1424 = vadd.f32 %v1372, %v1423
      %v1425 = vpop.f32.mrb[0].mxu0
      %v1426 = vpop.f32.mrb[0].mxu0
      %v1427 = vadd.f32 %v1372, %v1426
      %v1428 = vpop.f32.mrb[0].mxu0
      %1429 = vdwg.mxu0
      %v1430 = vmul.f32 %v1424, %v1424
      %v1431 = vmul.f32 %v1427, %v1427
      %v1432 = vmul.f32 %v1424, %v1430
      %v1433 = vmul.f32 %v1427, %v1431
      %v1434 = vmul.f32 %v1432, 0.044715
      %v1435 = vmul.f32 %v1433, 0.044715
      %v1436 = vadd.f32 %v1424, %v1434
      %v1437 = vadd.f32 %v1427, %v1435
      %v1438 = vmul.f32 %v1436, 0.7978846
      %v1439 = vmul.f32 %v1437, 0.7978846
      %v1440 = vtanh.pop %v1438
      %v1441 = vtanh.pop %v1439
      %v1442 = vadd.f32 %v1440, 1.0
      %v1443 = vadd.f32 %v1441, 1.0
      %v1444 = vmul.f32 %v1442, 0.5
      %v1445 = vmul.f32 %v1443, 0.5
      %v1446 = vmul.f32 %v1424, %v1444
      %v1447 = vmul.f32 %v1427, %v1445
      %v1448 = vpack.c.bf16 %v1447, %v1446
      %v1449 = vld [vmem:[%s10] sm:$0xf]
      %v1450 = vld [vmem:[%s10 + $0x4] sm:$0xf]
      %v1451 = vld [vmem:[%s10 + $0x8] sm:$0xf]
      %v1452 = vld [vmem:[%s10 + $0xc] sm:$0xf]
      %v1453 = vld [vmem:[%s10 + $0x10] sm:$0xf]
      %v1454 = vld [vmem:[%s10 + $0x14] sm:$0xf]
      %v1455 = vld [vmem:[%s10 + $0x18] sm:$0xf]
      %v1456 = vld [vmem:[%s10 + $0x1c] sm:$0xf]
      %v1457 = vld [vmem:[%s11] sm:$0x1]
      %v1459 = vlaneseq
      %v1460 = vshrl.u32 %v1459, 7
      %v1461 = vsub.s32 0, %v1460
      %v1462 = vrot.slane %v1457, %v1461
      %v1472 = vunpack.c.l.b16 %v1449
      %v1473 = vunpack.c.l.b16 %v1450
      %v1474 = vunpack.c.l.b16 %v1451
      %v1475 = vunpack.c.l.b16 %v1452
      %v1476 = vunpack.c.l.b16 %v1453
      %v1477 = vunpack.c.l.b16 %v1454
      %v1478 = vunpack.c.l.b16 %v1455
      %v1479 = vunpack.c.l.b16 %v1456
      %v1480 = vpack.c.b16 %v1473, %v1472
      %v1481 = vpack.c.b16 %v1475, %v1474
      %v1482 = vpack.c.b16 %v1477, %v1476
      %v1483 = vpack.c.b16 %v1479, %v1478
      %vm1488 = vcmask 523264
      %v1490 = vsel %vm1488, %v1448, 0
      %1492 = vmatprep.subr.bf16.mxu0 0
      %1493 = vmatpush1.bf16.msra.mxu0 %v1480
      %1494 = vmatprep.subr.bf16.mxu0 0
      %1495 = vmatpush1.bf16.msra.mxu0 %v1481
      %1496 = vmatprep.subr.bf16.mxu0 0
      %1497 = vmatpush1.bf16.msra.mxu0 %v1482
      %1498 = vmatprep.subr.bf16.mxu0 0
      %1499 = vmatpush1.bf16.msra.mxu0 %v1483
      %1500 = vmatprep.subr.bf16.mxu0 0
      %1501 = vmatpush1.bf16.msra.mxu0 0
      %1502 = vmatprep.subr.bf16.mxu0 0
      %1503 = vmatpush1.bf16.msra.mxu0 0
      %1504 = vmatprep.subr.bf16.mxu0 0
      %1505 = vmatpush1.bf16.msra.mxu0 0
      %1506 = vmatprep.subr.bf16.mxu0 0
      %1507 = vmatpush1.bf16.msra.mxu0 0
      %1508 = vmatprep.subr.bf16.mxu0 0
      %1509 = vmatpush1.bf16.msra.mxu0 0
      %1510 = vmatprep.subr.bf16.mxu0 0
      %1511 = vmatpush1.bf16.msra.mxu0 0
      %1512 = vmatprep.subr.bf16.mxu0 0
      %1513 = vmatpush1.bf16.msra.mxu0 0
      %1514 = vmatprep.subr.bf16.mxu0 0
      %1515 = vmatpush1.bf16.msra.mxu0 0
      %1516 = vmatprep.subr.bf16.mxu0 0
      %1517 = vmatpush1.bf16.msra.mxu0 0
      %1518 = vmatprep.subr.bf16.mxu0 0
      %1519 = vmatpush1.bf16.msra.mxu0 0
      %1520 = vmatprep.subr.bf16.mxu0 0
      %1521 = vmatpush1.bf16.msra.mxu0 0
      %1522 = vmatprep.subr.bf16.mxu0 0
      %1523 = vmatpush1.bf16.msra.mxu0 0
      %1524 = vmatprep.mubr.bf16.mxu0 0
      %1525 = vmatmul.mubr.bf16.gmra.mrb[0].mxu0 %v1490
      %v1526 = vpop.f32.mrb[0].mxu0
      %v1527 = vadd.f32 %v1462, %v1526
      %v1528 = vpop.f32.mrb[0].mxu0
      %v1529 = vpop.f32.mrb[0].mxu0
      %v1530 = vadd.f32 %v1462, %v1529
      %v1531 = vpop.f32.mrb[0].mxu0
      %1532 = vdwg.mxu0
      %v1533 = vadd.f32 %v1360, %v1527
      %v1534 = vadd.f32 %v1361, %v1530
      %v1535 = vld [vmem:[%s12] sm:$0x1]
      %v1536 = vld [vmem:[%s13] sm:$0x1]
      %v1537 = vsel %vm1318, %v1533, 0.0
      %1538 = vadd.xlane.f32.xlu0 %v1537
      %v1539 = vpop.xlane.xlu0 %1538
      %v1540 = vsel %vm1318, %v1534, 0.0
      %1541 = vadd.xlane.f32.xlu0 %v1540
      %v1542 = vpop.xlane.xlu0 %1541
      %v1543 = vmul.f32 %v1539, %v1325
      %v1544 = vmul.f32 %v1542, %v1325
      %v1545 = vsub.f32 %v1533, %v1543
      %v1546 = vsub.f32 %v1534, %v1544
      %v1547 = vmul.f32 %v1545, %v1545
      %v1548 = vmul.f32 %v1546, %v1546
      %v1549 = vsel %vm1318, %v1547, 0.0
      %1550 = vadd.xlane.f32.xlu0 %v1549
      %v1551 = vpop.xlane.xlu0 %1550
      %v1552 = vsel %vm1318, %v1548, 0.0
      %1553 = vadd.xlane.f32.xlu0 %v1552
      %v1554 = vpop.xlane.xlu0 %1553
      %v1555 = vmul.f32 %v1551, %v1325
      %v1556 = vmul.f32 %v1554, %v1325
      %v1557 = vadd.f32 %v1555, 1e-12
      %v1558 = vadd.f32 %v1556, 1e-12
      %v1559 = vrsqrt.pop %v1557
      %v1560 = vrsqrt.pop %v1558
      %v1561 = vmul.f32 %v1545, %v1559
      %v1562 = vmul.f32 %v1546, %v1560
      %v1564 = vlaneseq
      %v1565 = vshrl.u32 %v1564, 7
      %v1566 = vsub.s32 0, %v1565
      %v1567 = vrot.slane %v1535, %v1566
      %v1569 = vmul.f32 %v1561, %v1567
      %v1570 = vmul.f32 %v1562, %v1567
      %v1572 = vlaneseq
      %v1573 = vshrl.u32 %v1572, 7
      %v1574 = vsub.s32 0, %v1573
      %v1575 = vrot.slane %v1536, %v1574
      %v1577 = vadd.f32 %v1569, %v1575
      %v1578 = vadd.f32 %v1570, %v1575
      %v1579 = vpack.c.bf16 %v1578, %v1577
      %v1581 = vunpack.c.l.b16 %v1579
      %v1582 = vunpack.c.h.b16 %v1579
      %v1583 = vpack.c.b16 %v1581, %v1581
      %v1584 = vpack.c.b16 %v1582, %v1582
      %vm1587 = vcmask 257024
      %1588 = vst.msk [vmem:[%s575] sm:$0xf] %vm1587, %v1583
      %1589 = vst.msk [vmem:[%s575 + $0x4] sm:$0xf] %vm1587, %v1584
      %s1590 = smul.u32 2, %s30
      %p1591 = scmp.lt.s32.totalorder %s29, 1
      %s1592 = scalar_select %p1591, %s29, 1
      %p1593 = scmp.lt.s32.totalorder %s1590, 1
      %s1594 = scalar_select %p1593, %s1590, 1
      %s1595 = smul.addr %s1592, 2
      %s1596 = sadd.s32 %s1594, %s1595
      %s1597 = smul.addr %s1596, 4
      %s1598 = scalar_lea.vmem %s14, %s1597
      // Predicated region
      $region77: #{nbest_align_bert_forward.8} parent=75 // pred_check
        %p1599 = pneg %p375
      $region78: #{nbest_align_bert_forward.8} parent=75 // pred_check_branch
        %1601 = sbr.rel (%p1599) target = $region80
      $region79: #{nbest_align_bert_forward.8} parent=75 // pred_region
        %s1602 = smul.u32 2, %s30
      $region80: #{nbest_align_bert_forward.8} parent=75 // pred_fallthru
        _
    $region76: #{nbest_align_bert_forward.8} parent=5 // pred_fallthru
      _
    %p1603 = scmp.le.s32.totalorder 2, %s20
    // Predicated region
    $region81: #{nbest_align_bert_forward.8} parent=5 // pred_check
      %p1604 = pneg %p1603
    $region82: #{nbest_align_bert_forward.8} parent=5 // pred_check_branch
      %1606 = sbr.rel (%p1604) target = $region84
    $region83: #{nbest_align_bert_forward.8} parent=5 // pred_region
      %s1607 = ssub.s32 %s20, 2
      // Predicated region
      $region85: #{nbest_align_bert_forward.8} parent=83 // pred_check
        %p1608 = pneg %p381
      $region86: #{nbest_align_bert_forward.8} parent=83 // pred_check_branch
        %1610 = sbr.rel (%p1608) target = $region88
      $region87: #{nbest_align_bert_forward.8} parent=83 // pred_region
        %s1611 = smul.u32 2, %s32
        %p1612 = scmp.lt.s32.totalorder %s31, 1
        %s1613 = scalar_select %p1612, %s31, 1
        %p1614 = scmp.lt.s32.totalorder %s1611, 1
        %s1615 = scalar_select %p1614, %s1611, 1
        %s1616 = smul.addr %s1613, 2
        %s1617 = sadd.s32 %s1615, %s1616
        %s1618 = smul.addr %s1617, 4
        %s1619 = scalar_lea.vmem %s14, %s1618
      $region88: #{nbest_align_bert_forward.8} parent=83 // pred_fallthru
        _
    $region84: #{nbest_align_bert_forward.8} parent=5 // pred_fallthru
      _
  $region6: #{nbest_align_bert_forward.8} parent=0 // loop_footer
    %s24 = sadd.s32 1, %s20
  $region7: #{nbest_align_bert_forward.8} parent=0 // loop_footer_branch
    %19 = sbr.rel target = $region3
  $region8: #{nbest_align_bert_forward.8} parent=0 // loop_exit
    _

</llo_original>
